<compile_context>
chip_gen: v6e
topology: v6e:2x2x1
jax: 0.10.0
libtpu: 0.0.40
codegen_flags: <defaults>
</compile_context>

<pallas_src>
import jax
import jax.numpy as jnp
from jax.experimental import pallas as pl
from jax.experimental.pallas import tpu as pltpu

NEG_SLOPE = 0.02   # LeakyReLU slope of Conv1d_Layernorm_LRelu
GN_EPS = 1e-5      # GroupNorm eps (torch default)


# ---------------------------------------------------------------------------
# in-kernel building blocks (values are (C, time) tiles: channels on sublanes,
# time on the 128-lane axis)
# ---------------------------------------------------------------------------
def _valid_mask(width, halo, t_valid):
    """(1, width) bool mask selecting the real (non-halo) time columns."""
    lane = jax.lax.broadcasted_iota(jnp.int32, (1, width), 1)
    return jnp.logical_and(lane >= halo, lane < halo + t_valid)


def _conv_taps(x, w_ref, *, K, stride, q, a_in, b_out, w_out):
    """1-D conv as K shifted matmuls (no im2col buffer).

    x:      (C_in, W_in) f32 activation stored with `a_in` zero halo columns.
    w_ref:  (K, C_out, C_in) bf16 tap-major weight.
    Output: (C_out, w_out) f32; column c is valid output index c - b_out
            (halo columns contain garbage and are masked by the caller)."""
    C_in, _ = x.shape
    xb = x.astype(jnp.bfloat16)                       # MXU-native operand
    acc = None
    for j in range(K):
        start = j - q + a_in - stride * b_out         # always >= 0 by the plan
        if stride == 1:
            xs = xb[:, start:start + w_out]
        else:
            # TODO(synk): stride>1 (unused by the demo arch) subsamples via a
            # lane-axis reshape; a polyphase formulation would avoid the copy.
            xs = xb[:, start:start + w_out * stride]
            xs = xs.reshape(C_in, w_out, stride)[:, :, 0]
        y = jnp.dot(w_ref[j], xs, preferred_element_type=jnp.float32)
        acc = y if acc is None else acc + y
    return acc


def _gn_act(y, g_ref, b_ref, mask, n_valid, act):
    """GroupNorm(1, C) over the valid columns + activation, halos re-zeroed.

    y: (C, W) f32 (garbage in halo columns), mask: (1, W) bool,
    n_valid = C * T_valid.  One-pass mean / var (sum + sum of squares)."""
    ym = jnp.where(mask, y, 0.0)
    mean = jnp.sum(ym) / n_valid
    var = jnp.maximum(jnp.sum(ym * ym) / n_valid - mean * mean, 0.0)
    yn = (y - mean) * jax.lax.rsqrt(var + GN_EPS) * g_ref[...] + b_ref[...]
    if act == 'lrelu':
        a = jnp.where(yn >= 0, yn, NEG_SLOPE * yn)
    else:  # GLU along channels (F.glu(dim=1)): first half * sigmoid(second)
        c = yn.shape[0] // 2
        a = yn[:c] * pl.reciprocal(1.0 + jnp.exp(-yn[c:]), approx=True)  # EUP
    return jnp.where(mask, a, 0.0)                    # restore zero halos


def _vq(z, cb_ref, cbsq_ref):
    """Nearest-codebook lookup (VectorQuantizer eval path).

    Kept in f32 so the discrete argmin matches the reference exactly.
    z: (D, W) -> quantized (D, W)."""
    e = cb_ref[...]                                              # (N, D)
    scores = jnp.dot(e, z, preferred_element_type=jnp.float32)   # (N, W)
    # ||z_t||^2 is constant per column -> does not change the argmin, omitted.
    d = cbsq_ref[...] - 2.0 * scores                             # (N, W)
    n_iota = jax.lax.broadcasted_iota(jnp.int32, d.shape, 0)
    dmin = jnp.min(d, axis=0, keepdims=True)
    idx = jnp.min(jnp.where(d == dmin, n_iota, jnp.int32(d.shape[0])),
                  axis=0, keepdims=True)                         # first-min index
    onehot = (n_iota == idx).astype(jnp.float32)                 # (N, W)
    return jax.lax.dot_general(e, onehot, (((0,), (0,)), ((), ())),
                               preferred_element_type=jnp.float32)   # (D, W)


# ---------------------------------------------------------------------------
# static layer plan (python ints only): halo chain + valid / stored widths
# ---------------------------------------------------------------------------
def _layer_plan(arch, T):
    enc, dec = arch['encoder'], arch['decoder']
    ops = []
    for k, s in zip(enc['kernel'], enc['stride']):
        ops.append(dict(kind='enc', K=k, s=s, q=(k - 1) // 2))
    ops.append(dict(kind='proj', K=1, s=1, q=0))
    n_dec = len(dec['output'])
    for li, (k, s) in enumerate(zip(dec['kernel'], dec['stride'])):
        p = (k - 1) // 2
        assert k - 1 - p >= 0, "ConvTranspose1d padding > kernel_size - 1"
        if s != 1:
            # TODO(synk): stride>1 ConvTranspose1d (zero-stuffing / polyphase)
            # is not implemented in the fused kernel; demo arch uses stride=1.
            raise NotImplementedError("fused decoder path requires stride == 1")
        # ConvTranspose1d(stride=1, padding=p) == Conv1d(flipped W, padding=k-1-p)
        ops.append(dict(kind='dec', K=k, s=s, q=k - 1 - p, glu=(li < n_dec - 1)))

    # backward halo chain: the last op needs no output halo.
    b = 0
    for op in reversed(ops):
        op['B'] = b
        op['A'] = op['q'] + op['s'] * b + (op['s'] - 1 if op['s'] > 1 else 0)
        b = op['A']
    # forward valid lengths and stored widths.
    t = T
    for op in ops:
        op['T_in'], op['W_in'] = t, t + 2 * op['A']
        t = (t + 2 * op['q'] - op['K']) // op['s'] + 1
        op['T_out'], op['W_out'] = t, t + 2 * op['B']
    return ops


# ---------------------------------------------------------------------------
# parameters (torch layouts) + one-time re-layout for the fused kernel
# ---------------------------------------------------------------------------
def init_params(arch, key):
    keys = iter(jax.random.split(key, 64))

    def nrm(shape, scale=0.1):
        return scale * jax.random.normal(next(keys), shape, jnp.float32)

    p = {'embeds': nrm((arch['y_num'], arch['y_dim']), 1.0)}     # Conditions
    enc = arch['encoder']
    p['enc_layers'] = [dict(w=nrm((o, i, k)), b=nrm((o,)),
                            gamma=jnp.ones((o,), jnp.float32),
                            beta=jnp.zeros((o,), jnp.float32))
                       for i, o, k in zip(enc['input'], enc['output'], enc['kernel'])]
    p['enc_proj_w'] = nrm((arch['z_dim'], enc['output'][-1], 1))
    p['enc_proj_b'] = nrm((arch['z_dim'],))
    p['codebook'] = nrm((arch['z_num'], arch['z_dim']), 1.0)     # VectorQuantizer._embedding
    dec = arch['decoder']
    p['dec_layers'] = []
    n = len(dec['output'])
    for li, (i, o, k) in enumerate(zip(dec['input'], dec['output'], dec['kernel'])):
        cin = i + arch['y_dim']
        if li == n - 1:   # plain ConvTranspose1d
            p['dec_layers'].append(dict(w=nrm((cin, o, k)), b=nrm((o,))))
        else:             # DeConv1d_Layernorm_GLU: deconv to 2*o + GN + GLU
            p['dec_layers'].append(dict(w=nrm((cin, 2 * o, k)), b=nrm((2 * o,)),
                                        gamma=jnp.ones((2 * o,), jnp.float32),
                                        beta=jnp.zeros((2 * o,), jnp.float32)))
    return p


def prepare_params(params, arch):
    """One-time weight re-layouts (hoisted out of the forward pass)."""
    y_dim = arch['y_dim']

    def conv_w(w):      # torch Conv1d (C_out, C_in, K) -> tap-major (K, C_out, C_in)
        return jnp.transpose(w, (2, 0, 1)).astype(jnp.bfloat16)

    def deconv_w(wt):   # torch ConvTranspose1d (C_in, C_out, K) -> flipped conv
        return jnp.transpose(jnp.flip(wt, axis=2), (2, 1, 0)).astype(jnp.bfloat16)

    def col(v):         # per-channel vectors as (C, 1) columns (broadcast over time)
        return v.reshape(-1, 1).astype(jnp.float32)

    pp = {'embeds': params['embeds'].astype(jnp.float32)}
    pp['enc_layers'] = [dict(w=conv_w(l['w']), b=col(l['b']),
                             gamma=col(l['gamma']), beta=col(l['beta']))
                        for l in params['enc_layers']]
    pp['proj_w'] = conv_w(params['enc_proj_w'])                  # (1, z_dim, C_enc)
    pp['proj_b'] = col(params['enc_proj_b'])
    cb = params['codebook'].astype(jnp.float32)
    pp['codebook'] = cb
    pp['codebook_sq'] = jnp.sum(cb * cb, axis=1, keepdims=True)  # hoisted ||e||^2
    pp['dec_layers'] = []
    for l in params['dec_layers']:
        w = deconv_w(l['w'])                                     # (K, C_out, C_h + y_dim)
        c_h = w.shape[2] - y_dim
        d = dict(w_h=w[:, :, :c_h], w_y=w[:, :, c_h:], b=col(l['b']))
        if 'gamma' in l:
            d['gamma'] = col(l['gamma'])
            d['beta'] = col(l['beta'])
        pp['dec_layers'].append(d)
    return pp


# ---------------------------------------------------------------------------
# fused eval-mode forward: one pallas_call for the whole model
# ---------------------------------------------------------------------------
def model_forward(prepped, arch, x, y):
    """Eval Model.forward: x (B, C, T) f32, y (B, 1) int32 -> xhat (B, C, T)."""
    B, _, T = x.shape
    y_dim = arch['y_dim']
    ops = _layer_plan(arch, T)
    enc_ops = [op for op in ops if op['kind'] == 'enc']
    proj_op = next(op for op in ops if op['kind'] == 'proj')
    dec_ops = [op for op in ops if op['kind'] == 'dec']
    A0 = ops[0]['A']

    # Tiny glue that stays in plain JAX: condition-embedding lookup and the
    # single halo pad of x (total conv padding of the whole network).
    # TODO(synk): embed_norm=True renormalization of codebook/conditions is not
    #             implemented (arch['embed_norm'] is False here).
    y_emb = jnp.transpose(prepped['embeds'][y], (0, 2, 1)).astype(jnp.float32)
    x_pad = jnp.pad(x.astype(jnp.float32), ((0, 0), (0, 0), (A0, A0)))

    operands, in_specs = [], []

    def add_per_sample(a):                               # one (1, C, W) block / step
        operands.append(a)
        in_specs.append(pl.BlockSpec((1,) + a.shape[1:], lambda i: (i, 0, 0)))

    def add_const(a):                                    # VMEM-resident across steps
        operands.append(a)
        nd = a.ndim
        in_specs.append(pl.BlockSpec(a.shape, lambda i, _nd=nd: (0,) * _nd))

    add_per_sample(x_pad)
    add_per_sample(y_emb)
    add_const(prepped['codebook'])
    add_const(prepped['codebook_sq'])
    for lp in prepped['enc_layers']:
        for nm in ('w', 'b', 'gamma', 'beta'):
            add_const(lp[nm])
    add_const(prepped['proj_w'])
    add_const(prepped['proj_b'])
    for lp, op in zip(prepped['dec_layers'], dec_ops):
        names = ('w_h', 'w_y', 'b', 'gamma', 'beta') if op['glu'] else ('w_h', 'w_y', 'b')
        for nm in names:
            add_const(lp[nm])

    C_out, T_out = arch['decoder']['output'][-1], ops[-1]['T_out']

    def kernel(x_ref, ye_ref, cb_ref, cbsq_ref, *rest):
        out_ref = rest[-1]
        it = iter(rest[:-1])

        # -------- encoder: Conv1d + GroupNorm(1,C) + LeakyReLU --------------
        h = x_ref[0].astype(jnp.float32)                 # (C_in, T + 2*A0)
        for op in enc_ops:
            w, b, g, bt = [next(it) for _ in range(4)]
            yv = _conv_taps(h, w, K=op['K'], stride=op['s'], q=op['q'],
                            a_in=op['A'], b_out=op['B'], w_out=op['W_out']) + b[...]
            m = _valid_mask(op['W_out'], op['B'], op['T_out'])
            h = _gn_act(yv, g, bt, m, float(yv.shape[0] * op['T_out']), 'lrelu')

        # -------- 1x1 projection to z_dim -----------------------------------
        wp, bp = next(it), next(it)
        yv = _conv_taps(h, wp, K=1, stride=1, q=0, a_in=proj_op['A'],
                        b_out=proj_op['B'], w_out=proj_op['W_out']) + bp[...]
        m = _valid_mask(proj_op['W_out'], proj_op['B'], proj_op['T_out'])
        z = jnp.where(m, yv, 0.0)                        # (z_dim, W), zero halos

        # -------- vector quantizer (eval path) ------------------------------
        zq = _vq(z, cb_ref, cbsq_ref)
        h = jnp.where(m, zq, 0.0)                        # halo columns -> 0 again

        # -------- decoder: [h ; y] -> ConvTranspose1d (+ GN + GLU) ----------
        ye = ye_ref[0]                                   # (y_dim, 1)
        for op in dec_ops:
            m_in = _valid_mask(op['W_in'], op['A'], op['T_in'])
            yc = jnp.where(m_in, ye, 0.0)                # broadcast conditions,
            #                                              zero in the halo
            w_h, w_y, b = [next(it) for _ in range(3)]
            kw = dict(K=op['K'], stride=op['s'], q=op['q'],
                      a_in=op['A'], b_out=op['B'], w_out=op['W_out'])
            # weight pre-split into activation / condition parts: no concat.
            yv = _conv_taps(h, w_h, **kw) + _conv_taps(yc, w_y, **kw) + b[...]
            if op['glu']:
                g, bt = next(it), next(it)
                m = _valid_mask(op['W_out'], op['B'], op['T_out'])
                h = _gn_act(yv, g, bt, m, float(yv.shape[0] * op['T_out']), 'glu')
            else:
                h = yv                                   # last layer: no halo left

        out_ref[0] = h                                   # (C_x, T), lane-dense in T

    # TODO(synk): for very long T a time-tiling grid axis (with cross-tile
    #             GroupNorm accumulation) would be needed; one sample must
    #             currently fit the 32 MiB scoped-VMEM budget below.
    return pl.pallas_call(
        kernel,
        out_shape=jax.ShapeDtypeStruct((B, C_out, T_out), jnp.float32),
        grid=(B,),
        in_specs=in_specs,
        out_specs=pl.BlockSpec((1, C_out, T_out), lambda i: (i, 0, 0)),
        compiler_params=pltpu.CompilerParams(
            dimension_semantics=("parallel",),           # v7x: batch across both TCs
            vmem_limit_bytes=32 * 1024 * 1024),          # safe on v5e/v6e/v7x
    )(*operands)


# ---------------------------------------------------------------------------
if __name__ == "__main__":
    arch = {
        'z_dim': 8, 'z_num': 16, 'y_dim': 4, 'y_num': 4,
        'embed_norm': False, 'jitter_p': 0.0, 'beta': 0.25,
        'encoder': {'input': [4, 16], 'output': [16, 16],
                    'kernel': [3, 3], 'stride': [1, 1]},
        'decoder': {'input': [8, 16], 'output': [16, 4],
                    'kernel': [3, 3], 'stride': [1, 1]},
    }
    key = jax.random.PRNGKey(0)
    kp, kx, ky = jax.random.split(key, 3)

    params = init_params(arch, kp)
    prepped = prepare_params(params, arch)               # one-time re-layouts

    B, T = 2, 16
    x = jax.random.normal(kx, (B, arch['encoder']['input'][0], T), jnp.float32)
    y = jax.random.randint(ky, (B, 1), 0, arch['y_num'], dtype=jnp.int32)

    xhat = model_forward(prepped, arch, x, y)
    xhat = jax.block_until_ready(xhat)

    assert xhat.shape == x.shape, xhat.shape
    assert bool(jnp.all(jnp.isfinite(xhat)))
    print("KERNEL_OK")
</pallas_src>

<mosaic_0001>
module attributes {stable_mosaic.version = 11 : i64} {
  func.func @kernel(%arg0: i32, %arg1: memref<1x4x24xf32, #tpu.memory_space<vmem>>, %arg2: memref<1x4x1xf32, #tpu.memory_space<vmem>>, %arg3: memref<16x8xf32, #tpu.memory_space<vmem>>, %arg4: memref<16x1xf32, #tpu.memory_space<vmem>>, %arg5: memref<3x16x4xbf16, #tpu.memory_space<vmem>>, %arg6: memref<16x1xf32, #tpu.memory_space<vmem>>, %arg7: memref<16x1xf32, #tpu.memory_space<vmem>>, %arg8: memref<16x1xf32, #tpu.memory_space<vmem>>, %arg9: memref<3x16x16xbf16, #tpu.memory_space<vmem>>, %arg10: memref<16x1xf32, #tpu.memory_space<vmem>>, %arg11: memref<16x1xf32, #tpu.memory_space<vmem>>, %arg12: memref<16x1xf32, #tpu.memory_space<vmem>>, %arg13: memref<1x8x16xbf16, #tpu.memory_space<vmem>>, %arg14: memref<8x1xf32, #tpu.memory_space<vmem>>, %arg15: memref<3x32x8xbf16, #tpu.memory_space<vmem>>, %arg16: memref<3x32x4xbf16, #tpu.memory_space<vmem>>, %arg17: memref<32x1xf32, #tpu.memory_space<vmem>>, %arg18: memref<32x1xf32, #tpu.memory_space<vmem>>, %arg19: memref<32x1xf32, #tpu.memory_space<vmem>>, %arg20: memref<3x4x16xbf16, #tpu.memory_space<vmem>>, %arg21: memref<3x4x4xbf16, #tpu.memory_space<vmem>>, %arg22: memref<4x1xf32, #tpu.memory_space<vmem>>, %arg23: memref<1x4x16xf32, #tpu.memory_space<vmem>>) attributes {dimension_semantics = [#tpu.dimension_semantics<parallel>], iteration_bounds = array<i64: 2>, scalar_prefetch = 0 : i64, scratch_operands = 0 : i64, tpu.core_type = #tpu.core_type<tc>, window_params = [{transform_indices = @transform_0, window_bounds = array<i64: 1, 4, 24>}, {transform_indices = @transform_1, window_bounds = array<i64: 1, 4, 1>}, {pipeline_mode = #tpu.pipeline_mode<synchronous>, transform_indices = @transform_2, window_bounds = array<i64: 16, 8>}, {pipeline_mode = #tpu.pipeline_mode<synchronous>, transform_indices = @transform_3, window_bounds = array<i64: 16, 1>}, {pipeline_mode = #tpu.pipeline_mode<synchronous>, transform_indices = @transform_4, window_bounds = array<i64: 3, 16, 4>}, {pipeline_mode = #tpu.pipeline_mode<synchronous>, transform_indices = @transform_5, window_bounds = array<i64: 16, 1>}, {pipeline_mode = #tpu.pipeline_mode<synchronous>, transform_indices = @transform_6, window_bounds = array<i64: 16, 1>}, {pipeline_mode = #tpu.pipeline_mode<synchronous>, transform_indices = @transform_7, window_bounds = array<i64: 16, 1>}, {pipeline_mode = #tpu.pipeline_mode<synchronous>, transform_indices = @transform_8, window_bounds = array<i64: 3, 16, 16>}, {pipeline_mode = #tpu.pipeline_mode<synchronous>, transform_indices = @transform_9, window_bounds = array<i64: 16, 1>}, {pipeline_mode = #tpu.pipeline_mode<synchronous>, transform_indices = @transform_10, window_bounds = array<i64: 16, 1>}, {pipeline_mode = #tpu.pipeline_mode<synchronous>, transform_indices = @transform_11, window_bounds = array<i64: 16, 1>}, {pipeline_mode = #tpu.pipeline_mode<synchronous>, transform_indices = @transform_12, window_bounds = array<i64: 1, 8, 16>}, {pipeline_mode = #tpu.pipeline_mode<synchronous>, transform_indices = @transform_13, window_bounds = array<i64: 8, 1>}, {pipeline_mode = #tpu.pipeline_mode<synchronous>, transform_indices = @transform_14, window_bounds = array<i64: 3, 32, 8>}, {pipeline_mode = #tpu.pipeline_mode<synchronous>, transform_indices = @transform_15, window_bounds = array<i64: 3, 32, 4>}, {pipeline_mode = #tpu.pipeline_mode<synchronous>, transform_indices = @transform_16, window_bounds = array<i64: 32, 1>}, {pipeline_mode = #tpu.pipeline_mode<synchronous>, transform_indices = @transform_17, window_bounds = array<i64: 32, 1>}, {pipeline_mode = #tpu.pipeline_mode<synchronous>, transform_indices = @transform_18, window_bounds = array<i64: 32, 1>}, {pipeline_mode = #tpu.pipeline_mode<synchronous>, transform_indices = @transform_19, window_bounds = array<i64: 3, 4, 16>}, {pipeline_mode = #tpu.pipeline_mode<synchronous>, transform_indices = @transform_20, window_bounds = array<i64: 3, 4, 4>}, {pipeline_mode = #tpu.pipeline_mode<synchronous>, transform_indices = @transform_21, window_bounds = array<i64: 4, 1>}, {transform_indices = @transform_22, window_bounds = array<i64: 1, 4, 16>}]} {
    %c0 = arith.constant 0 : index
    %c0_0 = arith.constant 0 : index
    %c0_1 = arith.constant 0 : index
    %0 = vector.load %arg1[%c0, %c0_0, %c0_1] : memref<1x4x24xf32, #tpu.memory_space<vmem>>, vector<1x4x24xf32>
    %1 = vector.shape_cast %0 : vector<1x4x24xf32> to vector<4x24xf32>
    %2 = arith.truncf %1 : vector<4x24xf32> to vector<4x24xbf16>
    %3 = vector.extract_strided_slice %2 {offsets = [0, 0], sizes = [4, 22], strides = [1, 1]} : vector<4x24xbf16> to vector<4x22xbf16>
    %c0_2 = arith.constant 0 : index
    %c0_3 = arith.constant 0 : index
    %c0_4 = arith.constant 0 : index
    %4 = vector.load %arg5[%c0_2, %c0_3, %c0_4] : memref<3x16x4xbf16, #tpu.memory_space<vmem>>, vector<1x16x4xbf16>
    %5 = vector.shape_cast %4 : vector<1x16x4xbf16> to vector<16x4xbf16>
    %cst = arith.constant dense<0.000000e+00> : vector<16x22xf32>
    %6 = tpu.matmul %5, %3, %cst {dimension_numbers = #tpu.dot_dimension_numbers<[1], [0], [0], [1], [0, 0, 1, 1], [], []>} : vector<16x4xbf16>, vector<4x22xbf16>, vector<16x22xf32> -> vector<16x22xf32>
    %7 = vector.extract_strided_slice %2 {offsets = [0, 1], sizes = [4, 22], strides = [1, 1]} : vector<4x24xbf16> to vector<4x22xbf16>
    %c1 = arith.constant 1 : index
    %c0_5 = arith.constant 0 : index
    %c0_6 = arith.constant 0 : index
    %8 = vector.load %arg5[%c1, %c0_5, %c0_6] : memref<3x16x4xbf16, #tpu.memory_space<vmem>>, vector<1x16x4xbf16>
    %9 = vector.shape_cast %8 : vector<1x16x4xbf16> to vector<16x4xbf16>
    %cst_7 = arith.constant dense<0.000000e+00> : vector<16x22xf32>
    %10 = tpu.matmul %9, %7, %cst_7 {dimension_numbers = #tpu.dot_dimension_numbers<[1], [0], [0], [1], [0, 0, 1, 1], [], []>} : vector<16x4xbf16>, vector<4x22xbf16>, vector<16x22xf32> -> vector<16x22xf32>
    %11 = arith.addf %6, %10 : vector<16x22xf32>
    %12 = vector.extract_strided_slice %2 {offsets = [0, 2], sizes = [4, 22], strides = [1, 1]} : vector<4x24xbf16> to vector<4x22xbf16>
    %c2 = arith.constant 2 : index
    %c0_8 = arith.constant 0 : index
    %c0_9 = arith.constant 0 : index
    %13 = vector.load %arg5[%c2, %c0_8, %c0_9] : memref<3x16x4xbf16, #tpu.memory_space<vmem>>, vector<1x16x4xbf16>
    %14 = vector.shape_cast %13 : vector<1x16x4xbf16> to vector<16x4xbf16>
    %cst_10 = arith.constant dense<0.000000e+00> : vector<16x22xf32>
    %15 = tpu.matmul %14, %12, %cst_10 {dimension_numbers = #tpu.dot_dimension_numbers<[1], [0], [0], [1], [0, 0, 1, 1], [], []>} : vector<16x4xbf16>, vector<4x22xbf16>, vector<16x22xf32> -> vector<16x22xf32>
    %16 = arith.addf %11, %15 : vector<16x22xf32>
    %c0_11 = arith.constant 0 : index
    %c0_12 = arith.constant 0 : index
    %17 = vector.load %arg6[%c0_11, %c0_12] : memref<16x1xf32, #tpu.memory_space<vmem>>, vector<16x1xf32>
    %18 = vector.broadcast %17 : vector<16x1xf32> to vector<16x22xf32>
    %19 = arith.addf %16, %18 : vector<16x22xf32>
    %20 = tpu.iota {dimensions = array<i32: 1>} : vector<1x22xi32>
    %c3_i32 = arith.constant 3 : i32
    %21 = vector.broadcast %c3_i32 : i32 to vector<1x22xi32>
    %22 = arith.cmpi sge, %20, %21 : vector<1x22xi32>
    %c19_i32 = arith.constant 19 : i32
    %23 = vector.broadcast %c19_i32 : i32 to vector<1x22xi32>
    %24 = arith.cmpi slt, %20, %23 : vector<1x22xi32>
    %25 = arith.andi %22, %24 : vector<1x22xi1>
    %cst_13 = arith.constant 0.000000e+00 : f32
    %26 = vector.shape_cast %25 : vector<1x22xi1> to vector<1x22xi1>
    %27 = vector.broadcast %26 : vector<1x22xi1> to vector<16x22xi1>
    %28 = vector.broadcast %cst_13 : f32 to vector<16x22xf32>
    %29 = arith.select %27, %19, %28 : vector<16x22xi1>, vector<16x22xf32>
    %30 = vector.shape_cast %29 : vector<16x22xf32> to vector<1x16x22xf32>
    %cst_14 = arith.constant dense<0.000000e+00> : vector<1xf32>
    %31 = vector.multi_reduction <add>, %30, %cst_14 [1, 2] : vector<1x16x22xf32> to vector<1xf32>
    %32 = vector.shape_cast %31 : vector<1xf32> to vector<1x1x1xf32>
    %33 = vector.extract %32[0, 0, 0] : f32 from vector<1x1x1xf32>
    %cst_15 = arith.constant 2.560000e+02 : f32
    %34 = arith.divf %33, %cst_15 : f32
    %35 = arith.mulf %29, %29 : vector<16x22xf32>
    %36 = vector.shape_cast %35 : vector<16x22xf32> to vector<1x16x22xf32>
    %cst_16 = arith.constant dense<0.000000e+00> : vector<1xf32>
    %37 = vector.multi_reduction <add>, %36, %cst_16 [1, 2] : vector<1x16x22xf32> to vector<1xf32>
    %38 = vector.shape_cast %37 : vector<1xf32> to vector<1x1x1xf32>
    %39 = vector.extract %38[0, 0, 0] : f32 from vector<1x1x1xf32>
    %cst_17 = arith.constant 2.560000e+02 : f32
    %40 = arith.divf %39, %cst_17 : f32
    %41 = arith.mulf %34, %34 : f32
    %42 = arith.subf %40, %41 : f32
    %cst_18 = arith.constant 0.000000e+00 : f32
    %43 = arith.maximumf %42, %cst_18 : f32
    %44 = vector.broadcast %34 : f32 to vector<16x22xf32>
    %45 = arith.subf %19, %44 : vector<16x22xf32>
    %cst_19 = arith.constant 9.99999974E-6 : f32
    %46 = arith.addf %43, %cst_19 : f32
    %47 = math.rsqrt %46 : f32
    %48 = vector.broadcast %47 : f32 to vector<16x22xf32>
    %49 = arith.mulf %45, %48 : vector<16x22xf32>
    %c0_20 = arith.constant 0 : index
    %c0_21 = arith.constant 0 : index
    %50 = vector.load %arg7[%c0_20, %c0_21] : memref<16x1xf32, #tpu.memory_space<vmem>>, vector<16x1xf32>
    %51 = vector.broadcast %50 : vector<16x1xf32> to vector<16x22xf32>
    %52 = arith.mulf %49, %51 : vector<16x22xf32>
    %c0_22 = arith.constant 0 : index
    %c0_23 = arith.constant 0 : index
    %53 = vector.load %arg8[%c0_22, %c0_23] : memref<16x1xf32, #tpu.memory_space<vmem>>, vector<16x1xf32>
    %54 = vector.broadcast %53 : vector<16x1xf32> to vector<16x22xf32>
    %55 = arith.addf %52, %54 : vector<16x22xf32>
    %cst_24 = arith.constant 0.000000e+00 : f32
    %56 = vector.broadcast %cst_24 : f32 to vector<16x22xf32>
    %57 = arith.cmpf oge, %55, %56 : vector<16x22xf32>
    %cst_25 = arith.constant 2.000000e-02 : f32
    %58 = vector.broadcast %cst_25 : f32 to vector<16x22xf32>
    %59 = arith.mulf %58, %55 : vector<16x22xf32>
    %60 = arith.select %57, %55, %59 : vector<16x22xi1>, vector<16x22xf32>
    %cst_26 = arith.constant 0.000000e+00 : f32
    %61 = vector.shape_cast %25 : vector<1x22xi1> to vector<1x22xi1>
    %62 = vector.broadcast %61 : vector<1x22xi1> to vector<16x22xi1>
    %63 = vector.broadcast %cst_26 : f32 to vector<16x22xf32>
    %64 = arith.select %62, %60, %63 : vector<16x22xi1>, vector<16x22xf32>
    %65 = arith.truncf %64 : vector<16x22xf32> to vector<16x22xbf16>
    %66 = vector.extract_strided_slice %65 {offsets = [0, 0], sizes = [16, 20], strides = [1, 1]} : vector<16x22xbf16> to vector<16x20xbf16>
    %c0_27 = arith.constant 0 : index
    %c0_28 = arith.constant 0 : index
    %c0_29 = arith.constant 0 : index
    %67 = vector.load %arg9[%c0_27, %c0_28, %c0_29] : memref<3x16x16xbf16, #tpu.memory_space<vmem>>, vector<1x16x16xbf16>
    %68 = vector.shape_cast %67 : vector<1x16x16xbf16> to vector<16x16xbf16>
    %cst_30 = arith.constant dense<0.000000e+00> : vector<16x20xf32>
    %69 = tpu.matmul %68, %66, %cst_30 {dimension_numbers = #tpu.dot_dimension_numbers<[1], [0], [0], [1], [0, 0, 1, 1], [], []>} : vector<16x16xbf16>, vector<16x20xbf16>, vector<16x20xf32> -> vector<16x20xf32>
    %70 = vector.extract_strided_slice %65 {offsets = [0, 1], sizes = [16, 20], strides = [1, 1]} : vector<16x22xbf16> to vector<16x20xbf16>
    %c1_31 = arith.constant 1 : index
    %c0_32 = arith.constant 0 : index
    %c0_33 = arith.constant 0 : index
    %71 = vector.load %arg9[%c1_31, %c0_32, %c0_33] : memref<3x16x16xbf16, #tpu.memory_space<vmem>>, vector<1x16x16xbf16>
    %72 = vector.shape_cast %71 : vector<1x16x16xbf16> to vector<16x16xbf16>
    %cst_34 = arith.constant dense<0.000000e+00> : vector<16x20xf32>
    %73 = tpu.matmul %72, %70, %cst_34 {dimension_numbers = #tpu.dot_dimension_numbers<[1], [0], [0], [1], [0, 0, 1, 1], [], []>} : vector<16x16xbf16>, vector<16x20xbf16>, vector<16x20xf32> -> vector<16x20xf32>
    %74 = arith.addf %69, %73 : vector<16x20xf32>
    %75 = vector.extract_strided_slice %65 {offsets = [0, 2], sizes = [16, 20], strides = [1, 1]} : vector<16x22xbf16> to vector<16x20xbf16>
    %c2_35 = arith.constant 2 : index
    %c0_36 = arith.constant 0 : index
    %c0_37 = arith.constant 0 : index
    %76 = vector.load %arg9[%c2_35, %c0_36, %c0_37] : memref<3x16x16xbf16, #tpu.memory_space<vmem>>, vector<1x16x16xbf16>
    %77 = vector.shape_cast %76 : vector<1x16x16xbf16> to vector<16x16xbf16>
    %cst_38 = arith.constant dense<0.000000e+00> : vector<16x20xf32>
    %78 = tpu.matmul %77, %75, %cst_38 {dimension_numbers = #tpu.dot_dimension_numbers<[1], [0], [0], [1], [0, 0, 1, 1], [], []>} : vector<16x16xbf16>, vector<16x20xbf16>, vector<16x20xf32> -> vector<16x20xf32>
    %79 = arith.addf %74, %78 : vector<16x20xf32>
    %c0_39 = arith.constant 0 : index
    %c0_40 = arith.constant 0 : index
    %80 = vector.load %arg10[%c0_39, %c0_40] : memref<16x1xf32, #tpu.memory_space<vmem>>, vector<16x1xf32>
    %81 = vector.broadcast %80 : vector<16x1xf32> to vector<16x20xf32>
    %82 = arith.addf %79, %81 : vector<16x20xf32>
    %83 = tpu.iota {dimensions = array<i32: 1>} : vector<1x20xi32>
    %c2_i32 = arith.constant 2 : i32
    %84 = vector.broadcast %c2_i32 : i32 to vector<1x20xi32>
    %85 = arith.cmpi sge, %83, %84 : vector<1x20xi32>
    %c18_i32 = arith.constant 18 : i32
    %86 = vector.broadcast %c18_i32 : i32 to vector<1x20xi32>
    %87 = arith.cmpi slt, %83, %86 : vector<1x20xi32>
    %88 = arith.andi %85, %87 : vector<1x20xi1>
    %cst_41 = arith.constant 0.000000e+00 : f32
    %89 = vector.shape_cast %88 : vector<1x20xi1> to vector<1x20xi1>
    %90 = vector.broadcast %89 : vector<1x20xi1> to vector<16x20xi1>
    %91 = vector.broadcast %cst_41 : f32 to vector<16x20xf32>
    %92 = arith.select %90, %82, %91 : vector<16x20xi1>, vector<16x20xf32>
    %93 = vector.shape_cast %92 : vector<16x20xf32> to vector<1x16x20xf32>
    %cst_42 = arith.constant dense<0.000000e+00> : vector<1xf32>
    %94 = vector.multi_reduction <add>, %93, %cst_42 [1, 2] : vector<1x16x20xf32> to vector<1xf32>
    %95 = vector.shape_cast %94 : vector<1xf32> to vector<1x1x1xf32>
    %96 = vector.extract %95[0, 0, 0] : f32 from vector<1x1x1xf32>
    %cst_43 = arith.constant 2.560000e+02 : f32
    %97 = arith.divf %96, %cst_43 : f32
    %98 = arith.mulf %92, %92 : vector<16x20xf32>
    %99 = vector.shape_cast %98 : vector<16x20xf32> to vector<1x16x20xf32>
    %cst_44 = arith.constant dense<0.000000e+00> : vector<1xf32>
    %100 = vector.multi_reduction <add>, %99, %cst_44 [1, 2] : vector<1x16x20xf32> to vector<1xf32>
    %101 = vector.shape_cast %100 : vector<1xf32> to vector<1x1x1xf32>
    %102 = vector.extract %101[0, 0, 0] : f32 from vector<1x1x1xf32>
    %cst_45 = arith.constant 2.560000e+02 : f32
    %103 = arith.divf %102, %cst_45 : f32
    %104 = arith.mulf %97, %97 : f32
    %105 = arith.subf %103, %104 : f32
    %cst_46 = arith.constant 0.000000e+00 : f32
    %106 = arith.maximumf %105, %cst_46 : f32
    %107 = vector.broadcast %97 : f32 to vector<16x20xf32>
    %108 = arith.subf %82, %107 : vector<16x20xf32>
    %cst_47 = arith.constant 9.99999974E-6 : f32
    %109 = arith.addf %106, %cst_47 : f32
    %110 = math.rsqrt %109 : f32
    %111 = vector.broadcast %110 : f32 to vector<16x20xf32>
    %112 = arith.mulf %108, %111 : vector<16x20xf32>
    %c0_48 = arith.constant 0 : index
    %c0_49 = arith.constant 0 : index
    %113 = vector.load %arg11[%c0_48, %c0_49] : memref<16x1xf32, #tpu.memory_space<vmem>>, vector<16x1xf32>
    %114 = vector.broadcast %113 : vector<16x1xf32> to vector<16x20xf32>
    %115 = arith.mulf %112, %114 : vector<16x20xf32>
    %c0_50 = arith.constant 0 : index
    %c0_51 = arith.constant 0 : index
    %116 = vector.load %arg12[%c0_50, %c0_51] : memref<16x1xf32, #tpu.memory_space<vmem>>, vector<16x1xf32>
    %117 = vector.broadcast %116 : vector<16x1xf32> to vector<16x20xf32>
    %118 = arith.addf %115, %117 : vector<16x20xf32>
    %cst_52 = arith.constant 0.000000e+00 : f32
    %119 = vector.broadcast %cst_52 : f32 to vector<16x20xf32>
    %120 = arith.cmpf oge, %118, %119 : vector<16x20xf32>
    %cst_53 = arith.constant 2.000000e-02 : f32
    %121 = vector.broadcast %cst_53 : f32 to vector<16x20xf32>
    %122 = arith.mulf %121, %118 : vector<16x20xf32>
    %123 = arith.select %120, %118, %122 : vector<16x20xi1>, vector<16x20xf32>
    %cst_54 = arith.constant 0.000000e+00 : f32
    %124 = vector.shape_cast %88 : vector<1x20xi1> to vector<1x20xi1>
    %125 = vector.broadcast %124 : vector<1x20xi1> to vector<16x20xi1>
    %126 = vector.broadcast %cst_54 : f32 to vector<16x20xf32>
    %127 = arith.select %125, %123, %126 : vector<16x20xi1>, vector<16x20xf32>
    %128 = arith.truncf %127 : vector<16x20xf32> to vector<16x20xbf16>
    %c0_55 = arith.constant 0 : index
    %c0_56 = arith.constant 0 : index
    %c0_57 = arith.constant 0 : index
    %129 = vector.load %arg13[%c0_55, %c0_56, %c0_57] : memref<1x8x16xbf16, #tpu.memory_space<vmem>>, vector<1x8x16xbf16>
    %130 = vector.shape_cast %129 : vector<1x8x16xbf16> to vector<8x16xbf16>
    %cst_58 = arith.constant dense<0.000000e+00> : vector<8x20xf32>
    %131 = tpu.matmul %130, %128, %cst_58 {dimension_numbers = #tpu.dot_dimension_numbers<[1], [0], [0], [1], [0, 0, 1, 1], [], []>} : vector<8x16xbf16>, vector<16x20xbf16>, vector<8x20xf32> -> vector<8x20xf32>
    %c0_59 = arith.constant 0 : index
    %c0_60 = arith.constant 0 : index
    %132 = vector.load %arg14[%c0_59, %c0_60] : memref<8x1xf32, #tpu.memory_space<vmem>>, vector<8x1xf32>
    %133 = vector.broadcast %132 : vector<8x1xf32> to vector<8x20xf32>
    %134 = arith.addf %131, %133 : vector<8x20xf32>
    %135 = tpu.iota {dimensions = array<i32: 1>} : vector<1x20xi32>
    %c2_i32_61 = arith.constant 2 : i32
    %136 = vector.broadcast %c2_i32_61 : i32 to vector<1x20xi32>
    %137 = arith.cmpi sge, %135, %136 : vector<1x20xi32>
    %c18_i32_62 = arith.constant 18 : i32
    %138 = vector.broadcast %c18_i32_62 : i32 to vector<1x20xi32>
    %139 = arith.cmpi slt, %135, %138 : vector<1x20xi32>
    %140 = arith.andi %137, %139 : vector<1x20xi1>
    %cst_63 = arith.constant 0.000000e+00 : f32
    %141 = vector.shape_cast %140 : vector<1x20xi1> to vector<1x20xi1>
    %142 = vector.broadcast %141 : vector<1x20xi1> to vector<8x20xi1>
    %143 = vector.broadcast %cst_63 : f32 to vector<8x20xf32>
    %144 = arith.select %142, %134, %143 : vector<8x20xi1>, vector<8x20xf32>
    %c0_64 = arith.constant 0 : index
    %c0_65 = arith.constant 0 : index
    %145 = vector.load %arg3[%c0_64, %c0_65] : memref<16x8xf32, #tpu.memory_space<vmem>>, vector<16x8xf32>
    %cst_66 = arith.constant dense<0.000000e+00> : vector<16x20xf32>
    %146 = tpu.matmul %145, %144, %cst_66 {dimension_numbers = #tpu.dot_dimension_numbers<[1], [0], [0], [1], [0, 0, 1, 1], [], []>} : vector<16x8xf32>, vector<8x20xf32>, vector<16x20xf32> -> vector<16x20xf32>
    %c0_67 = arith.constant 0 : index
    %c0_68 = arith.constant 0 : index
    %147 = vector.load %arg4[%c0_67, %c0_68] : memref<16x1xf32, #tpu.memory_space<vmem>>, vector<16x1xf32>
    %cst_69 = arith.constant 2.000000e+00 : f32
    %148 = vector.broadcast %cst_69 : f32 to vector<16x20xf32>
    %149 = arith.mulf %148, %146 : vector<16x20xf32>
    %150 = vector.broadcast %147 : vector<16x1xf32> to vector<16x20xf32>
    %151 = arith.subf %150, %149 : vector<16x20xf32>
    %152 = tpu.iota {dimensions = array<i32: 0>} : vector<16x20xi32>
    %cst_70 = arith.constant dense<0x7F800000> : vector<20xf32>
    %153 = vector.multi_reduction <minimumf>, %151, %cst_70 [0] : vector<16x20xf32> to vector<20xf32>
    %154 = vector.shape_cast %153 : vector<20xf32> to vector<1x20xf32>
    %155 = vector.broadcast %154 : vector<1x20xf32> to vector<16x20xf32>
    %156 = arith.cmpf oeq, %151, %155 : vector<16x20xf32>
    %c16_i32 = arith.constant 16 : i32
    %157 = vector.broadcast %c16_i32 : i32 to vector<16x20xi32>
    %158 = arith.select %156, %152, %157 : vector<16x20xi1>, vector<16x20xi32>
    %cst_71 = arith.constant dense<2147483647> : vector<20xi32>
    %159 = vector.multi_reduction <minsi>, %158, %cst_71 [0] : vector<16x20xi32> to vector<20xi32>
    %160 = vector.shape_cast %159 : vector<20xi32> to vector<1x20xi32>
    %161 = vector.broadcast %160 : vector<1x20xi32> to vector<16x20xi32>
    %162 = arith.cmpi eq, %152, %161 : vector<16x20xi32>
    %163 = arith.extui %162 : vector<16x20xi1> to vector<16x20xi32>
    %164 = arith.sitofp %163 : vector<16x20xi32> to vector<16x20xf32>
    %cst_72 = arith.constant dense<0.000000e+00> : vector<8x20xf32>
    %165 = tpu.matmul %145, %164, %cst_72 {dimension_numbers = #tpu.dot_dimension_numbers<[0], [0], [1], [1], [0, 1, 1, 1], [], []>} : vector<16x8xf32>, vector<16x20xf32>, vector<8x20xf32> -> vector<8x20xf32>
    %cst_73 = arith.constant 0.000000e+00 : f32
    %166 = vector.shape_cast %140 : vector<1x20xi1> to vector<1x20xi1>
    %167 = vector.broadcast %166 : vector<1x20xi1> to vector<8x20xi1>
    %168 = vector.broadcast %cst_73 : f32 to vector<8x20xf32>
    %169 = arith.select %167, %165, %168 : vector<8x20xi1>, vector<8x20xf32>
    %c0_74 = arith.constant 0 : index
    %c0_75 = arith.constant 0 : index
    %c0_76 = arith.constant 0 : index
    %170 = vector.load %arg2[%c0_74, %c0_75, %c0_76] : memref<1x4x1xf32, #tpu.memory_space<vmem>>, vector<1x4x1xf32>
    %171 = vector.shape_cast %170 : vector<1x4x1xf32> to vector<4x1xf32>
    %172 = tpu.iota {dimensions = array<i32: 1>} : vector<1x20xi32>
    %c2_i32_77 = arith.constant 2 : i32
    %173 = vector.broadcast %c2_i32_77 : i32 to vector<1x20xi32>
    %174 = arith.cmpi sge, %172, %173 : vector<1x20xi32>
    %c18_i32_78 = arith.constant 18 : i32
    %175 = vector.broadcast %c18_i32_78 : i32 to vector<1x20xi32>
    %176 = arith.cmpi slt, %172, %175 : vector<1x20xi32>
    %177 = arith.andi %174, %176 : vector<1x20xi1>
    %cst_79 = arith.constant 0.000000e+00 : f32
    %178 = vector.shape_cast %177 : vector<1x20xi1> to vector<1x20xi1>
    %179 = vector.broadcast %178 : vector<1x20xi1> to vector<4x20xi1>
    %180 = vector.shape_cast %171 : vector<4x1xf32> to vector<4x1xf32>
    %181 = vector.broadcast %180 : vector<4x1xf32> to vector<4x20xf32>
    %182 = vector.broadcast %cst_79 : f32 to vector<4x20xf32>
    %183 = arith.select %179, %181, %182 : vector<4x20xi1>, vector<4x20xf32>
    %184 = arith.truncf %169 : vector<8x20xf32> to vector<8x20xbf16>
    %185 = vector.extract_strided_slice %184 {offsets = [0, 0], sizes = [8, 18], strides = [1, 1]} : vector<8x20xbf16> to vector<8x18xbf16>
    %c0_80 = arith.constant 0 : index
    %c0_81 = arith.constant 0 : index
    %c0_82 = arith.constant 0 : index
    %186 = vector.load %arg15[%c0_80, %c0_81, %c0_82] : memref<3x32x8xbf16, #tpu.memory_space<vmem>>, vector<1x32x8xbf16>
    %187 = vector.shape_cast %186 : vector<1x32x8xbf16> to vector<32x8xbf16>
    %cst_83 = arith.constant dense<0.000000e+00> : vector<32x18xf32>
    %188 = tpu.matmul %187, %185, %cst_83 {dimension_numbers = #tpu.dot_dimension_numbers<[1], [0], [0], [1], [0, 0, 1, 1], [], []>} : vector<32x8xbf16>, vector<8x18xbf16>, vector<32x18xf32> -> vector<32x18xf32>
    %189 = vector.extract_strided_slice %184 {offsets = [0, 1], sizes = [8, 18], strides = [1, 1]} : vector<8x20xbf16> to vector<8x18xbf16>
    %c1_84 = arith.constant 1 : index
    %c0_85 = arith.constant 0 : index
    %c0_86 = arith.constant 0 : index
    %190 = vector.load %arg15[%c1_84, %c0_85, %c0_86] : memref<3x32x8xbf16, #tpu.memory_space<vmem>>, vector<1x32x8xbf16>
    %191 = vector.shape_cast %190 : vector<1x32x8xbf16> to vector<32x8xbf16>
    %cst_87 = arith.constant dense<0.000000e+00> : vector<32x18xf32>
    %192 = tpu.matmul %191, %189, %cst_87 {dimension_numbers = #tpu.dot_dimension_numbers<[1], [0], [0], [1], [0, 0, 1, 1], [], []>} : vector<32x8xbf16>, vector<8x18xbf16>, vector<32x18xf32> -> vector<32x18xf32>
    %193 = arith.addf %188, %192 : vector<32x18xf32>
    %194 = vector.extract_strided_slice %184 {offsets = [0, 2], sizes = [8, 18], strides = [1, 1]} : vector<8x20xbf16> to vector<8x18xbf16>
    %c2_88 = arith.constant 2 : index
    %c0_89 = arith.constant 0 : index
    %c0_90 = arith.constant 0 : index
    %195 = vector.load %arg15[%c2_88, %c0_89, %c0_90] : memref<3x32x8xbf16, #tpu.memory_space<vmem>>, vector<1x32x8xbf16>
    %196 = vector.shape_cast %195 : vector<1x32x8xbf16> to vector<32x8xbf16>
    %cst_91 = arith.constant dense<0.000000e+00> : vector<32x18xf32>
    %197 = tpu.matmul %196, %194, %cst_91 {dimension_numbers = #tpu.dot_dimension_numbers<[1], [0], [0], [1], [0, 0, 1, 1], [], []>} : vector<32x8xbf16>, vector<8x18xbf16>, vector<32x18xf32> -> vector<32x18xf32>
    %198 = arith.addf %193, %197 : vector<32x18xf32>
    %199 = arith.truncf %183 : vector<4x20xf32> to vector<4x20xbf16>
    %200 = vector.extract_strided_slice %199 {offsets = [0, 0], sizes = [4, 18], strides = [1, 1]} : vector<4x20xbf16> to vector<4x18xbf16>
    %c0_92 = arith.constant 0 : index
    %c0_93 = arith.constant 0 : index
    %c0_94 = arith.constant 0 : index
    %201 = vector.load %arg16[%c0_92, %c0_93, %c0_94] : memref<3x32x4xbf16, #tpu.memory_space<vmem>>, vector<1x32x4xbf16>
    %202 = vector.shape_cast %201 : vector<1x32x4xbf16> to vector<32x4xbf16>
    %cst_95 = arith.constant dense<0.000000e+00> : vector<32x18xf32>
    %203 = tpu.matmul %202, %200, %cst_95 {dimension_numbers = #tpu.dot_dimension_numbers<[1], [0], [0], [1], [0, 0, 1, 1], [], []>} : vector<32x4xbf16>, vector<4x18xbf16>, vector<32x18xf32> -> vector<32x18xf32>
    %204 = vector.extract_strided_slice %199 {offsets = [0, 1], sizes = [4, 18], strides = [1, 1]} : vector<4x20xbf16> to vector<4x18xbf16>
    %c1_96 = arith.constant 1 : index
    %c0_97 = arith.constant 0 : index
    %c0_98 = arith.constant 0 : index
    %205 = vector.load %arg16[%c1_96, %c0_97, %c0_98] : memref<3x32x4xbf16, #tpu.memory_space<vmem>>, vector<1x32x4xbf16>
    %206 = vector.shape_cast %205 : vector<1x32x4xbf16> to vector<32x4xbf16>
    %cst_99 = arith.constant dense<0.000000e+00> : vector<32x18xf32>
    %207 = tpu.matmul %206, %204, %cst_99 {dimension_numbers = #tpu.dot_dimension_numbers<[1], [0], [0], [1], [0, 0, 1, 1], [], []>} : vector<32x4xbf16>, vector<4x18xbf16>, vector<32x18xf32> -> vector<32x18xf32>
    %208 = arith.addf %203, %207 : vector<32x18xf32>
    %209 = vector.extract_strided_slice %199 {offsets = [0, 2], sizes = [4, 18], strides = [1, 1]} : vector<4x20xbf16> to vector<4x18xbf16>
    %c2_100 = arith.constant 2 : index
    %c0_101 = arith.constant 0 : index
    %c0_102 = arith.constant 0 : index
    %210 = vector.load %arg16[%c2_100, %c0_101, %c0_102] : memref<3x32x4xbf16, #tpu.memory_space<vmem>>, vector<1x32x4xbf16>
    %211 = vector.shape_cast %210 : vector<1x32x4xbf16> to vector<32x4xbf16>
    %cst_103 = arith.constant dense<0.000000e+00> : vector<32x18xf32>
    %212 = tpu.matmul %211, %209, %cst_103 {dimension_numbers = #tpu.dot_dimension_numbers<[1], [0], [0], [1], [0, 0, 1, 1], [], []>} : vector<32x4xbf16>, vector<4x18xbf16>, vector<32x18xf32> -> vector<32x18xf32>
    %213 = arith.addf %208, %212 : vector<32x18xf32>
    %214 = arith.addf %198, %213 : vector<32x18xf32>
    %c0_104 = arith.constant 0 : index
    %c0_105 = arith.constant 0 : index
    %215 = vector.load %arg17[%c0_104, %c0_105] : memref<32x1xf32, #tpu.memory_space<vmem>>, vector<32x1xf32>
    %216 = vector.broadcast %215 : vector<32x1xf32> to vector<32x18xf32>
    %217 = arith.addf %214, %216 : vector<32x18xf32>
    %218 = tpu.iota {dimensions = array<i32: 1>} : vector<1x18xi32>
    %c1_i32 = arith.constant 1 : i32
    %219 = vector.broadcast %c1_i32 : i32 to vector<1x18xi32>
    %220 = arith.cmpi sge, %218, %219 : vector<1x18xi32>
    %c17_i32 = arith.constant 17 : i32
    %221 = vector.broadcast %c17_i32 : i32 to vector<1x18xi32>
    %222 = arith.cmpi slt, %218, %221 : vector<1x18xi32>
    %223 = arith.andi %220, %222 : vector<1x18xi1>
    %cst_106 = arith.constant 0.000000e+00 : f32
    %224 = vector.shape_cast %223 : vector<1x18xi1> to vector<1x18xi1>
    %225 = vector.broadcast %224 : vector<1x18xi1> to vector<32x18xi1>
    %226 = vector.broadcast %cst_106 : f32 to vector<32x18xf32>
    %227 = arith.select %225, %217, %226 : vector<32x18xi1>, vector<32x18xf32>
    %228 = vector.shape_cast %227 : vector<32x18xf32> to vector<1x32x18xf32>
    %cst_107 = arith.constant dense<0.000000e+00> : vector<1xf32>
    %229 = vector.multi_reduction <add>, %228, %cst_107 [1, 2] : vector<1x32x18xf32> to vector<1xf32>
    %230 = vector.shape_cast %229 : vector<1xf32> to vector<1x1x1xf32>
    %231 = vector.extract %230[0, 0, 0] : f32 from vector<1x1x1xf32>
    %cst_108 = arith.constant 5.120000e+02 : f32
    %232 = arith.divf %231, %cst_108 : f32
    %233 = arith.mulf %227, %227 : vector<32x18xf32>
    %234 = vector.shape_cast %233 : vector<32x18xf32> to vector<1x32x18xf32>
    %cst_109 = arith.constant dense<0.000000e+00> : vector<1xf32>
    %235 = vector.multi_reduction <add>, %234, %cst_109 [1, 2] : vector<1x32x18xf32> to vector<1xf32>
    %236 = vector.shape_cast %235 : vector<1xf32> to vector<1x1x1xf32>
    %237 = vector.extract %236[0, 0, 0] : f32 from vector<1x1x1xf32>
    %cst_110 = arith.constant 5.120000e+02 : f32
    %238 = arith.divf %237, %cst_110 : f32
    %239 = arith.mulf %232, %232 : f32
    %240 = arith.subf %238, %239 : f32
    %cst_111 = arith.constant 0.000000e+00 : f32
    %241 = arith.maximumf %240, %cst_111 : f32
    %242 = vector.broadcast %232 : f32 to vector<32x18xf32>
    %243 = arith.subf %217, %242 : vector<32x18xf32>
    %cst_112 = arith.constant 9.99999974E-6 : f32
    %244 = arith.addf %241, %cst_112 : f32
    %245 = math.rsqrt %244 : f32
    %246 = vector.broadcast %245 : f32 to vector<32x18xf32>
    %247 = arith.mulf %243, %246 : vector<32x18xf32>
    %c0_113 = arith.constant 0 : index
    %c0_114 = arith.constant 0 : index
    %248 = vector.load %arg18[%c0_113, %c0_114] : memref<32x1xf32, #tpu.memory_space<vmem>>, vector<32x1xf32>
    %249 = vector.broadcast %248 : vector<32x1xf32> to vector<32x18xf32>
    %250 = arith.mulf %247, %249 : vector<32x18xf32>
    %c0_115 = arith.constant 0 : index
    %c0_116 = arith.constant 0 : index
    %251 = vector.load %arg19[%c0_115, %c0_116] : memref<32x1xf32, #tpu.memory_space<vmem>>, vector<32x1xf32>
    %252 = vector.broadcast %251 : vector<32x1xf32> to vector<32x18xf32>
    %253 = arith.addf %250, %252 : vector<32x18xf32>
    %254 = vector.extract_strided_slice %253 {offsets = [0, 0], sizes = [16, 18], strides = [1, 1]} : vector<32x18xf32> to vector<16x18xf32>
    %255 = vector.extract_strided_slice %253 {offsets = [16, 0], sizes = [16, 18], strides = [1, 1]} : vector<32x18xf32> to vector<16x18xf32>
    %cst_117 = arith.constant 0.000000e+00 : f32
    %256 = vector.broadcast %cst_117 : f32 to vector<16x18xf32>
    %257 = arith.subf %256, %255 : vector<16x18xf32>
    %258 = math.exp %257 : vector<16x18xf32>
    %cst_118 = arith.constant 1.000000e+00 : f32
    %259 = vector.broadcast %cst_118 : f32 to vector<16x18xf32>
    %260 = arith.addf %259, %258 : vector<16x18xf32>
    %261 = tpu.reciprocal %260 {approx = true} : vector<16x18xf32> -> vector<16x18xf32>
    %262 = arith.mulf %254, %261 : vector<16x18xf32>
    %cst_119 = arith.constant 0.000000e+00 : f32
    %263 = vector.shape_cast %223 : vector<1x18xi1> to vector<1x18xi1>
    %264 = vector.broadcast %263 : vector<1x18xi1> to vector<16x18xi1>
    %265 = vector.broadcast %cst_119 : f32 to vector<16x18xf32>
    %266 = arith.select %264, %262, %265 : vector<16x18xi1>, vector<16x18xf32>
    %267 = tpu.iota {dimensions = array<i32: 1>} : vector<1x18xi32>
    %c1_i32_120 = arith.constant 1 : i32
    %268 = vector.broadcast %c1_i32_120 : i32 to vector<1x18xi32>
    %269 = arith.cmpi sge, %267, %268 : vector<1x18xi32>
    %c17_i32_121 = arith.constant 17 : i32
    %270 = vector.broadcast %c17_i32_121 : i32 to vector<1x18xi32>
    %271 = arith.cmpi slt, %267, %270 : vector<1x18xi32>
    %272 = arith.andi %269, %271 : vector<1x18xi1>
    %cst_122 = arith.constant 0.000000e+00 : f32
    %273 = vector.shape_cast %272 : vector<1x18xi1> to vector<1x18xi1>
    %274 = vector.broadcast %273 : vector<1x18xi1> to vector<4x18xi1>
    %275 = vector.shape_cast %171 : vector<4x1xf32> to vector<4x1xf32>
    %276 = vector.broadcast %275 : vector<4x1xf32> to vector<4x18xf32>
    %277 = vector.broadcast %cst_122 : f32 to vector<4x18xf32>
    %278 = arith.select %274, %276, %277 : vector<4x18xi1>, vector<4x18xf32>
    %279 = arith.truncf %266 : vector<16x18xf32> to vector<16x18xbf16>
    %280 = vector.extract_strided_slice %279 {offsets = [0, 0], sizes = [16, 16], strides = [1, 1]} : vector<16x18xbf16> to vector<16x16xbf16>
    %c0_123 = arith.constant 0 : index
    %c0_124 = arith.constant 0 : index
    %c0_125 = arith.constant 0 : index
    %281 = vector.load %arg20[%c0_123, %c0_124, %c0_125] : memref<3x4x16xbf16, #tpu.memory_space<vmem>>, vector<1x4x16xbf16>
    %282 = vector.shape_cast %281 : vector<1x4x16xbf16> to vector<4x16xbf16>
    %cst_126 = arith.constant dense<0.000000e+00> : vector<4x16xf32>
    %283 = tpu.matmul %282, %280, %cst_126 {dimension_numbers = #tpu.dot_dimension_numbers<[1], [0], [0], [1], [0, 0, 1, 1], [], []>} : vector<4x16xbf16>, vector<16x16xbf16>, vector<4x16xf32> -> vector<4x16xf32>
    %284 = vector.extract_strided_slice %279 {offsets = [0, 1], sizes = [16, 16], strides = [1, 1]} : vector<16x18xbf16> to vector<16x16xbf16>
    %c1_127 = arith.constant 1 : index
    %c0_128 = arith.constant 0 : index
    %c0_129 = arith.constant 0 : index
    %285 = vector.load %arg20[%c1_127, %c0_128, %c0_129] : memref<3x4x16xbf16, #tpu.memory_space<vmem>>, vector<1x4x16xbf16>
    %286 = vector.shape_cast %285 : vector<1x4x16xbf16> to vector<4x16xbf16>
    %cst_130 = arith.constant dense<0.000000e+00> : vector<4x16xf32>
    %287 = tpu.matmul %286, %284, %cst_130 {dimension_numbers = #tpu.dot_dimension_numbers<[1], [0], [0], [1], [0, 0, 1, 1], [], []>} : vector<4x16xbf16>, vector<16x16xbf16>, vector<4x16xf32> -> vector<4x16xf32>
    %288 = arith.addf %283, %287 : vector<4x16xf32>
    %289 = vector.extract_strided_slice %279 {offsets = [0, 2], sizes = [16, 16], strides = [1, 1]} : vector<16x18xbf16> to vector<16x16xbf16>
    %c2_131 = arith.constant 2 : index
    %c0_132 = arith.constant 0 : index
    %c0_133 = arith.constant 0 : index
    %290 = vector.load %arg20[%c2_131, %c0_132, %c0_133] : memref<3x4x16xbf16, #tpu.memory_space<vmem>>, vector<1x4x16xbf16>
    %291 = vector.shape_cast %290 : vector<1x4x16xbf16> to vector<4x16xbf16>
    %cst_134 = arith.constant dense<0.000000e+00> : vector<4x16xf32>
    %292 = tpu.matmul %291, %289, %cst_134 {dimension_numbers = #tpu.dot_dimension_numbers<[1], [0], [0], [1], [0, 0, 1, 1], [], []>} : vector<4x16xbf16>, vector<16x16xbf16>, vector<4x16xf32> -> vector<4x16xf32>
    %293 = arith.addf %288, %292 : vector<4x16xf32>
    %294 = arith.truncf %278 : vector<4x18xf32> to vector<4x18xbf16>
    %295 = vector.extract_strided_slice %294 {offsets = [0, 0], sizes = [4, 16], strides = [1, 1]} : vector<4x18xbf16> to vector<4x16xbf16>
    %c0_135 = arith.constant 0 : index
    %c0_136 = arith.constant 0 : index
    %c0_137 = arith.constant 0 : index
    %296 = vector.load %arg21[%c0_135, %c0_136, %c0_137] : memref<3x4x4xbf16, #tpu.memory_space<vmem>>, vector<1x4x4xbf16>
    %297 = vector.shape_cast %296 : vector<1x4x4xbf16> to vector<4x4xbf16>
    %cst_138 = arith.constant dense<0.000000e+00> : vector<4x16xf32>
    %298 = tpu.matmul %297, %295, %cst_138 {dimension_numbers = #tpu.dot_dimension_numbers<[1], [0], [0], [1], [0, 0, 1, 1], [], []>} : vector<4x4xbf16>, vector<4x16xbf16>, vector<4x16xf32> -> vector<4x16xf32>
    %299 = vector.extract_strided_slice %294 {offsets = [0, 1], sizes = [4, 16], strides = [1, 1]} : vector<4x18xbf16> to vector<4x16xbf16>
    %c1_139 = arith.constant 1 : index
    %c0_140 = arith.constant 0 : index
    %c0_141 = arith.constant 0 : index
    %300 = vector.load %arg21[%c1_139, %c0_140, %c0_141] : memref<3x4x4xbf16, #tpu.memory_space<vmem>>, vector<1x4x4xbf16>
    %301 = vector.shape_cast %300 : vector<1x4x4xbf16> to vector<4x4xbf16>
    %cst_142 = arith.constant dense<0.000000e+00> : vector<4x16xf32>
    %302 = tpu.matmul %301, %299, %cst_142 {dimension_numbers = #tpu.dot_dimension_numbers<[1], [0], [0], [1], [0, 0, 1, 1], [], []>} : vector<4x4xbf16>, vector<4x16xbf16>, vector<4x16xf32> -> vector<4x16xf32>
    %303 = arith.addf %298, %302 : vector<4x16xf32>
    %304 = vector.extract_strided_slice %294 {offsets = [0, 2], sizes = [4, 16], strides = [1, 1]} : vector<4x18xbf16> to vector<4x16xbf16>
    %c2_143 = arith.constant 2 : index
    %c0_144 = arith.constant 0 : index
    %c0_145 = arith.constant 0 : index
    %305 = vector.load %arg21[%c2_143, %c0_144, %c0_145] : memref<3x4x4xbf16, #tpu.memory_space<vmem>>, vector<1x4x4xbf16>
    %306 = vector.shape_cast %305 : vector<1x4x4xbf16> to vector<4x4xbf16>
    %cst_146 = arith.constant dense<0.000000e+00> : vector<4x16xf32>
    %307 = tpu.matmul %306, %304, %cst_146 {dimension_numbers = #tpu.dot_dimension_numbers<[1], [0], [0], [1], [0, 0, 1, 1], [], []>} : vector<4x4xbf16>, vector<4x16xbf16>, vector<4x16xf32> -> vector<4x16xf32>
    %308 = arith.addf %303, %307 : vector<4x16xf32>
    %309 = arith.addf %293, %308 : vector<4x16xf32>
    %c0_147 = arith.constant 0 : index
    %c0_148 = arith.constant 0 : index
    %310 = vector.load %arg22[%c0_147, %c0_148] : memref<4x1xf32, #tpu.memory_space<vmem>>, vector<4x1xf32>
    %311 = vector.broadcast %310 : vector<4x1xf32> to vector<4x16xf32>
    %312 = arith.addf %309, %311 : vector<4x16xf32>
    %c0_149 = arith.constant 0 : index
    %c0_150 = arith.constant 0 : index
    %c0_151 = arith.constant 0 : index
    %313 = vector.load %arg23[%c0_149, %c0_150, %c0_151] : memref<1x4x16xf32, #tpu.memory_space<vmem>>, vector<1x4x16xf32>
    %314 = vector.shape_cast %313 : vector<1x4x16xf32> to vector<4x16xf32>
    %315 = vector.shape_cast %312 : vector<4x16xf32> to vector<1x4x16xf32>
    tpu.vector_store %arg23[%c0_149, %c0_150, %c0_151], %315 {strides = array<i32>} : memref<1x4x16xf32, #tpu.memory_space<vmem>>, vector<1x4x16xf32>,
    return
  }
  func.func @transform_0(%arg0: i32) -> (i32, i32, i32) {
    %c0_i32 = arith.constant 0 : i32
    %c0_i32_0 = arith.constant 0 : i32
    %c0_i32_1 = arith.constant 0 : i32
    return %arg0, %c0_i32, %c0_i32_0 : i32, i32, i32
  }
  func.func @transform_1(%arg0: i32) -> (i32, i32, i32) {
    %c0_i32 = arith.constant 0 : i32
    %c0_i32_0 = arith.constant 0 : i32
    %c0_i32_1 = arith.constant 0 : i32
    return %arg0, %c0_i32, %c0_i32_0 : i32, i32, i32
  }
  func.func @transform_2(%arg0: i32) -> (i32, i32) {
    %c0_i32 = arith.constant 0 : i32
    %c0_i32_0 = arith.constant 0 : i32
    %c0_i32_1 = arith.constant 0 : i32
    return %c0_i32, %c0_i32_0 : i32, i32
  }
  func.func @transform_3(%arg0: i32) -> (i32, i32) {
    %c0_i32 = arith.constant 0 : i32
    %c0_i32_0 = arith.constant 0 : i32
    %c0_i32_1 = arith.constant 0 : i32
    return %c0_i32, %c0_i32_0 : i32, i32
  }
  func.func @transform_4(%arg0: i32) -> (i32, i32, i32) {
    %c0_i32 = arith.constant 0 : i32
    %c0_i32_0 = arith.constant 0 : i32
    %c0_i32_1 = arith.constant 0 : i32
    %c0_i32_2 = arith.constant 0 : i32
    return %c0_i32, %c0_i32_0, %c0_i32_1 : i32, i32, i32
  }
  func.func @transform_5(%arg0: i32) -> (i32, i32) {
    %c0_i32 = arith.constant 0 : i32
    %c0_i32_0 = arith.constant 0 : i32
    %c0_i32_1 = arith.constant 0 : i32
    return %c0_i32, %c0_i32_0 : i32, i32
  }
  func.func @transform_6(%arg0: i32) -> (i32, i32) {
    %c0_i32 = arith.constant 0 : i32
    %c0_i32_0 = arith.constant 0 : i32
    %c0_i32_1 = arith.constant 0 : i32
    return %c0_i32, %c0_i32_0 : i32, i32
  }
  func.func @transform_7(%arg0: i32) -> (i32, i32) {
    %c0_i32 = arith.constant 0 : i32
    %c0_i32_0 = arith.constant 0 : i32
    %c0_i32_1 = arith.constant 0 : i32
    return %c0_i32, %c0_i32_0 : i32, i32
  }
  func.func @transform_8(%arg0: i32) -> (i32, i32, i32) {
    %c0_i32 = arith.constant 0 : i32
    %c0_i32_0 = arith.constant 0 : i32
    %c0_i32_1 = arith.constant 0 : i32
    %c0_i32_2 = arith.constant 0 : i32
    return %c0_i32, %c0_i32_0, %c0_i32_1 : i32, i32, i32
  }
  func.func @transform_9(%arg0: i32) -> (i32, i32) {
    %c0_i32 = arith.constant 0 : i32
    %c0_i32_0 = arith.constant 0 : i32
    %c0_i32_1 = arith.constant 0 : i32
    return %c0_i32, %c0_i32_0 : i32, i32
  }
  func.func @transform_10(%arg0: i32) -> (i32, i32) {
    %c0_i32 = arith.constant 0 : i32
    %c0_i32_0 = arith.constant 0 : i32
    %c0_i32_1 = arith.constant 0 : i32
    return %c0_i32, %c0_i32_0 : i32, i32
  }
  func.func @transform_11(%arg0: i32) -> (i32, i32) {
    %c0_i32 = arith.constant 0 : i32
    %c0_i32_0 = arith.constant 0 : i32
    %c0_i32_1 = arith.constant 0 : i32
    return %c0_i32, %c0_i32_0 : i32, i32
  }
  func.func @transform_12(%arg0: i32) -> (i32, i32, i32) {
    %c0_i32 = arith.constant 0 : i32
    %c0_i32_0 = arith.constant 0 : i32
    %c0_i32_1 = arith.constant 0 : i32
    %c0_i32_2 = arith.constant 0 : i32
    return %c0_i32, %c0_i32_0, %c0_i32_1 : i32, i32, i32
  }
  func.func @transform_13(%arg0: i32) -> (i32, i32) {
    %c0_i32 = arith.constant 0 : i32
    %c0_i32_0 = arith.constant 0 : i32
    %c0_i32_1 = arith.constant 0 : i32
    return %c0_i32, %c0_i32_0 : i32, i32
  }
  func.func @transform_14(%arg0: i32) -> (i32, i32, i32) {
    %c0_i32 = arith.constant 0 : i32
    %c0_i32_0 = arith.constant 0 : i32
    %c0_i32_1 = arith.constant 0 : i32
    %c0_i32_2 = arith.constant 0 : i32
    return %c0_i32, %c0_i32_0, %c0_i32_1 : i32, i32, i32
  }
  func.func @transform_15(%arg0: i32) -> (i32, i32, i32) {
    %c0_i32 = arith.constant 0 : i32
    %c0_i32_0 = arith.constant 0 : i32
    %c0_i32_1 = arith.constant 0 : i32
    %c0_i32_2 = arith.constant 0 : i32
    return %c0_i32, %c0_i32_0, %c0_i32_1 : i32, i32, i32
  }
  func.func @transform_16(%arg0: i32) -> (i32, i32) {
    %c0_i32 = arith.constant 0 : i32
    %c0_i32_0 = arith.constant 0 : i32
    %c0_i32_1 = arith.constant 0 : i32
    return %c0_i32, %c0_i32_0 : i32, i32
  }
  func.func @transform_17(%arg0: i32) -> (i32, i32) {
    %c0_i32 = arith.constant 0 : i32
    %c0_i32_0 = arith.constant 0 : i32
    %c0_i32_1 = arith.constant 0 : i32
    return %c0_i32, %c0_i32_0 : i32, i32
  }
  func.func @transform_18(%arg0: i32) -> (i32, i32) {
    %c0_i32 = arith.constant 0 : i32
    %c0_i32_0 = arith.constant 0 : i32
    %c0_i32_1 = arith.constant 0 : i32
    return %c0_i32, %c0_i32_0 : i32, i32
  }
  func.func @transform_19(%arg0: i32) -> (i32, i32, i32) {
    %c0_i32 = arith.constant 0 : i32
    %c0_i32_0 = arith.constant 0 : i32
    %c0_i32_1 = arith.constant 0 : i32
    %c0_i32_2 = arith.constant 0 : i32
    return %c0_i32, %c0_i32_0, %c0_i32_1 : i32, i32, i32
  }
  func.func @transform_20(%arg0: i32) -> (i32, i32, i32) {
    %c0_i32 = arith.constant 0 : i32
    %c0_i32_0 = arith.constant 0 : i32
    %c0_i32_1 = arith.constant 0 : i32
    %c0_i32_2 = arith.constant 0 : i32
    return %c0_i32, %c0_i32_0, %c0_i32_1 : i32, i32, i32
  }
  func.func @transform_21(%arg0: i32) -> (i32, i32) {
    %c0_i32 = arith.constant 0 : i32
    %c0_i32_0 = arith.constant 0 : i32
    %c0_i32_1 = arith.constant 0 : i32
    return %c0_i32, %c0_i32_0 : i32, i32
  }
  func.func @transform_22(%arg0: i32) -> (i32, i32, i32) {
    %c0_i32 = arith.constant 0 : i32
    %c0_i32_0 = arith.constant 0 : i32
    %c0_i32_1 = arith.constant 0 : i32
    return %arg0, %c0_i32, %c0_i32_0 : i32, i32, i32
  }
}

</mosaic_0001>

<llo_original>
// kernel: tpu_custom_call.1
$region0: #{tpu_custom_call.1}
  #allocation0 [shape = 'u32[]', space=smem, size = 0x4, offset = 0x4, fixed_abs, tag = 'smem constant byte address 0x4 - core index']
  #allocation1 [shape = 'u32[144,128]{1,0:T(1,128)}', space=vmem, size = 0x12000, scoped, tag = 'internal scratch']
  %s0 = inlined_call_operand.vmem [shape: f32[2,4,24], index: 0, kind: input, shape index: {}]
  %s1 = inlined_call_operand.vmem [shape: f32[2,4,1], index: 1, kind: input, shape index: {}]
  %s2 = inlined_call_operand.vmem [shape: f32[16,8], index: 2, kind: input, shape index: {}]
  %s3 = inlined_call_operand.vmem [shape: f32[16,1], index: 3, kind: input, shape index: {}]
  %s4 = inlined_call_operand.vmem [shape: bf16[3,16,4], index: 4, kind: input, shape index: {}]
  %s5 = inlined_call_operand.vmem [shape: f32[16,1], index: 5, kind: input, shape index: {}]
  %s6 = inlined_call_operand.vmem [shape: f32[16,1], index: 6, kind: input, shape index: {}]
  %s7 = inlined_call_operand.vmem [shape: f32[16,1], index: 7, kind: input, shape index: {}]
  %s8 = inlined_call_operand.vmem [shape: bf16[3,16,16], index: 8, kind: input, shape index: {}]
  %s9 = inlined_call_operand.vmem [shape: f32[16,1], index: 9, kind: input, shape index: {}]
  %s10 = inlined_call_operand.vmem [shape: f32[16,1], index: 10, kind: input, shape index: {}]
  %s11 = inlined_call_operand.vmem [shape: f32[16,1], index: 11, kind: input, shape index: {}]
  %s12 = inlined_call_operand.vmem [shape: bf16[1,8,16], index: 12, kind: input, shape index: {}]
  %s13 = inlined_call_operand.vmem [shape: f32[8,1], index: 13, kind: input, shape index: {}]
  %s14 = inlined_call_operand.vmem [shape: bf16[3,32,8], index: 14, kind: input, shape index: {}]
  %s15 = inlined_call_operand.vmem [shape: bf16[3,32,4], index: 15, kind: input, shape index: {}]
  %s16 = inlined_call_operand.vmem [shape: f32[32,1], index: 16, kind: input, shape index: {}]
  %s17 = inlined_call_operand.vmem [shape: f32[32,1], index: 17, kind: input, shape index: {}]
  %s18 = inlined_call_operand.vmem [shape: f32[32,1], index: 18, kind: input, shape index: {}]
  %s19 = inlined_call_operand.vmem [shape: bf16[3,4,16], index: 19, kind: input, shape index: {}]
  %s20 = inlined_call_operand.vmem [shape: bf16[3,4,4], index: 20, kind: input, shape index: {}]
  %s21 = inlined_call_operand.vmem [shape: f32[4,1], index: 21, kind: input, shape index: {}]
  %s22 = inlined_call_operand.hbm [shape: f32[2,4,16], index: 22, kind: output, shape index: {}]
  %s23 = sld [smem:[#allocation0]]
  $region121: #{tpu_custom_call.1} parent=0
    _
  %s25 = ssub.s32 1, %s23
  %s26 = scalar_select 0, %s25, %s23
  $region1: #{tpu_custom_call.1} parent=0
    #allocation2 [shape = 'u8[4096]{0}', space=vmem, size = 0x1000, scoped, tag = 'output window, operand 0']
    #allocation3 [shape = 's32[2]{0}', space=sflag, size = 0x8, scoped, tag = 'scoped memory for tpu_custom_call.1']
    %27 = vsyncpa [#allocation3], 0
    %s28 = scalar_lea.sflag [#allocation3], 1
    %29 = vsyncpa %s28, 0
    loop: start=0, step=1, limit=4
    $region2: #{tpu_custom_call.1} parent=1 // loop_pre_header
      _
    $region3: #{tpu_custom_call.1} parent=1 // loop_header
      %s31 = sphi 0, %s35
      %p32 = scmp.ge.s32.totalorder %s31, 4
      %s41 = sphi 0, %s43
      %s44 = sphi 0, %s41
      %s45 = sphi 0, %s44
      %s61 = sphi 0, %s45
      %s67 = sphi 0, %s69
      %s70 = sphi 0, %s67
      %s71 = sphi 0, %s70
      %s87 = sphi 0, %s71
      %s91 = sphi 0, %s91
      %s93 = sphi 0, %s91
      %s94 = sphi 0, %s93
      %s108 = sphi 0, %s94
      %s112 = sphi 0, %s112
      %s114 = sphi 0, %s112
      %s115 = sphi 0, %s114
      %s129 = sphi 0, %s115
      %s133 = sphi 0, %s133
      %s135 = sphi 0, %s133
      %s136 = sphi 0, %s135
      %s150 = sphi 0, %s136
      %s154 = sphi 0, %s154
      %s156 = sphi 0, %s154
      %s157 = sphi 0, %s156
      %s171 = sphi 0, %s157
      %s175 = sphi 0, %s175
      %s177 = sphi 0, %s175
      %s178 = sphi 0, %s177
      %s192 = sphi 0, %s178
      %s196 = sphi 0, %s196
      %s198 = sphi 0, %s196
      %s199 = sphi 0, %s198
      %s213 = sphi 0, %s199
      %s217 = sphi 0, %s217
      %s219 = sphi 0, %s217
      %s220 = sphi 0, %s219
      %s234 = sphi 0, %s220
      %s238 = sphi 0, %s238
      %s240 = sphi 0, %s238
      %s241 = sphi 0, %s240
      %s255 = sphi 0, %s241
      %s259 = sphi 0, %s259
      %s261 = sphi 0, %s259
      %s262 = sphi 0, %s261
      %s276 = sphi 0, %s262
      %s280 = sphi 0, %s280
      %s282 = sphi 0, %s280
      %s283 = sphi 0, %s282
      %s297 = sphi 0, %s283
      %s301 = sphi 0, %s301
      %s303 = sphi 0, %s301
      %s304 = sphi 0, %s303
      %s318 = sphi 0, %s304
      %s322 = sphi 0, %s322
      %s324 = sphi 0, %s322
      %s325 = sphi 0, %s324
      %s339 = sphi 0, %s325
      %s343 = sphi 0, %s343
      %s345 = sphi 0, %s343
      %s346 = sphi 0, %s345
      %s360 = sphi 0, %s346
      %s364 = sphi 0, %s364
      %s366 = sphi 0, %s364
      %s367 = sphi 0, %s366
      %s381 = sphi 0, %s367
      %s385 = sphi 0, %s385
      %s387 = sphi 0, %s385
      %s388 = sphi 0, %s387
      %s402 = sphi 0, %s388
      %s406 = sphi 0, %s406
      %s408 = sphi 0, %s406
      %s409 = sphi 0, %s408
      %s423 = sphi 0, %s409
      %s427 = sphi 0, %s427
      %s429 = sphi 0, %s427
      %s430 = sphi 0, %s429
      %s444 = sphi 0, %s430
      %s448 = sphi 0, %s448
      %s450 = sphi 0, %s448
      %s451 = sphi 0, %s450
      %s465 = sphi 0, %s451
      %s469 = sphi 0, %s469
      %s471 = sphi 0, %s469
      %s472 = sphi 0, %s471
      %s486 = sphi 0, %s472
      %s490 = sphi 0, %s490
      %s492 = sphi 0, %s490
      %s493 = sphi 0, %s492
      %s507 = sphi 0, %s493
      %s513 = sphi 0, %s515
      %s516 = sphi 0, %s513
      %s517 = sphi 0, %s516
      %s533 = sphi 0, %s517
    $region4: #{tpu_custom_call.1} parent=1 // loop_header_branch
      %34 = sbr.rel (%p32) target = $region8
    $region5: #{tpu_custom_call.1} parent=1 // loop_body
      %s36 = ssub.s32 %s31, 1
      %s37 = ssub.s32 %s31, 2
      %s38 = sadd.s32 %s31, 1
      %s39 = ssub.s32 %s31, %s38
      %p40 = scmp.eq.s32.totalorder %s39, 0
      %s42 = sadd.s32 %s41, 1
      %s43 = scalar_select %p40, %s41, %s42
      %p46 = pneg %p40
      %p47 = scmp.eq.s32.totalorder %s31, 1
      %p48 = por %p46, %p47
      %p49 = scmp.ne.s32.totalorder %s41, %s44
      %p50 = scmp.eq.s32.totalorder %s31, 0
      %p51 = por %p49, %p50
      %p52 = scmp.ne.s32.totalorder %s41, %s44
      %p53 = scmp.eq.s32.totalorder %s36, 1
      %p54 = por %p52, %p53
      %p55 = scmp.ne.s32.totalorder %s44, %s45
      %p56 = scmp.eq.s32.totalorder %s36, 0
      %p57 = por %p55, %p56
      %p58 = scmp.ne.s32.totalorder %s44, %s45
      %p59 = scmp.eq.s32.totalorder %s37, 1
      %p60 = por %p58, %p59
      %p62 = scmp.ne.s32.totalorder %s45, %s61
      %p63 = scmp.eq.s32.totalorder %s37, 0
      %p64 = por %p62, %p63
      %s65 = ssub.s32 %s31, %s38
      %p66 = scmp.eq.s32.totalorder %s65, 0
      %s68 = sadd.s32 %s67, 1
      %s69 = scalar_select %p66, %s67, %s68
      %p72 = pneg %p66
      %p73 = scmp.eq.s32.totalorder %s31, 1
      %p74 = por %p72, %p73
      %p75 = scmp.ne.s32.totalorder %s67, %s70
      %p76 = scmp.eq.s32.totalorder %s31, 0
      %p77 = por %p75, %p76
      %p78 = scmp.ne.s32.totalorder %s67, %s70
      %p79 = scmp.eq.s32.totalorder %s36, 1
      %p80 = por %p78, %p79
      %p81 = scmp.ne.s32.totalorder %s70, %s71
      %p82 = scmp.eq.s32.totalorder %s36, 0
      %p83 = por %p81, %p82
      %p84 = scmp.ne.s32.totalorder %s70, %s71
      %p85 = scmp.eq.s32.totalorder %s37, 1
      %p86 = por %p84, %p85
      %p88 = scmp.ne.s32.totalorder %s71, %s87
      %p89 = scmp.eq.s32.totalorder %s37, 0
      %p90 = por %p88, %p89
      %s92 = sadd.s32 %s91, 1
      %p95 = scmp.eq.s32.totalorder %s31, 1
      %p96 = scmp.ne.s32.totalorder %s91, %s93
      %p97 = scmp.eq.s32.totalorder %s31, 0
      %p98 = por %p96, %p97
      %p99 = scmp.ne.s32.totalorder %s91, %s93
      %p100 = scmp.eq.s32.totalorder %s36, 1
      %p101 = por %p99, %p100
      %p102 = scmp.ne.s32.totalorder %s93, %s94
      %p103 = scmp.eq.s32.totalorder %s36, 0
      %p104 = por %p102, %p103
      %p105 = scmp.ne.s32.totalorder %s93, %s94
      %p106 = scmp.eq.s32.totalorder %s37, 1
      %p107 = por %p105, %p106
      %p109 = scmp.ne.s32.totalorder %s94, %s108
      %p110 = scmp.eq.s32.totalorder %s37, 0
      %p111 = por %p109, %p110
      %s113 = sadd.s32 %s112, 1
      %p116 = scmp.eq.s32.totalorder %s31, 1
      %p117 = scmp.ne.s32.totalorder %s112, %s114
      %p118 = scmp.eq.s32.totalorder %s31, 0
      %p119 = por %p117, %p118
      %p120 = scmp.ne.s32.totalorder %s112, %s114
      %p121 = scmp.eq.s32.totalorder %s36, 1
      %p122 = por %p120, %p121
      %p123 = scmp.ne.s32.totalorder %s114, %s115
      %p124 = scmp.eq.s32.totalorder %s36, 0
      %p125 = por %p123, %p124
      %p126 = scmp.ne.s32.totalorder %s114, %s115
      %p127 = scmp.eq.s32.totalorder %s37, 1
      %p128 = por %p126, %p127
      %p130 = scmp.ne.s32.totalorder %s115, %s129
      %p131 = scmp.eq.s32.totalorder %s37, 0
      %p132 = por %p130, %p131
      %s134 = sadd.s32 %s133, 1
      %p137 = scmp.eq.s32.totalorder %s31, 1
      %p138 = scmp.ne.s32.totalorder %s133, %s135
      %p139 = scmp.eq.s32.totalorder %s31, 0
      %p140 = por %p138, %p139
      %p141 = scmp.ne.s32.totalorder %s133, %s135
      %p142 = scmp.eq.s32.totalorder %s36, 1
      %p143 = por %p141, %p142
      %p144 = scmp.ne.s32.totalorder %s135, %s136
      %p145 = scmp.eq.s32.totalorder %s36, 0
      %p146 = por %p144, %p145
      %p147 = scmp.ne.s32.totalorder %s135, %s136
      %p148 = scmp.eq.s32.totalorder %s37, 1
      %p149 = por %p147, %p148
      %p151 = scmp.ne.s32.totalorder %s136, %s150
      %p152 = scmp.eq.s32.totalorder %s37, 0
      %p153 = por %p151, %p152
      %s155 = sadd.s32 %s154, 1
      %p158 = scmp.eq.s32.totalorder %s31, 1
      %p159 = scmp.ne.s32.totalorder %s154, %s156
      %p160 = scmp.eq.s32.totalorder %s31, 0
      %p161 = por %p159, %p160
      %p162 = scmp.ne.s32.totalorder %s154, %s156
      %p163 = scmp.eq.s32.totalorder %s36, 1
      %p164 = por %p162, %p163
      %p165 = scmp.ne.s32.totalorder %s156, %s157
      %p166 = scmp.eq.s32.totalorder %s36, 0
      %p167 = por %p165, %p166
      %p168 = scmp.ne.s32.totalorder %s156, %s157
      %p169 = scmp.eq.s32.totalorder %s37, 1
      %p170 = por %p168, %p169
      %p172 = scmp.ne.s32.totalorder %s157, %s171
      %p173 = scmp.eq.s32.totalorder %s37, 0
      %p174 = por %p172, %p173
      %s176 = sadd.s32 %s175, 1
      %p179 = scmp.eq.s32.totalorder %s31, 1
      %p180 = scmp.ne.s32.totalorder %s175, %s177
      %p181 = scmp.eq.s32.totalorder %s31, 0
      %p182 = por %p180, %p181
      %p183 = scmp.ne.s32.totalorder %s175, %s177
      %p184 = scmp.eq.s32.totalorder %s36, 1
      %p185 = por %p183, %p184
      %p186 = scmp.ne.s32.totalorder %s177, %s178
      %p187 = scmp.eq.s32.totalorder %s36, 0
      %p188 = por %p186, %p187
      %p189 = scmp.ne.s32.totalorder %s177, %s178
      %p190 = scmp.eq.s32.totalorder %s37, 1
      %p191 = por %p189, %p190
      %p193 = scmp.ne.s32.totalorder %s178, %s192
      %p194 = scmp.eq.s32.totalorder %s37, 0
      %p195 = por %p193, %p194
      %s197 = sadd.s32 %s196, 1
      %p200 = scmp.eq.s32.totalorder %s31, 1
      %p201 = scmp.ne.s32.totalorder %s196, %s198
      %p202 = scmp.eq.s32.totalorder %s31, 0
      %p203 = por %p201, %p202
      %p204 = scmp.ne.s32.totalorder %s196, %s198
      %p205 = scmp.eq.s32.totalorder %s36, 1
      %p206 = por %p204, %p205
      %p207 = scmp.ne.s32.totalorder %s198, %s199
      %p208 = scmp.eq.s32.totalorder %s36, 0
      %p209 = por %p207, %p208
      %p210 = scmp.ne.s32.totalorder %s198, %s199
      %p211 = scmp.eq.s32.totalorder %s37, 1
      %p212 = por %p210, %p211
      %p214 = scmp.ne.s32.totalorder %s199, %s213
      %p215 = scmp.eq.s32.totalorder %s37, 0
      %p216 = por %p214, %p215
      %s218 = sadd.s32 %s217, 1
      %p221 = scmp.eq.s32.totalorder %s31, 1
      %p222 = scmp.ne.s32.totalorder %s217, %s219
      %p223 = scmp.eq.s32.totalorder %s31, 0
      %p224 = por %p222, %p223
      %p225 = scmp.ne.s32.totalorder %s217, %s219
      %p226 = scmp.eq.s32.totalorder %s36, 1
      %p227 = por %p225, %p226
      %p228 = scmp.ne.s32.totalorder %s219, %s220
      %p229 = scmp.eq.s32.totalorder %s36, 0
      %p230 = por %p228, %p229
      %p231 = scmp.ne.s32.totalorder %s219, %s220
      %p232 = scmp.eq.s32.totalorder %s37, 1
      %p233 = por %p231, %p232
      %p235 = scmp.ne.s32.totalorder %s220, %s234
      %p236 = scmp.eq.s32.totalorder %s37, 0
      %p237 = por %p235, %p236
      %s239 = sadd.s32 %s238, 1
      %p242 = scmp.eq.s32.totalorder %s31, 1
      %p243 = scmp.ne.s32.totalorder %s238, %s240
      %p244 = scmp.eq.s32.totalorder %s31, 0
      %p245 = por %p243, %p244
      %p246 = scmp.ne.s32.totalorder %s238, %s240
      %p247 = scmp.eq.s32.totalorder %s36, 1
      %p248 = por %p246, %p247
      %p249 = scmp.ne.s32.totalorder %s240, %s241
      %p250 = scmp.eq.s32.totalorder %s36, 0
      %p251 = por %p249, %p250
      %p252 = scmp.ne.s32.totalorder %s240, %s241
      %p253 = scmp.eq.s32.totalorder %s37, 1
      %p254 = por %p252, %p253
      %p256 = scmp.ne.s32.totalorder %s241, %s255
      %p257 = scmp.eq.s32.totalorder %s37, 0
      %p258 = por %p256, %p257
      %s260 = sadd.s32 %s259, 1
      %p263 = scmp.eq.s32.totalorder %s31, 1
      %p264 = scmp.ne.s32.totalorder %s259, %s261
      %p265 = scmp.eq.s32.totalorder %s31, 0
      %p266 = por %p264, %p265
      %p267 = scmp.ne.s32.totalorder %s259, %s261
      %p268 = scmp.eq.s32.totalorder %s36, 1
      %p269 = por %p267, %p268
      %p270 = scmp.ne.s32.totalorder %s261, %s262
      %p271 = scmp.eq.s32.totalorder %s36, 0
      %p272 = por %p270, %p271
      %p273 = scmp.ne.s32.totalorder %s261, %s262
      %p274 = scmp.eq.s32.totalorder %s37, 1
      %p275 = por %p273, %p274
      %p277 = scmp.ne.s32.totalorder %s262, %s276
      %p278 = scmp.eq.s32.totalorder %s37, 0
      %p279 = por %p277, %p278
      %s281 = sadd.s32 %s280, 1
      %p284 = scmp.eq.s32.totalorder %s31, 1
      %p285 = scmp.ne.s32.totalorder %s280, %s282
      %p286 = scmp.eq.s32.totalorder %s31, 0
      %p287 = por %p285, %p286
      %p288 = scmp.ne.s32.totalorder %s280, %s282
      %p289 = scmp.eq.s32.totalorder %s36, 1
      %p290 = por %p288, %p289
      %p291 = scmp.ne.s32.totalorder %s282, %s283
      %p292 = scmp.eq.s32.totalorder %s36, 0
      %p293 = por %p291, %p292
      %p294 = scmp.ne.s32.totalorder %s282, %s283
      %p295 = scmp.eq.s32.totalorder %s37, 1
      %p296 = por %p294, %p295
      %p298 = scmp.ne.s32.totalorder %s283, %s297
      %p299 = scmp.eq.s32.totalorder %s37, 0
      %p300 = por %p298, %p299
      %s302 = sadd.s32 %s301, 1
      %p305 = scmp.eq.s32.totalorder %s31, 1
      %p306 = scmp.ne.s32.totalorder %s301, %s303
      %p307 = scmp.eq.s32.totalorder %s31, 0
      %p308 = por %p306, %p307
      %p309 = scmp.ne.s32.totalorder %s301, %s303
      %p310 = scmp.eq.s32.totalorder %s36, 1
      %p311 = por %p309, %p310
      %p312 = scmp.ne.s32.totalorder %s303, %s304
      %p313 = scmp.eq.s32.totalorder %s36, 0
      %p314 = por %p312, %p313
      %p315 = scmp.ne.s32.totalorder %s303, %s304
      %p316 = scmp.eq.s32.totalorder %s37, 1
      %p317 = por %p315, %p316
      %p319 = scmp.ne.s32.totalorder %s304, %s318
      %p320 = scmp.eq.s32.totalorder %s37, 0
      %p321 = por %p319, %p320
      %s323 = sadd.s32 %s322, 1
      %p326 = scmp.eq.s32.totalorder %s31, 1
      %p327 = scmp.ne.s32.totalorder %s322, %s324
      %p328 = scmp.eq.s32.totalorder %s31, 0
      %p329 = por %p327, %p328
      %p330 = scmp.ne.s32.totalorder %s322, %s324
      %p331 = scmp.eq.s32.totalorder %s36, 1
      %p332 = por %p330, %p331
      %p333 = scmp.ne.s32.totalorder %s324, %s325
      %p334 = scmp.eq.s32.totalorder %s36, 0
      %p335 = por %p333, %p334
      %p336 = scmp.ne.s32.totalorder %s324, %s325
      %p337 = scmp.eq.s32.totalorder %s37, 1
      %p338 = por %p336, %p337
      %p340 = scmp.ne.s32.totalorder %s325, %s339
      %p341 = scmp.eq.s32.totalorder %s37, 0
      %p342 = por %p340, %p341
      %s344 = sadd.s32 %s343, 1
      %p347 = scmp.eq.s32.totalorder %s31, 1
      %p348 = scmp.ne.s32.totalorder %s343, %s345
      %p349 = scmp.eq.s32.totalorder %s31, 0
      %p350 = por %p348, %p349
      %p351 = scmp.ne.s32.totalorder %s343, %s345
      %p352 = scmp.eq.s32.totalorder %s36, 1
      %p353 = por %p351, %p352
      %p354 = scmp.ne.s32.totalorder %s345, %s346
      %p355 = scmp.eq.s32.totalorder %s36, 0
      %p356 = por %p354, %p355
      %p357 = scmp.ne.s32.totalorder %s345, %s346
      %p358 = scmp.eq.s32.totalorder %s37, 1
      %p359 = por %p357, %p358
      %p361 = scmp.ne.s32.totalorder %s346, %s360
      %p362 = scmp.eq.s32.totalorder %s37, 0
      %p363 = por %p361, %p362
      %s365 = sadd.s32 %s364, 1
      %p368 = scmp.eq.s32.totalorder %s31, 1
      %p369 = scmp.ne.s32.totalorder %s364, %s366
      %p370 = scmp.eq.s32.totalorder %s31, 0
      %p371 = por %p369, %p370
      %p372 = scmp.ne.s32.totalorder %s364, %s366
      %p373 = scmp.eq.s32.totalorder %s36, 1
      %p374 = por %p372, %p373
      %p375 = scmp.ne.s32.totalorder %s366, %s367
      %p376 = scmp.eq.s32.totalorder %s36, 0
      %p377 = por %p375, %p376
      %p378 = scmp.ne.s32.totalorder %s366, %s367
      %p379 = scmp.eq.s32.totalorder %s37, 1
      %p380 = por %p378, %p379
      %p382 = scmp.ne.s32.totalorder %s367, %s381
      %p383 = scmp.eq.s32.totalorder %s37, 0
      %p384 = por %p382, %p383
      %s386 = sadd.s32 %s385, 1
      %p389 = scmp.eq.s32.totalorder %s31, 1
      %p390 = scmp.ne.s32.totalorder %s385, %s387
      %p391 = scmp.eq.s32.totalorder %s31, 0
      %p392 = por %p390, %p391
      %p393 = scmp.ne.s32.totalorder %s385, %s387
      %p394 = scmp.eq.s32.totalorder %s36, 1
      %p395 = por %p393, %p394
      %p396 = scmp.ne.s32.totalorder %s387, %s388
      %p397 = scmp.eq.s32.totalorder %s36, 0
      %p398 = por %p396, %p397
      %p399 = scmp.ne.s32.totalorder %s387, %s388
      %p400 = scmp.eq.s32.totalorder %s37, 1
      %p401 = por %p399, %p400
      %p403 = scmp.ne.s32.totalorder %s388, %s402
      %p404 = scmp.eq.s32.totalorder %s37, 0
      %p405 = por %p403, %p404
      %s407 = sadd.s32 %s406, 1
      %p410 = scmp.eq.s32.totalorder %s31, 1
      %p411 = scmp.ne.s32.totalorder %s406, %s408
      %p412 = scmp.eq.s32.totalorder %s31, 0
      %p413 = por %p411, %p412
      %p414 = scmp.ne.s32.totalorder %s406, %s408
      %p415 = scmp.eq.s32.totalorder %s36, 1
      %p416 = por %p414, %p415
      %p417 = scmp.ne.s32.totalorder %s408, %s409
      %p418 = scmp.eq.s32.totalorder %s36, 0
      %p419 = por %p417, %p418
      %p420 = scmp.ne.s32.totalorder %s408, %s409
      %p421 = scmp.eq.s32.totalorder %s37, 1
      %p422 = por %p420, %p421
      %p424 = scmp.ne.s32.totalorder %s409, %s423
      %p425 = scmp.eq.s32.totalorder %s37, 0
      %p426 = por %p424, %p425
      %s428 = sadd.s32 %s427, 1
      %p431 = scmp.eq.s32.totalorder %s31, 1
      %p432 = scmp.ne.s32.totalorder %s427, %s429
      %p433 = scmp.eq.s32.totalorder %s31, 0
      %p434 = por %p432, %p433
      %p435 = scmp.ne.s32.totalorder %s427, %s429
      %p436 = scmp.eq.s32.totalorder %s36, 1
      %p437 = por %p435, %p436
      %p438 = scmp.ne.s32.totalorder %s429, %s430
      %p439 = scmp.eq.s32.totalorder %s36, 0
      %p440 = por %p438, %p439
      %p441 = scmp.ne.s32.totalorder %s429, %s430
      %p442 = scmp.eq.s32.totalorder %s37, 1
      %p443 = por %p441, %p442
      %p445 = scmp.ne.s32.totalorder %s430, %s444
      %p446 = scmp.eq.s32.totalorder %s37, 0
      %p447 = por %p445, %p446
      %s449 = sadd.s32 %s448, 1
      %p452 = scmp.eq.s32.totalorder %s31, 1
      %p453 = scmp.ne.s32.totalorder %s448, %s450
      %p454 = scmp.eq.s32.totalorder %s31, 0
      %p455 = por %p453, %p454
      %p456 = scmp.ne.s32.totalorder %s448, %s450
      %p457 = scmp.eq.s32.totalorder %s36, 1
      %p458 = por %p456, %p457
      %p459 = scmp.ne.s32.totalorder %s450, %s451
      %p460 = scmp.eq.s32.totalorder %s36, 0
      %p461 = por %p459, %p460
      %p462 = scmp.ne.s32.totalorder %s450, %s451
      %p463 = scmp.eq.s32.totalorder %s37, 1
      %p464 = por %p462, %p463
      %p466 = scmp.ne.s32.totalorder %s451, %s465
      %p467 = scmp.eq.s32.totalorder %s37, 0
      %p468 = por %p466, %p467
      %s470 = sadd.s32 %s469, 1
      %p473 = scmp.eq.s32.totalorder %s31, 1
      %p474 = scmp.ne.s32.totalorder %s469, %s471
      %p475 = scmp.eq.s32.totalorder %s31, 0
      %p476 = por %p474, %p475
      %p477 = scmp.ne.s32.totalorder %s469, %s471
      %p478 = scmp.eq.s32.totalorder %s36, 1
      %p479 = por %p477, %p478
      %p480 = scmp.ne.s32.totalorder %s471, %s472
      %p481 = scmp.eq.s32.totalorder %s36, 0
      %p482 = por %p480, %p481
      %p483 = scmp.ne.s32.totalorder %s471, %s472
      %p484 = scmp.eq.s32.totalorder %s37, 1
      %p485 = por %p483, %p484
      %p487 = scmp.ne.s32.totalorder %s472, %s486
      %p488 = scmp.eq.s32.totalorder %s37, 0
      %p489 = por %p487, %p488
      %s491 = sadd.s32 %s490, 1
      %p494 = scmp.eq.s32.totalorder %s31, 1
      %p495 = scmp.ne.s32.totalorder %s490, %s492
      %p496 = scmp.eq.s32.totalorder %s31, 0
      %p497 = por %p495, %p496
      %p498 = scmp.ne.s32.totalorder %s490, %s492
      %p499 = scmp.eq.s32.totalorder %s36, 1
      %p500 = por %p498, %p499
      %p501 = scmp.ne.s32.totalorder %s492, %s493
      %p502 = scmp.eq.s32.totalorder %s36, 0
      %p503 = por %p501, %p502
      %p504 = scmp.ne.s32.totalorder %s492, %s493
      %p505 = scmp.eq.s32.totalorder %s37, 1
      %p506 = por %p504, %p505
      %p508 = scmp.ne.s32.totalorder %s493, %s507
      %p509 = scmp.eq.s32.totalorder %s37, 0
      %p510 = por %p508, %p509
      %s511 = ssub.s32 %s31, %s38
      %p512 = scmp.eq.s32.totalorder %s511, 0
      %s514 = sadd.s32 %s513, 1
      %s515 = scalar_select %p512, %s513, %s514
      %p518 = pneg %p512
      %p519 = scmp.eq.s32.totalorder %s31, 1
      %p520 = por %p518, %p519
      %p521 = scmp.ne.s32.totalorder %s513, %s516
      %p522 = scmp.eq.s32.totalorder %s31, 0
      %p523 = por %p521, %p522
      %p524 = scmp.ne.s32.totalorder %s513, %s516
      %p525 = scmp.eq.s32.totalorder %s36, 1
      %p526 = por %p524, %p525
      %p527 = scmp.ne.s32.totalorder %s516, %s517
      %p528 = scmp.eq.s32.totalorder %s36, 0
      %p529 = por %p527, %p528
      %p530 = scmp.ne.s32.totalorder %s516, %s517
      %p531 = scmp.eq.s32.totalorder %s37, 1
      %p532 = por %p530, %p531
      %p534 = scmp.ne.s32.totalorder %s517, %s533
      %p535 = scmp.eq.s32.totalorder %s37, 0
      %p536 = por %p534, %p535
      %p537 = scmp.le.s32.totalorder 1, %s31
      %p538 = scmp.lt.s32.totalorder %s31, 3
      %p539 = pnand %p537, %p538
      %p540 = pneg %p539
      // Predicated region
      $region9: #{tpu_custom_call.1} parent=5 // pred_check
        _
      $region10: #{tpu_custom_call.1} parent=5 // pred_check_branch
        %542 = sbr.rel (%p539) target = $region12
      $region11: #{tpu_custom_call.1} parent=5 // pred_region
        %s543 = ssub.s32 %s31, 1
        // Predicated region
        $region13: #{tpu_custom_call.1} parent=11 // pred_check
          %p544 = pneg %p104
        $region14: #{tpu_custom_call.1} parent=11 // pred_check_branch
          %546 = sbr.rel (%p544) target = $region16
        $region15: #{tpu_custom_call.1} parent=11 // pred_region
          _
        $region16: #{tpu_custom_call.1} parent=11 // pred_fallthru
          _
        // Predicated region
        $region17: #{tpu_custom_call.1} parent=11 // pred_check
          %p547 = pneg %p125
        $region18: #{tpu_custom_call.1} parent=11 // pred_check_branch
          %549 = sbr.rel (%p547) target = $region20
        $region19: #{tpu_custom_call.1} parent=11 // pred_region
          _
        $region20: #{tpu_custom_call.1} parent=11 // pred_fallthru
          _
        // Predicated region
        $region21: #{tpu_custom_call.1} parent=11 // pred_check
          %p550 = pneg %p146
        $region22: #{tpu_custom_call.1} parent=11 // pred_check_branch
          %552 = sbr.rel (%p550) target = $region24
        $region23: #{tpu_custom_call.1} parent=11 // pred_region
          _
        $region24: #{tpu_custom_call.1} parent=11 // pred_fallthru
          _
        // Predicated region
        $region25: #{tpu_custom_call.1} parent=11 // pred_check
          %p553 = pneg %p167
        $region26: #{tpu_custom_call.1} parent=11 // pred_check_branch
          %555 = sbr.rel (%p553) target = $region28
        $region27: #{tpu_custom_call.1} parent=11 // pred_region
          _
        $region28: #{tpu_custom_call.1} parent=11 // pred_fallthru
          _
        // Predicated region
        $region29: #{tpu_custom_call.1} parent=11 // pred_check
          %p556 = pneg %p188
        $region30: #{tpu_custom_call.1} parent=11 // pred_check_branch
          %558 = sbr.rel (%p556) target = $region32
        $region31: #{tpu_custom_call.1} parent=11 // pred_region
          _
        $region32: #{tpu_custom_call.1} parent=11 // pred_fallthru
          _
        // Predicated region
        $region33: #{tpu_custom_call.1} parent=11 // pred_check
          %p559 = pneg %p209
        $region34: #{tpu_custom_call.1} parent=11 // pred_check_branch
          %561 = sbr.rel (%p559) target = $region36
        $region35: #{tpu_custom_call.1} parent=11 // pred_region
          _
        $region36: #{tpu_custom_call.1} parent=11 // pred_fallthru
          _
        // Predicated region
        $region37: #{tpu_custom_call.1} parent=11 // pred_check
          %p562 = pneg %p230
        $region38: #{tpu_custom_call.1} parent=11 // pred_check_branch
          %564 = sbr.rel (%p562) target = $region40
        $region39: #{tpu_custom_call.1} parent=11 // pred_region
          _
        $region40: #{tpu_custom_call.1} parent=11 // pred_fallthru
          _
        // Predicated region
        $region41: #{tpu_custom_call.1} parent=11 // pred_check
          %p565 = pneg %p251
        $region42: #{tpu_custom_call.1} parent=11 // pred_check_branch
          %567 = sbr.rel (%p565) target = $region44
        $region43: #{tpu_custom_call.1} parent=11 // pred_region
          _
        $region44: #{tpu_custom_call.1} parent=11 // pred_fallthru
          _
        // Predicated region
        $region45: #{tpu_custom_call.1} parent=11 // pred_check
          %p568 = pneg %p272
        $region46: #{tpu_custom_call.1} parent=11 // pred_check_branch
          %570 = sbr.rel (%p568) target = $region48
        $region47: #{tpu_custom_call.1} parent=11 // pred_region
          _
        $region48: #{tpu_custom_call.1} parent=11 // pred_fallthru
          _
        // Predicated region
        $region49: #{tpu_custom_call.1} parent=11 // pred_check
          %p571 = pneg %p293
        $region50: #{tpu_custom_call.1} parent=11 // pred_check_branch
          %573 = sbr.rel (%p571) target = $region52
        $region51: #{tpu_custom_call.1} parent=11 // pred_region
          _
        $region52: #{tpu_custom_call.1} parent=11 // pred_fallthru
          _
        // Predicated region
        $region53: #{tpu_custom_call.1} parent=11 // pred_check
          %p574 = pneg %p314
        $region54: #{tpu_custom_call.1} parent=11 // pred_check_branch
          %576 = sbr.rel (%p574) target = $region56
        $region55: #{tpu_custom_call.1} parent=11 // pred_region
          _
        $region56: #{tpu_custom_call.1} parent=11 // pred_fallthru
          _
        // Predicated region
        $region57: #{tpu_custom_call.1} parent=11 // pred_check
          %p577 = pneg %p335
        $region58: #{tpu_custom_call.1} parent=11 // pred_check_branch
          %579 = sbr.rel (%p577) target = $region60
        $region59: #{tpu_custom_call.1} parent=11 // pred_region
          _
        $region60: #{tpu_custom_call.1} parent=11 // pred_fallthru
          _
        // Predicated region
        $region61: #{tpu_custom_call.1} parent=11 // pred_check
          %p580 = pneg %p356
        $region62: #{tpu_custom_call.1} parent=11 // pred_check_branch
          %582 = sbr.rel (%p580) target = $region64
        $region63: #{tpu_custom_call.1} parent=11 // pred_region
          _
        $region64: #{tpu_custom_call.1} parent=11 // pred_fallthru
          _
        // Predicated region
        $region65: #{tpu_custom_call.1} parent=11 // pred_check
          %p583 = pneg %p377
        $region66: #{tpu_custom_call.1} parent=11 // pred_check_branch
          %585 = sbr.rel (%p583) target = $region68
        $region67: #{tpu_custom_call.1} parent=11 // pred_region
          _
        $region68: #{tpu_custom_call.1} parent=11 // pred_fallthru
          _
        // Predicated region
        $region69: #{tpu_custom_call.1} parent=11 // pred_check
          %p586 = pneg %p398
        $region70: #{tpu_custom_call.1} parent=11 // pred_check_branch
          %588 = sbr.rel (%p586) target = $region72
        $region71: #{tpu_custom_call.1} parent=11 // pred_region
          _
        $region72: #{tpu_custom_call.1} parent=11 // pred_fallthru
          _
        // Predicated region
        $region73: #{tpu_custom_call.1} parent=11 // pred_check
          %p589 = pneg %p419
        $region74: #{tpu_custom_call.1} parent=11 // pred_check_branch
          %591 = sbr.rel (%p589) target = $region76
        $region75: #{tpu_custom_call.1} parent=11 // pred_region
          _
        $region76: #{tpu_custom_call.1} parent=11 // pred_fallthru
          _
        // Predicated region
        $region77: #{tpu_custom_call.1} parent=11 // pred_check
          %p592 = pneg %p440
        $region78: #{tpu_custom_call.1} parent=11 // pred_check_branch
          %594 = sbr.rel (%p592) target = $region80
        $region79: #{tpu_custom_call.1} parent=11 // pred_region
          _
        $region80: #{tpu_custom_call.1} parent=11 // pred_fallthru
          _
        // Predicated region
        $region81: #{tpu_custom_call.1} parent=11 // pred_check
          %p595 = pneg %p461
        $region82: #{tpu_custom_call.1} parent=11 // pred_check_branch
          %597 = sbr.rel (%p595) target = $region84
        $region83: #{tpu_custom_call.1} parent=11 // pred_region
          _
        $region84: #{tpu_custom_call.1} parent=11 // pred_fallthru
          _
        // Predicated region
        $region85: #{tpu_custom_call.1} parent=11 // pred_check
          %p598 = pneg %p482
        $region86: #{tpu_custom_call.1} parent=11 // pred_check_branch
          %600 = sbr.rel (%p598) target = $region88
        $region87: #{tpu_custom_call.1} parent=11 // pred_region
          _
        $region88: #{tpu_custom_call.1} parent=11 // pred_fallthru
          _
        // Predicated region
        $region89: #{tpu_custom_call.1} parent=11 // pred_check
          %p601 = pneg %p503
        $region90: #{tpu_custom_call.1} parent=11 // pred_check_branch
          %603 = sbr.rel (%p601) target = $region92
        $region91: #{tpu_custom_call.1} parent=11 // pred_region
          _
        $region92: #{tpu_custom_call.1} parent=11 // pred_fallthru
          _
      $region12: #{tpu_custom_call.1} parent=5 // pred_fallthru
        _
      %p604 = scmp.lt.s32.totalorder %s31, 2
      // Predicated region
      $region93: #{tpu_custom_call.1} parent=5 // pred_check
        %p605 = pneg %p604
      $region94: #{tpu_custom_call.1} parent=5 // pred_check_branch
        %607 = sbr.rel (%p605) target = $region96
      $region95: #{tpu_custom_call.1} parent=5 // pred_region
        // Predicated region
        $region97: #{tpu_custom_call.1} parent=95 // pred_check
          %p608 = pneg %p51
        $region98: #{tpu_custom_call.1} parent=95 // pred_check_branch
          %610 = sbr.rel (%p608) target = $region100
        $region99: #{tpu_custom_call.1} parent=95 // pred_region
          %p611 = scmp.lt.s32.totalorder %s31, 1
          %s612 = scalar_select %p611, %s31, 1
          %s613 = smul.addr %s612, 4
          %s614 = scalar_lea.vmem %s0, %s613
        $region100: #{tpu_custom_call.1} parent=95 // pred_fallthru
          _
        // Predicated region
        $region101: #{tpu_custom_call.1} parent=95 // pred_check
          %p615 = pneg %p77
        $region102: #{tpu_custom_call.1} parent=95 // pred_check_branch
          %617 = sbr.rel (%p615) target = $region104
        $region103: #{tpu_custom_call.1} parent=95 // pred_region
          %p618 = scmp.lt.s32.totalorder %s31, 1
          %s619 = scalar_select %p618, %s31, 1
          %s620 = smul.addr %s619, 4
          %s621 = scalar_lea.vmem %s1, %s620
        $region104: #{tpu_custom_call.1} parent=95 // pred_fallthru
          _
      $region96: #{tpu_custom_call.1} parent=5 // pred_fallthru
        _
      %p622 = scmp.le.s32.totalorder 1, %s31
      %p623 = scmp.lt.s32.totalorder %s31, 3
      %p624 = pnand %p622, %p623
      %p625 = pneg %p624
      // Predicated region
      $region105: #{tpu_custom_call.1} parent=5 // pred_check
        _
      $region106: #{tpu_custom_call.1} parent=5 // pred_check_branch
        %627 = sbr.rel (%p624) target = $region108
      $region107: #{tpu_custom_call.1} parent=5 // pred_region
        %s628 = ssub.s32 %s31, 1
        %p629 = scmp.lt.s32.totalorder %s36, 1
        %s630 = scalar_select %p629, %s36, 1
        %s631 = smul.addr %s630, 4
        %s632 = scalar_lea.vmem %s0, %s631
        %p633 = pneg %p57
        %p634 = pneg %p54
        %p635 = scmp.lt.s32.totalorder %s36, 1
        %s636 = scalar_select %p635, %s36, 1
        %s637 = smul.addr %s636, 4
        %s638 = scalar_lea.vmem %s1, %s637
        %p639 = pneg %p83
        %p640 = pneg %p80
        %p641 = pneg %p104
        %p642 = pneg %p101
        %p643 = pneg %p125
        %p644 = pneg %p122
        %p645 = pneg %p146
        %p646 = pneg %p143
        %p647 = pneg %p167
        %p648 = pneg %p164
        %p649 = pneg %p188
        %p650 = pneg %p185
        %p651 = pneg %p209
        %p652 = pneg %p206
        %p653 = pneg %p230
        %p654 = pneg %p227
        %p655 = pneg %p251
        %p656 = pneg %p248
        %p657 = pneg %p272
        %p658 = pneg %p269
        %p659 = pneg %p293
        %p660 = pneg %p290
        %p661 = pneg %p314
        %p662 = pneg %p311
        %p663 = pneg %p335
        %p664 = pneg %p332
        %p665 = pneg %p356
        %p666 = pneg %p353
        %p667 = pneg %p377
        %p668 = pneg %p374
        %p669 = pneg %p398
        %p670 = pneg %p395
        %p671 = pneg %p419
        %p672 = pneg %p416
        %p673 = pneg %p440
        %p674 = pneg %p437
        %p675 = pneg %p461
        %p676 = pneg %p458
        %p677 = pneg %p482
        %p678 = pneg %p479
        %p679 = pneg %p503
        %p680 = pneg %p500
        %p681 = pneg %p529
        %p682 = pneg %p526
        %s683 = sand.u32 %s516, 1
        %s684 = scalar_lea.sflag [#allocation3], %s683
        %s685 = sand.u32 %s516, 1
        %s686 = smul.addr %s685, 4
        %s687 = scalar_lea.vmem [#allocation2], %s686
        %p688 = scmp.lt.s32.totalorder %s36, 1
        %s689 = scalar_select %p688, %s36, 1
        %s690 = smul.addr %s689, 4
        %s691 = scalar_lea.vmem %s0, %s690
        %p692 = scmp.lt.s32.totalorder %s36, 1
        %s693 = scalar_select %p692, %s36, 1
        %s694 = smul.addr %s693, 4
        %s695 = scalar_lea.vmem %s1, %s694
        %v697 = vld [vmem:[%s691] sm:$0xf]
        %v698 = vpack.c.bf16 %v697, %v697
        %v699 = vld [vmem:[%s4] sm:$0xf]
        %v700 = vld [vmem:[%s4 + $0x4] sm:$0xf]
        %s701 = scalar_lea.vmem %s4, 8
        %v702 = vld [vmem:[%s701] sm:$0xf]
        %v703 = vld [vmem:[%s701 + $0x4] sm:$0xf]
        %v706 = vunpack.c.l.b16 %v702
        %v707 = vunpack.c.l.b16 %v703
        %v708 = vpack.c.b16 %v707, %v706
        %710 = vrot.lane.b32.xlu0 %v698, 127
        %v711 = vpop.permute.xlu0 %710
        %vm712 = vcmask 31744
        %v714 = vsel %vm712, %v708, 0
        %vm716 = vcmask 1041408
        %v718 = vsel %vm716, %v711, 0
        %720 = vmatprep.subr.bf16.mxu0 0
        %721 = vmatpush1.bf16.msra.mxu0 0
        %722 = vmatprep.subr.bf16.mxu0 0
        %723 = vmatpush1.bf16.msra.mxu0 0
        %724 = vmatprep.subr.bf16.mxu0 0
        %725 = vmatpush1.bf16.msra.mxu0 0
        %726 = vmatprep.subr.bf16.mxu0 0
        %727 = vmatpush1.bf16.msra.mxu0 0
        %728 = vmatprep.subr.bf16.mxu0 0
        %729 = vmatpush1.bf16.msra.mxu0 0
        %730 = vmatprep.subr.bf16.mxu0 0
        %731 = vmatpush1.bf16.msra.mxu0 0
        %732 = vmatprep.subr.bf16.mxu0 0
        %733 = vmatpush1.bf16.msra.mxu0 0
        %734 = vmatprep.subr.bf16.mxu0 0
        %735 = vmatpush1.bf16.msra.mxu0 %v718
        %736 = vmatprep.subr.bf16.mxu0 0
        %737 = vmatpush2.bf16.msra.mxu0 0
        %738 = vmatprep.subr.bf16.mxu0 0
        %739 = vmatpush2.bf16.msra.mxu0 0
        %740 = vmatprep.subr.bf16.mxu0 0
        %741 = vmatpush2.bf16.msra.mxu0 0
        %742 = vmatprep.subr.bf16.mxu0 0
        %743 = vmatpush2.bf16.msra.mxu0 0
        %744 = vmatprep.subr.bf16.mxu0 0
        %745 = vmatpush2.bf16.msra.mxu0 0
        %746 = vmatprep.subr.bf16.mxu0 0
        %747 = vmatpush2.bf16.msra.mxu0 0
        %748 = vmatprep.subr.bf16.mxu0 0
        %749 = vmatpush2.bf16.msra.mxu0 0
        %750 = vmatprep.subr.bf16.mxu0 0
        %751 = vmatpush2.bf16.msra.mxu0 0
        %752 = vmatprep.mubr.bf16.mxu0 0
        %753 = vmatmul.mubr.bf16.gmra.mxu0 %v714
        %v754 = vpop.f32.mrf.mxu0
        %v755 = vadd.f32 0.0, %v754
        %v756 = vpop.f32.mrf.mxu0
        %v757 = vpop.f32.mrf.mxu0
        %v758 = vadd.f32 0.0, %v757
        %v759 = vpop.f32.mrf.mxu0
        %760 = vdwg.mxu0
        %v763 = vunpack.c.l.b16 %v699
        %v764 = vunpack.c.l.b16 %v700
        %v765 = vpack.c.b16 %v764, %v763
        %v767 = vsel %vm712, %v765, 0
        %v770 = vsel %vm716, %v698, 0
        %772 = vmatprep.subr.bf16.mxu0 0
        %773 = vmatpush1.bf16.msra.mxu0 0
        %774 = vmatprep.subr.bf16.mxu0 0
        %775 = vmatpush1.bf16.msra.mxu0 0
        %776 = vmatprep.subr.bf16.mxu0 0
        %777 = vmatpush1.bf16.msra.mxu0 0
        %778 = vmatprep.subr.bf16.mxu0 0
        %779 = vmatpush1.bf16.msra.mxu0 0
        %780 = vmatprep.subr.bf16.mxu0 0
        %781 = vmatpush1.bf16.msra.mxu0 0
        %782 = vmatprep.subr.bf16.mxu0 0
        %783 = vmatpush1.bf16.msra.mxu0 0
        %784 = vmatprep.subr.bf16.mxu0 0
        %785 = vmatpush1.bf16.msra.mxu0 0
        %786 = vmatprep.subr.bf16.mxu0 0
        %787 = vmatpush1.bf16.msra.mxu0 %v770
        %788 = vmatprep.subr.bf16.mxu0 0
        %789 = vmatpush2.bf16.msra.mxu0 0
        %790 = vmatprep.subr.bf16.mxu0 0
        %791 = vmatpush2.bf16.msra.mxu0 0
        %792 = vmatprep.subr.bf16.mxu0 0
        %793 = vmatpush2.bf16.msra.mxu0 0
        %794 = vmatprep.subr.bf16.mxu0 0
        %795 = vmatpush2.bf16.msra.mxu0 0
        %796 = vmatprep.subr.bf16.mxu0 0
        %797 = vmatpush2.bf16.msra.mxu0 0
        %798 = vmatprep.subr.bf16.mxu0 0
        %799 = vmatpush2.bf16.msra.mxu0 0
        %800 = vmatprep.subr.bf16.mxu0 0
        %801 = vmatpush2.bf16.msra.mxu0 0
        %802 = vmatprep.subr.bf16.mxu0 0
        %803 = vmatpush2.bf16.msra.mxu0 0
        %804 = vmatprep.mubr.bf16.mxu0 0
        %805 = vmatmul.mubr.bf16.gmra.mxu0 %v767
        %v806 = vpop.f32.mrf.mxu0
        %v807 = vadd.f32 %v755, %v806
        %v808 = vpop.f32.mrf.mxu0
        %v809 = vpop.f32.mrf.mxu0
        %v810 = vadd.f32 %v758, %v809
        %v811 = vpop.f32.mrf.mxu0
        %812 = vdwg.mxu0
        %s813 = scalar_lea.vmem %s4, 16
        %v814 = vld [vmem:[%s813] sm:$0xf]
        %v815 = vld [vmem:[%s813 + $0x4] sm:$0xf]
        %v818 = vunpack.c.l.b16 %v814
        %v819 = vunpack.c.l.b16 %v815
        %v820 = vpack.c.b16 %v819, %v818
        %821 = vrot.lane.b32.xlu0 %v698, 126
        %v822 = vpop.permute.xlu0 %821
        %v824 = vsel %vm712, %v820, 0
        %v827 = vsel %vm716, %v822, 0
        %829 = vmatprep.subr.bf16.mxu0 0
        %830 = vmatpush1.bf16.msra.mxu0 0
        %831 = vmatprep.subr.bf16.mxu0 0
        %832 = vmatpush1.bf16.msra.mxu0 0
        %833 = vmatprep.subr.bf16.mxu0 0
        %834 = vmatpush1.bf16.msra.mxu0 0
        %835 = vmatprep.subr.bf16.mxu0 0
        %836 = vmatpush1.bf16.msra.mxu0 0
        %837 = vmatprep.subr.bf16.mxu0 0
        %838 = vmatpush1.bf16.msra.mxu0 0
        %839 = vmatprep.subr.bf16.mxu0 0
        %840 = vmatpush1.bf16.msra.mxu0 0
        %841 = vmatprep.subr.bf16.mxu0 0
        %842 = vmatpush1.bf16.msra.mxu0 0
        %843 = vmatprep.subr.bf16.mxu0 0
        %844 = vmatpush1.bf16.msra.mxu0 %v827
        %845 = vmatprep.subr.bf16.mxu0 0
        %846 = vmatpush2.bf16.msra.mxu0 0
        %847 = vmatprep.subr.bf16.mxu0 0
        %848 = vmatpush2.bf16.msra.mxu0 0
        %849 = vmatprep.subr.bf16.mxu0 0
        %850 = vmatpush2.bf16.msra.mxu0 0
        %851 = vmatprep.subr.bf16.mxu0 0
        %852 = vmatpush2.bf16.msra.mxu0 0
        %853 = vmatprep.subr.bf16.mxu0 0
        %854 = vmatpush2.bf16.msra.mxu0 0
        %855 = vmatprep.subr.bf16.mxu0 0
        %856 = vmatpush2.bf16.msra.mxu0 0
        %857 = vmatprep.subr.bf16.mxu0 0
        %858 = vmatpush2.bf16.msra.mxu0 0
        %859 = vmatprep.subr.bf16.mxu0 0
        %860 = vmatpush2.bf16.msra.mxu0 0
        %861 = vmatprep.mubr.bf16.mxu0 0
        %862 = vmatmul.mubr.bf16.gmra.mxu0 %v824
        %v863 = vpop.f32.mrf.mxu0
        %v864 = vadd.f32 0.0, %v863
        %v865 = vpop.f32.mrf.mxu0
        %v866 = vpop.f32.mrf.mxu0
        %v867 = vadd.f32 0.0, %v866
        %v868 = vpop.f32.mrf.mxu0
        %869 = vdwg.mxu0
        %v870 = vadd.f32 %v807, %v864
        %v871 = vadd.f32 %v810, %v867
        %v872 = vld [vmem:[%s5] sm:$0xff]
        %v873 = vld [vmem:[%s5 + $0x8] sm:$0xff]
        %875 = vset.pattern.permute.xlu0 0
        %876 = vperm.xlu0 %875, %v872
        %v877 = vpop.permute.xlu0 %876
        %880 = vset.pattern.permute.xlu0 0
        %881 = vperm.xlu0 %880, %v873
        %v882 = vpop.permute.xlu0 %881
        %v884 = vadd.f32 %v870, %v877
        %v885 = vadd.f32 %v871, %v882
        %v886 = vlaneseq
        %v887 = vand.u32 %v886, 127
        %vm888 = vcmp.ge.s32.totalorder %v887, 3
        %vm889 = vcmp.lt.s32.totalorder %v887, 19
        %vm890 = vmand %vm888, %vm889
        %v891 = vsel %vm890, 1, 0
        %vm892 = vcmp.eq.s32.totalorder %v891, 1
        %v893 = vsel %vm892, %v884, 0.0
        %v894 = vsel %vm892, %v885, 0.0
        %vm895 = vcmask 179200
        %v896 = vsel %vm895, %v893, 0.0
        %v897 = vsel %vm895, %v894, 0.0
        %v898 = vadd.f32 %v896, %v897
        %899 = vadd.xlane.f32.xlu0 %v898
        %v900 = vpop.xlane.xlu0 %899
        %v901 = vrot.slane %v900, 4
        %v902 = vadd.f32 %v900, %v901
        %v903 = vrot.slane %v902, 2
        %v904 = vadd.f32 %v902, %v903
        %v905 = vrot.slane %v904, 1
        %v906 = vadd.f32 %v904, %v905
        %s907 = vtos %v906
        %v908 = vrcp.pop 256.0
        %s909 = vtos %v908
        %s910 = smul.f32 %s907, %s909
        %v911 = vmul.f32 %v893, %v893
        %v912 = vmul.f32 %v894, %v894
        %v913 = vsel %vm895, %v911, 0.0
        %v914 = vsel %vm895, %v912, 0.0
        %v915 = vadd.f32 %v913, %v914
        %916 = vadd.xlane.f32.xlu0 %v915
        %v917 = vpop.xlane.xlu0 %916
        %v918 = vrot.slane %v917, 4
        %v919 = vadd.f32 %v917, %v918
        %v920 = vrot.slane %v919, 2
        %v921 = vadd.f32 %v919, %v920
        %v922 = vrot.slane %v921, 1
        %v923 = vadd.f32 %v921, %v922
        %s924 = vtos %v923
        %v925 = vrcp.pop 256.0
        %s926 = vtos %v925
        %s927 = smul.f32 %s924, %s926
        %s928 = smul.f32 %s910, %s910
        %s929 = ssub.f32 %s927, %s928
        %s930 = smax.f32 %s929, 0.0
        %v931 = vstv %s910
        %v932 = vsub.f32 %v884, %v931
        %v933 = vsub.f32 %v885, %v931
        %s934 = sadd.f32 %s930, 1e-05
        %v935 = vstv %s934
        %v936 = vrsqrt.pop %v935
        %s937 = vtos %v936
        %v938 = vstv %s937
        %v939 = vmul.f32 %v932, %v938
        %v940 = vmul.f32 %v933, %v938
        %v941 = vld [vmem:[%s6] sm:$0xff]
        %v942 = vld [vmem:[%s6 + $0x8] sm:$0xff]
        %944 = vset.pattern.permute.xlu0 0
        %945 = vperm.xlu0 %944, %v941
        %v946 = vpop.permute.xlu0 %945
        %949 = vset.pattern.permute.xlu0 0
        %950 = vperm.xlu0 %949, %v942
        %v951 = vpop.permute.xlu0 %950
        %v953 = vmul.f32 %v939, %v946
        %v954 = vmul.f32 %v940, %v951
        %v955 = vld [vmem:[%s7] sm:$0xff]
        %v956 = vld [vmem:[%s7 + $0x8] sm:$0xff]
        %958 = vset.pattern.permute.xlu0 0
        %959 = vperm.xlu0 %958, %v955
        %v960 = vpop.permute.xlu0 %959
        %963 = vset.pattern.permute.xlu0 0
        %964 = vperm.xlu0 %963, %v956
        %v965 = vpop.permute.xlu0 %964
        %v967 = vadd.f32 %v953, %v960
        %v968 = vadd.f32 %v954, %v965
        %vm969 = vcmp.ge.f32.partialorder %v967, 0.0
        %vm970 = vcmp.ge.f32.partialorder %v968, 0.0
        %v971 = vmul.f32 %v967, 0.02
        %v972 = vmul.f32 %v968, 0.02
        %v973 = vsel %vm969, %v967, %v971
        %v974 = vsel %vm970, %v968, %v972
        %v975 = vsel %vm892, %v973, 0.0
        %v976 = vsel %vm892, %v974, 0.0
        %v977 = vpack.c.bf16 %v976, %v975
        %v978 = vld [vmem:[%s8] sm:$0xf]
        %v979 = vld [vmem:[%s8 + $0x4] sm:$0xf]
        %s980 = scalar_lea.vmem %s8, 8
        %v981 = vld [vmem:[%s980] sm:$0xf]
        %v982 = vld [vmem:[%s980 + $0x4] sm:$0xf]
        %v985 = vunpack.c.l.b16 %v981
        %v986 = vunpack.c.l.b16 %v982
        %v987 = vpack.c.b16 %v986, %v985
        %989 = vrot.lane.b32.xlu0 %v977, 127
        %v990 = vpop.permute.xlu0 %989
        %vm992 = vcmask 130048
        %v994 = vsel %vm992, %v987, 0
        %996 = vmatprep.subr.bf16.mxu0 0
        %997 = vmatpush1.bf16.msra.mxu0 0
        %998 = vmatprep.subr.bf16.mxu0 0
        %999 = vmatpush1.bf16.msra.mxu0 0
        %1000 = vmatprep.subr.bf16.mxu0 0
        %1001 = vmatpush1.bf16.msra.mxu0 0
        %1002 = vmatprep.subr.bf16.mxu0 0
        %1003 = vmatpush1.bf16.msra.mxu0 0
        %1004 = vmatprep.subr.bf16.mxu0 0
        %1005 = vmatpush1.bf16.msra.mxu0 0
        %1006 = vmatprep.subr.bf16.mxu0 0
        %1007 = vmatpush1.bf16.msra.mxu0 0
        %1008 = vmatprep.subr.bf16.mxu0 0
        %1009 = vmatpush1.bf16.msra.mxu0 0
        %1010 = vmatprep.subr.bf16.mxu0 0
        %1011 = vmatpush1.bf16.msra.mxu0 %v990
        %1012 = vmatprep.subr.bf16.mxu0 0
        %1013 = vmatpush2.bf16.msra.mxu0 0
        %1014 = vmatprep.subr.bf16.mxu0 0
        %1015 = vmatpush2.bf16.msra.mxu0 0
        %1016 = vmatprep.subr.bf16.mxu0 0
        %1017 = vmatpush2.bf16.msra.mxu0 0
        %1018 = vmatprep.subr.bf16.mxu0 0
        %1019 = vmatpush2.bf16.msra.mxu0 0
        %1020 = vmatprep.subr.bf16.mxu0 0
        %1021 = vmatpush2.bf16.msra.mxu0 0
        %1022 = vmatprep.subr.bf16.mxu0 0
        %1023 = vmatpush2.bf16.msra.mxu0 0
        %1024 = vmatprep.subr.bf16.mxu0 0
        %1025 = vmatpush2.bf16.msra.mxu0 0
        %1026 = vmatprep.subr.bf16.mxu0 0
        %1027 = vmatpush2.bf16.msra.mxu0 0
        %1028 = vmatprep.mubr.bf16.mxu0 0
        %1029 = vmatmul.mubr.bf16.gmra.mxu0 %v994
        %v1030 = vpop.f32.mrf.mxu0
        %v1031 = vadd.f32 0.0, %v1030
        %v1032 = vpop.f32.mrf.mxu0
        %v1033 = vpop.f32.mrf.mxu0
        %v1034 = vadd.f32 0.0, %v1033
        %v1035 = vpop.f32.mrf.mxu0
        %1036 = vdwg.mxu0
        %v1039 = vunpack.c.l.b16 %v978
        %v1040 = vunpack.c.l.b16 %v979
        %v1041 = vpack.c.b16 %v1040, %v1039
        %v1043 = vsel %vm992, %v1041, 0
        %1045 = vmatprep.subr.bf16.mxu0 0
        %1046 = vmatpush1.bf16.msra.mxu0 0
        %1047 = vmatprep.subr.bf16.mxu0 0
        %1048 = vmatpush1.bf16.msra.mxu0 0
        %1049 = vmatprep.subr.bf16.mxu0 0
        %1050 = vmatpush1.bf16.msra.mxu0 0
        %1051 = vmatprep.subr.bf16.mxu0 0
        %1052 = vmatpush1.bf16.msra.mxu0 0
        %1053 = vmatprep.subr.bf16.mxu0 0
        %1054 = vmatpush1.bf16.msra.mxu0 0
        %1055 = vmatprep.subr.bf16.mxu0 0
        %1056 = vmatpush1.bf16.msra.mxu0 0
        %1057 = vmatprep.subr.bf16.mxu0 0
        %1058 = vmatpush1.bf16.msra.mxu0 0
        %1059 = vmatprep.subr.bf16.mxu0 0
        %1060 = vmatpush1.bf16.msra.mxu0 %v977
        %1061 = vmatprep.subr.bf16.mxu0 0
        %1062 = vmatpush2.bf16.msra.mxu0 0
        %1063 = vmatprep.subr.bf16.mxu0 0
        %1064 = vmatpush2.bf16.msra.mxu0 0
        %1065 = vmatprep.subr.bf16.mxu0 0
        %1066 = vmatpush2.bf16.msra.mxu0 0
        %1067 = vmatprep.subr.bf16.mxu0 0
        %1068 = vmatpush2.bf16.msra.mxu0 0
        %1069 = vmatprep.subr.bf16.mxu0 0
        %1070 = vmatpush2.bf16.msra.mxu0 0
        %1071 = vmatprep.subr.bf16.mxu0 0
        %1072 = vmatpush2.bf16.msra.mxu0 0
        %1073 = vmatprep.subr.bf16.mxu0 0
        %1074 = vmatpush2.bf16.msra.mxu0 0
        %1075 = vmatprep.subr.bf16.mxu0 0
        %1076 = vmatpush2.bf16.msra.mxu0 0
        %1077 = vmatprep.mubr.bf16.mxu0 0
        %1078 = vmatmul.mubr.bf16.gmra.mxu0 %v1043
        %v1079 = vpop.f32.mrf.mxu0
        %v1080 = vadd.f32 %v1031, %v1079
        %v1081 = vpop.f32.mrf.mxu0
        %v1082 = vpop.f32.mrf.mxu0
        %v1083 = vadd.f32 %v1034, %v1082
        %v1084 = vpop.f32.mrf.mxu0
        %1085 = vdwg.mxu0
        %s1086 = scalar_lea.vmem %s8, 16
        %v1087 = vld [vmem:[%s1086] sm:$0xf]
        %v1088 = vld [vmem:[%s1086 + $0x4] sm:$0xf]
        %v1091 = vunpack.c.l.b16 %v1087
        %v1092 = vunpack.c.l.b16 %v1088
        %v1093 = vpack.c.b16 %v1092, %v1091
        %1094 = vrot.lane.b32.xlu0 %v977, 126
        %v1095 = vpop.permute.xlu0 %1094
        %v1098 = vsel %vm992, %v1093, 0
        %1100 = vmatprep.subr.bf16.mxu0 0
        %1101 = vmatpush1.bf16.msra.mxu0 0
        %1102 = vmatprep.subr.bf16.mxu0 0
        %1103 = vmatpush1.bf16.msra.mxu0 0
        %1104 = vmatprep.subr.bf16.mxu0 0
        %1105 = vmatpush1.bf16.msra.mxu0 0
        %1106 = vmatprep.subr.bf16.mxu0 0
        %1107 = vmatpush1.bf16.msra.mxu0 0
        %1108 = vmatprep.subr.bf16.mxu0 0
        %1109 = vmatpush1.bf16.msra.mxu0 0
        %1110 = vmatprep.subr.bf16.mxu0 0
        %1111 = vmatpush1.bf16.msra.mxu0 0
        %1112 = vmatprep.subr.bf16.mxu0 0
        %1113 = vmatpush1.bf16.msra.mxu0 0
        %1114 = vmatprep.subr.bf16.mxu0 0
        %1115 = vmatpush1.bf16.msra.mxu0 %v1095
        %1116 = vmatprep.subr.bf16.mxu0 0
        %1117 = vmatpush2.bf16.msra.mxu0 0
        %1118 = vmatprep.subr.bf16.mxu0 0
        %1119 = vmatpush2.bf16.msra.mxu0 0
        %1120 = vmatprep.subr.bf16.mxu0 0
        %1121 = vmatpush2.bf16.msra.mxu0 0
        %1122 = vmatprep.subr.bf16.mxu0 0
        %1123 = vmatpush2.bf16.msra.mxu0 0
        %1124 = vmatprep.subr.bf16.mxu0 0
        %1125 = vmatpush2.bf16.msra.mxu0 0
        %1126 = vmatprep.subr.bf16.mxu0 0
        %1127 = vmatpush2.bf16.msra.mxu0 0
        %1128 = vmatprep.subr.bf16.mxu0 0
        %1129 = vmatpush2.bf16.msra.mxu0 0
        %1130 = vmatprep.subr.bf16.mxu0 0
        %1131 = vmatpush2.bf16.msra.mxu0 0
        %1132 = vmatprep.mubr.bf16.mxu0 0
        %1133 = vmatmul.mubr.bf16.gmra.mxu0 %v1098
        %v1134 = vpop.f32.mrf.mxu0
        %v1135 = vadd.f32 0.0, %v1134
        %v1136 = vpop.f32.mrf.mxu0
        %v1137 = vpop.f32.mrf.mxu0
        %v1138 = vadd.f32 0.0, %v1137
        %v1139 = vpop.f32.mrf.mxu0
        %1140 = vdwg.mxu0
        %v1141 = vadd.f32 %v1080, %v1135
        %v1142 = vadd.f32 %v1083, %v1138
        %v1143 = vld [vmem:[%s9] sm:$0xff]
        %v1144 = vld [vmem:[%s9 + $0x8] sm:$0xff]
        %1146 = vset.pattern.permute.xlu0 0
        %1147 = vperm.xlu0 %1146, %v1143
        %v1148 = vpop.permute.xlu0 %1147
        %1151 = vset.pattern.permute.xlu0 0
        %1152 = vperm.xlu0 %1151, %v1144
        %v1153 = vpop.permute.xlu0 %1152
        %v1155 = vadd.f32 %v1141, %v1148
        %v1156 = vadd.f32 %v1142, %v1153
        %vm1157 = vcmp.ge.s32.totalorder %v887, 2
        %vm1158 = vcmp.lt.s32.totalorder %v887, 18
        %vm1159 = vmand %vm1157, %vm1158
        %v1160 = vsel %vm1159, 1, 0
        %vm1161 = vcmp.eq.s32.totalorder %v1160, 1
        %v1162 = vsel %vm1161, %v1155, 0.0
        %v1163 = vsel %vm1161, %v1156, 0.0
        %vm1164 = vcmask 162816
        %v1165 = vsel %vm1164, %v1162, 0.0
        %v1166 = vsel %vm1164, %v1163, 0.0
        %v1167 = vadd.f32 %v1165, %v1166
        %1168 = vadd.xlane.f32.xlu0 %v1167
        %v1169 = vpop.xlane.xlu0 %1168
        %v1170 = vrot.slane %v1169, 4
        %v1171 = vadd.f32 %v1169, %v1170
        %v1172 = vrot.slane %v1171, 2
        %v1173 = vadd.f32 %v1171, %v1172
        %v1174 = vrot.slane %v1173, 1
        %v1175 = vadd.f32 %v1173, %v1174
        %s1176 = vtos %v1175
        %v1177 = vrcp.pop 256.0
        %s1178 = vtos %v1177
        %s1179 = smul.f32 %s1176, %s1178
        %v1180 = vmul.f32 %v1162, %v1162
        %v1181 = vmul.f32 %v1163, %v1163
        %v1182 = vsel %vm1164, %v1180, 0.0
        %v1183 = vsel %vm1164, %v1181, 0.0
        %v1184 = vadd.f32 %v1182, %v1183
        %1185 = vadd.xlane.f32.xlu0 %v1184
        %v1186 = vpop.xlane.xlu0 %1185
        %v1187 = vrot.slane %v1186, 4
        %v1188 = vadd.f32 %v1186, %v1187
        %v1189 = vrot.slane %v1188, 2
        %v1190 = vadd.f32 %v1188, %v1189
        %v1191 = vrot.slane %v1190, 1
        %v1192 = vadd.f32 %v1190, %v1191
        %s1193 = vtos %v1192
        %v1194 = vrcp.pop 256.0
        %s1195 = vtos %v1194
        %s1196 = smul.f32 %s1193, %s1195
        %s1197 = smul.f32 %s1179, %s1179
        %s1198 = ssub.f32 %s1196, %s1197
        %s1199 = smax.f32 %s1198, 0.0
        %v1200 = vstv %s1179
        %v1201 = vsub.f32 %v1155, %v1200
        %v1202 = vsub.f32 %v1156, %v1200
        %s1203 = sadd.f32 %s1199, 1e-05
        %v1204 = vstv %s1203
        %v1205 = vrsqrt.pop %v1204
        %s1206 = vtos %v1205
        %v1207 = vstv %s1206
        %v1208 = vmul.f32 %v1201, %v1207
        %v1209 = vmul.f32 %v1202, %v1207
        %v1210 = vld [vmem:[%s10] sm:$0xff]
        %v1211 = vld [vmem:[%s10 + $0x8] sm:$0xff]
        %1213 = vset.pattern.permute.xlu0 0
        %1214 = vperm.xlu0 %1213, %v1210
        %v1215 = vpop.permute.xlu0 %1214
        %1218 = vset.pattern.permute.xlu0 0
        %1219 = vperm.xlu0 %1218, %v1211
        %v1220 = vpop.permute.xlu0 %1219
        %v1222 = vmul.f32 %v1208, %v1215
        %v1223 = vmul.f32 %v1209, %v1220
        %v1224 = vld [vmem:[%s11] sm:$0xff]
        %v1225 = vld [vmem:[%s11 + $0x8] sm:$0xff]
        %1227 = vset.pattern.permute.xlu0 0
        %1228 = vperm.xlu0 %1227, %v1224
        %v1229 = vpop.permute.xlu0 %1228
        %1232 = vset.pattern.permute.xlu0 0
        %1233 = vperm.xlu0 %1232, %v1225
        %v1234 = vpop.permute.xlu0 %1233
        %v1236 = vadd.f32 %v1222, %v1229
        %v1237 = vadd.f32 %v1223, %v1234
        %vm1238 = vcmp.ge.f32.partialorder %v1236, 0.0
        %vm1239 = vcmp.ge.f32.partialorder %v1237, 0.0
        %v1240 = vmul.f32 %v1236, 0.02
        %v1241 = vmul.f32 %v1237, 0.02
        %v1242 = vsel %vm1238, %v1236, %v1240
        %v1243 = vsel %vm1239, %v1237, %v1241
        %v1244 = vsel %vm1161, %v1242, 0.0
        %v1245 = vsel %vm1161, %v1243, 0.0
        %v1246 = vpack.c.bf16 %v1245, %v1244
        %v1247 = vld [vmem:[%s12] sm:$0xf]
        %v1248 = vld [vmem:[%s13] sm:$0xff]
        %1250 = vset.pattern.permute.xlu0 0
        %1251 = vperm.xlu0 %1250, %v1248
        %v1252 = vpop.permute.xlu0 %1251
        %v1255 = vsel %vm992, %v1247, 0
        %1257 = vmatprep.subr.bf16.mxu0 0
        %1258 = vmatpush1.bf16.msra.mxu0 0
        %1259 = vmatprep.subr.bf16.mxu0 0
        %1260 = vmatpush1.bf16.msra.mxu0 0
        %1261 = vmatprep.subr.bf16.mxu0 0
        %1262 = vmatpush1.bf16.msra.mxu0 0
        %1263 = vmatprep.subr.bf16.mxu0 0
        %1264 = vmatpush1.bf16.msra.mxu0 0
        %1265 = vmatprep.subr.bf16.mxu0 0
        %1266 = vmatpush1.bf16.msra.mxu0 0
        %1267 = vmatprep.subr.bf16.mxu0 0
        %1268 = vmatpush1.bf16.msra.mxu0 0
        %1269 = vmatprep.subr.bf16.mxu0 0
        %1270 = vmatpush1.bf16.msra.mxu0 0
        %1271 = vmatprep.subr.bf16.mxu0 0
        %1272 = vmatpush1.bf16.msra.mxu0 %v1246
        %1273 = vmatprep.subr.bf16.mxu0 0
        %1274 = vmatpush2.bf16.msra.mxu0 0
        %1275 = vmatprep.subr.bf16.mxu0 0
        %1276 = vmatpush2.bf16.msra.mxu0 0
        %1277 = vmatprep.subr.bf16.mxu0 0
        %1278 = vmatpush2.bf16.msra.mxu0 0
        %1279 = vmatprep.subr.bf16.mxu0 0
        %1280 = vmatpush2.bf16.msra.mxu0 0
        %1281 = vmatprep.subr.bf16.mxu0 0
        %1282 = vmatpush2.bf16.msra.mxu0 0
        %1283 = vmatprep.subr.bf16.mxu0 0
        %1284 = vmatpush2.bf16.msra.mxu0 0
        %1285 = vmatprep.subr.bf16.mxu0 0
        %1286 = vmatpush2.bf16.msra.mxu0 0
        %1287 = vmatprep.subr.bf16.mxu0 0
        %1288 = vmatpush2.bf16.msra.mxu0 0
        %1289 = vmatprep.mubr.bf16.mxu0 0
        %1290 = vmatmul.mubr.bf16.gmra.mxu0 %v1255
        %v1291 = vpop.f32.mrf.mxu0
        %v1292 = vadd.f32 %v1252, %v1291
        %v1293 = vpop.f32.mrf.mxu0
        %v1294 = vpop.f32.mrf.mxu0
        %v1295 = vpop.f32.mrf.mxu0
        %1296 = vdwg.mxu0
        %v1297 = vsel %vm1161, %v1292, 0.0
        %v1298 = vld [vmem:[%s2] sm:$0xff]
        %v1299 = vld [vmem:[%s2 + $0x8] sm:$0xff]
        %vm1300 = vcmask 64512
        %v1302 = vsel %vm1300, %v1298, 0
        %v1305 = vsel %vm1300, %v1299, 0
        %1307 = vmatprep.subr.mxu0 0.0
        %1308 = vmatpush1.msra.mxu0 0.0
        %1309 = vmatprep.subr.mxu0 0.0
        %1310 = vmatpush1.msra.mxu0 0.0
        %1311 = vmatprep.subr.mxu0 0.0
        %1312 = vmatpush1.msra.mxu0 0.0
        %1313 = vmatprep.subr.mxu0 0.0
        %1314 = vmatpush1.msra.mxu0 0.0
        %1315 = vmatprep.subr.mxu0 0.0
        %1316 = vmatpush1.msra.mxu0 0.0
        %1317 = vmatprep.subr.mxu0 0.0
        %1318 = vmatpush1.msra.mxu0 0.0
        %1319 = vmatprep.subr.mxu0 0.0
        %1320 = vmatpush1.msra.mxu0 0.0
        %1321 = vmatprep.subr.mxu0 0.0
        %1322 = vmatpush1.msra.mxu0 0.0
        %1323 = vmatprep.subr.mxu0 0.0
        %1324 = vmatpush1.msra.mxu0 0.0
        %1325 = vmatprep.subr.mxu0 0.0
        %1326 = vmatpush1.msra.mxu0 0.0
        %1327 = vmatprep.subr.mxu0 0.0
        %1328 = vmatpush1.msra.mxu0 0.0
        %1329 = vmatprep.subr.mxu0 0.0
        %1330 = vmatpush1.msra.mxu0 0.0
        %1331 = vmatprep.subr.mxu0 0.0
        %1332 = vmatpush1.msra.mxu0 0.0
        %1333 = vmatprep.subr.mxu0 0.0
        %1334 = vmatpush1.msra.mxu0 0.0
        %1335 = vmatprep.subr.mxu0 0.0
        %1336 = vmatpush1.msra.mxu0 0.0
        %1337 = vmatprep.subr.mxu0 0.0
        %1338 = vmatpush1.msra.mxu0 %v1297
        %1339 = vmatprep.subr.mxu0 0.0
        %1340 = vmatpush2.msra.mxu0 0.0
        %1341 = vmatprep.subr.mxu0 0.0
        %1342 = vmatpush2.msra.mxu0 0.0
        %1343 = vmatprep.subr.mxu0 0.0
        %1344 = vmatpush2.msra.mxu0 0.0
        %1345 = vmatprep.subr.mxu0 0.0
        %1346 = vmatpush2.msra.mxu0 0.0
        %1347 = vmatprep.subr.mxu0 0.0
        %1348 = vmatpush2.msra.mxu0 0.0
        %1349 = vmatprep.subr.mxu0 0.0
        %1350 = vmatpush2.msra.mxu0 0.0
        %1351 = vmatprep.subr.mxu0 0.0
        %1352 = vmatpush2.msra.mxu0 0.0
        %1353 = vmatprep.subr.mxu0 0.0
        %1354 = vmatpush2.msra.mxu0 0.0
        %1355 = vmatprep.subr.mxu0 0.0
        %1356 = vmatpush2.msra.mxu0 0.0
        %1357 = vmatprep.subr.mxu0 0.0
        %1358 = vmatpush2.msra.mxu0 0.0
        %1359 = vmatprep.subr.mxu0 0.0
        %1360 = vmatpush2.msra.mxu0 0.0
        %1361 = vmatprep.subr.mxu0 0.0
        %1362 = vmatpush2.msra.mxu0 0.0
        %1363 = vmatprep.subr.mxu0 0.0
        %1364 = vmatpush2.msra.mxu0 0.0
        %1365 = vmatprep.subr.mxu0 0.0
        %1366 = vmatpush2.msra.mxu0 0.0
        %1367 = vmatprep.subr.mxu0 0.0
        %1368 = vmatpush2.msra.mxu0 0.0
        %1369 = vmatprep.subr.mxu0 0.0
        %1370 = vmatpush2.msra.mxu0 0.0
        %1371 = vmatprep.mubr.f32.mxu0 0.0
        %1372 = vmatmul.mubr.f32.gmra.mxu0 %v1302
        %v1373 = vpop.f32.mrf.mxu0
        %v1374 = vadd.f32 0.0, %v1373
        %v1375 = vpop.f32.mrf.mxu0
        %1376 = vmatprep.mubr.f32.mxu0 0.0
        %1377 = vmatmul.mubr.f32.gmra.mxu0 %v1305
        %v1378 = vpop.f32.mrf.mxu0
        %v1379 = vadd.f32 0.0, %v1378
        %v1380 = vpop.f32.mrf.mxu0
        %1381 = vdwg.mxu0
        %v1382 = vld [vmem:[%s3] sm:$0xff]
        %v1383 = vld [vmem:[%s3 + $0x8] sm:$0xff]
        %v1384 = vmul.f32 %v1374, 2.0
        %v1385 = vmul.f32 %v1379, 2.0
        %1387 = vset.pattern.permute.xlu0 0
        %1388 = vperm.xlu0 %1387, %v1382
        %v1389 = vpop.permute.xlu0 %1388
        %1392 = vset.pattern.permute.xlu0 0
        %1393 = vperm.xlu0 %1392, %v1383
        %v1394 = vpop.permute.xlu0 %1393
        %v1396 = vsub.f32 %v1389, %v1384
        %v1397 = vsub.f32 %v1394, %v1385
        %v1398 = vlaneseq
        %v1399 = vshrl.u32 %v1398, 7
        %v1400 = vadd.s32 %v1399, 8
        %v1401 = vsel %vm1164, %v1396, inf
        %v1402 = vsel %vm1164, %v1397, inf
        %v1403 = vmin.f32 %v1401, %v1402
        %v1404 = vrot.slane %v1403, 4
        %v1405 = vmin.f32 %v1403, %v1404
        %v1406 = vrot.slane %v1405, 2
        %v1407 = vmin.f32 %v1405, %v1406
        %v1408 = vrot.slane %v1407, 1
        %v1409 = vmin.f32 %v1407, %v1408
        %vm1410 = vcmp.eq.f32.partialorder %v1396, %v1409
        %vm1411 = vcmp.eq.f32.partialorder %v1397, %v1409
        %v1412 = vsel %vm1410, %v1399, 16
        %v1413 = vsel %vm1411, %v1400, 16
        %v1414 = vsel %vm1164, %v1412, 2147483647
        %v1415 = vsel %vm1164, %v1413, 2147483647
        %vm1416 = vcmp.lt.s32.totalorder %v1414, %v1415
        %v1417 = vsel %vm1416, %v1414, %v1415
        %v1418 = vrot.slane %v1417, 4
        %vm1419 = vcmp.lt.s32.totalorder %v1417, %v1418
        %v1420 = vsel %vm1419, %v1417, %v1418
        %v1421 = vrot.slane %v1420, 2
        %vm1422 = vcmp.lt.s32.totalorder %v1420, %v1421
        %v1423 = vsel %vm1422, %v1420, %v1421
        %v1424 = vrot.slane %v1423, 1
        %vm1425 = vcmp.lt.s32.totalorder %v1423, %v1424
        %v1426 = vsel %vm1425, %v1423, %v1424
        %vm1427 = vcmp.eq.s32.totalorder %v1399, %v1426
        %vm1428 = vcmp.eq.s32.totalorder %v1400, %v1426
        %v1429 = vsel %vm1427, 1, 0
        %v1430 = vsel %vm1428, 1, 0
        %v1431 = vcvt.s32.f32 %v1429
        %v1432 = vcvt.s32.f32 %v1430
        %1433 = vxpose.xlu0.b32.start [1/16] %v1298, 128
        %1434 = vxpose.xlu0.b32.cont [2/16] %v1299, 128
        %1435 = vxpose.xlu0.b32.cont [3/16] 0.0, 128
        %1436 = vxpose.xlu0.b32.cont [4/16] 0.0, 128
        %1437 = vxpose.xlu0.b32.cont [5/16] 0.0, 128
        %1438 = vxpose.xlu0.b32.cont [6/16] 0.0, 128
        %1439 = vxpose.xlu0.b32.cont [7/16] 0.0, 128
        %1440 = vxpose.xlu0.b32.cont [8/16] 0.0, 128
        %1441 = vxpose.xlu0.b32.cont [9/16] 0.0, 128
        %1442 = vxpose.xlu0.b32.cont [10/16] 0.0, 128
        %1443 = vxpose.xlu0.b32.cont [11/16] 0.0, 128
        %1444 = vxpose.xlu0.b32.cont [12/16] 0.0, 128
        %1445 = vxpose.xlu0.b32.cont [13/16] 0.0, 128
        %1446 = vxpose.xlu0.b32.cont [14/16] 0.0, 128
        %1447 = vxpose.xlu0.b32.cont [15/16] 0.0, 128
        %1448 = vxpose.xlu0.b32.end [16/16] 0.0, 128
        %v1449 = vpop.trf.xlu0
        %v1450 = vpop.trf.xlu0
        %v1451 = vpop.trf.xlu0
        %v1452 = vpop.trf.xlu0
        %v1453 = vpop.trf.xlu0
        %v1454 = vpop.trf.xlu0
        %v1455 = vpop.trf.xlu0
        %v1456 = vpop.trf.xlu0
        %v1457 = vpop.trf.xlu0
        %v1458 = vpop.trf.xlu0
        %v1459 = vpop.trf.xlu0
        %v1460 = vpop.trf.xlu0
        %v1461 = vpop.trf.xlu0
        %v1462 = vpop.trf.xlu0
        %v1463 = vpop.trf.xlu0
        %v1464 = vpop.trf.xlu0
        %v1466 = vsel %vm992, %v1449, 0
        %1468 = vmatprep.subr.mxu0 0.0
        %1469 = vmatpush1.msra.mxu0 0.0
        %1470 = vmatprep.subr.mxu0 0.0
        %1471 = vmatpush1.msra.mxu0 0.0
        %1472 = vmatprep.subr.mxu0 0.0
        %1473 = vmatpush1.msra.mxu0 0.0
        %1474 = vmatprep.subr.mxu0 0.0
        %1475 = vmatpush1.msra.mxu0 0.0
        %1476 = vmatprep.subr.mxu0 0.0
        %1477 = vmatpush1.msra.mxu0 0.0
        %1478 = vmatprep.subr.mxu0 0.0
        %1479 = vmatpush1.msra.mxu0 0.0
        %1480 = vmatprep.subr.mxu0 0.0
        %1481 = vmatpush1.msra.mxu0 0.0
        %1482 = vmatprep.subr.mxu0 0.0
        %1483 = vmatpush1.msra.mxu0 0.0
        %1484 = vmatprep.subr.mxu0 0.0
        %1485 = vmatpush1.msra.mxu0 0.0
        %1486 = vmatprep.subr.mxu0 0.0
        %1487 = vmatpush1.msra.mxu0 0.0
        %1488 = vmatprep.subr.mxu0 0.0
        %1489 = vmatpush1.msra.mxu0 0.0
        %1490 = vmatprep.subr.mxu0 0.0
        %1491 = vmatpush1.msra.mxu0 0.0
        %1492 = vmatprep.subr.mxu0 0.0
        %1493 = vmatpush1.msra.mxu0 0.0
        %1494 = vmatprep.subr.mxu0 0.0
        %1495 = vmatpush1.msra.mxu0 0.0
        %1496 = vmatprep.subr.mxu0 0.0
        %1497 = vmatpush1.msra.mxu0 %v1432
        %1498 = vmatprep.subr.mxu0 0.0
        %1499 = vmatpush1.msra.mxu0 %v1431
        %1500 = vmatprep.subr.mxu0 0.0
        %1501 = vmatpush2.msra.mxu0 0.0
        %1502 = vmatprep.subr.mxu0 0.0
        %1503 = vmatpush2.msra.mxu0 0.0
        %1504 = vmatprep.subr.mxu0 0.0
        %1505 = vmatpush2.msra.mxu0 0.0
        %1506 = vmatprep.subr.mxu0 0.0
        %1507 = vmatpush2.msra.mxu0 0.0
        %1508 = vmatprep.subr.mxu0 0.0
        %1509 = vmatpush2.msra.mxu0 0.0
        %1510 = vmatprep.subr.mxu0 0.0
        %1511 = vmatpush2.msra.mxu0 0.0
        %1512 = vmatprep.subr.mxu0 0.0
        %1513 = vmatpush2.msra.mxu0 0.0
        %1514 = vmatprep.subr.mxu0 0.0
        %1515 = vmatpush2.msra.mxu0 0.0
        %1516 = vmatprep.subr.mxu0 0.0
        %1517 = vmatpush2.msra.mxu0 0.0
        %1518 = vmatprep.subr.mxu0 0.0
        %1519 = vmatpush2.msra.mxu0 0.0
        %1520 = vmatprep.subr.mxu0 0.0
        %1521 = vmatpush2.msra.mxu0 0.0
        %1522 = vmatprep.subr.mxu0 0.0
        %1523 = vmatpush2.msra.mxu0 0.0
        %1524 = vmatprep.subr.mxu0 0.0
        %1525 = vmatpush2.msra.mxu0 0.0
        %1526 = vmatprep.subr.mxu0 0.0
        %1527 = vmatpush2.msra.mxu0 0.0
        %1528 = vmatprep.subr.mxu0 0.0
        %1529 = vmatpush2.msra.mxu0 0.0
        %1530 = vmatprep.subr.mxu0 0.0
        %1531 = vmatpush2.msra.mxu0 0.0
        %1532 = vmatprep.mubr.f32.mxu0 0.0
        %1533 = vmatmul.mubr.f32.gmra.mxu0 %v1466
        %v1534 = vpop.f32.mrf.mxu0
        %v1535 = vadd.f32 0.0, %v1534
        %v1536 = vpop.f32.mrf.mxu0
        %1537 = vdwg.mxu0
        %v1538 = vsel %vm1161, %v1535, 0.0
        %v1539 = vld [vmem:[%s695] sm:$0xf]
        %1541 = vset.pattern.permute.xlu0 0
        %1542 = vperm.xlu0 %1541, %v1539
        %v1543 = vpop.permute.xlu0 %1542
        %v1545 = vsel %vm1161, %v1543, 0.0
        %v1546 = vpack.c.bf16 %v1538, %v1538
        %v1547 = vld [vmem:[%s14] sm:$0xf]
        %v1548 = vld [vmem:[%s14 + $0x4] sm:$0xf]
        %v1549 = vld [vmem:[%s14 + $0x8] sm:$0xf]
        %v1550 = vld [vmem:[%s14 + $0xc] sm:$0xf]
        %s1551 = scalar_lea.vmem %s14, 16
        %v1552 = vld [vmem:[%s1551] sm:$0xf]
        %v1553 = vld [vmem:[%s1551 + $0x4] sm:$0xf]
        %v1554 = vld [vmem:[%s1551 + $0x8] sm:$0xf]
        %v1555 = vld [vmem:[%s1551 + $0xc] sm:$0xf]
        %v1560 = vunpack.c.l.b16 %v1552
        %v1561 = vunpack.c.l.b16 %v1553
        %v1562 = vunpack.c.l.b16 %v1554
        %v1563 = vunpack.c.l.b16 %v1555
        %v1564 = vpack.c.b16 %v1561, %v1560
        %v1565 = vpack.c.b16 %v1563, %v1562
        %1567 = vrot.lane.b32.xlu0 %v1546, 127
        %v1568 = vpop.permute.xlu0 %1567
        %v1570 = vsel %vm1300, %v1564, 0
        %v1573 = vsel %vm1300, %v1565, 0
        %vm1575 = vcmask 1043456
        %v1577 = vsel %vm1575, %v1568, 0
        %1579 = vmatprep.subr.bf16.mxu0 0
        %1580 = vmatpush1.bf16.msra.mxu0 0
        %1581 = vmatprep.subr.bf16.mxu0 0
        %1582 = vmatpush1.bf16.msra.mxu0 0
        %1583 = vmatprep.subr.bf16.mxu0 0
        %1584 = vmatpush1.bf16.msra.mxu0 0
        %1585 = vmatprep.subr.bf16.mxu0 0
        %1586 = vmatpush1.bf16.msra.mxu0 0
        %1587 = vmatprep.subr.bf16.mxu0 0
        %1588 = vmatpush1.bf16.msra.mxu0 0
        %1589 = vmatprep.subr.bf16.mxu0 0
        %1590 = vmatpush1.bf16.msra.mxu0 0
        %1591 = vmatprep.subr.bf16.mxu0 0
        %1592 = vmatpush1.bf16.msra.mxu0 0
        %1593 = vmatprep.subr.bf16.mxu0 0
        %1594 = vmatpush1.bf16.msra.mxu0 %v1577
        %1595 = vmatprep.subr.bf16.mxu0 0
        %1596 = vmatpush2.bf16.msra.mxu0 0
        %1597 = vmatprep.subr.bf16.mxu0 0
        %1598 = vmatpush2.bf16.msra.mxu0 0
        %1599 = vmatprep.subr.bf16.mxu0 0
        %1600 = vmatpush2.bf16.msra.mxu0 0
        %1601 = vmatprep.subr.bf16.mxu0 0
        %1602 = vmatpush2.bf16.msra.mxu0 0
        %1603 = vmatprep.subr.bf16.mxu0 0
        %1604 = vmatpush2.bf16.msra.mxu0 0
        %1605 = vmatprep.subr.bf16.mxu0 0
        %1606 = vmatpush2.bf16.msra.mxu0 0
        %1607 = vmatprep.subr.bf16.mxu0 0
        %1608 = vmatpush2.bf16.msra.mxu0 0
        %1609 = vmatprep.subr.bf16.mxu0 0
        %1610 = vmatpush2.bf16.msra.mxu0 0
        %1611 = vmatprep.mubr.bf16.mxu0 0
        %1612 = vmatmul.mubr.bf16.gmra.mxu0 %v1570
        %v1613 = vpop.f32.mrf.mxu0
        %v1614 = vadd.f32 0.0, %v1613
        %v1615 = vpop.f32.mrf.mxu0
        %v1616 = vpop.f32.mrf.mxu0
        %v1617 = vadd.f32 0.0, %v1616
        %v1618 = vpop.f32.mrf.mxu0
        %1619 = vmatprep.mubr.bf16.mxu0 0
        %1620 = vmatmul.mubr.bf16.gmra.mxu0 %v1573
        %v1621 = vpop.f32.mrf.mxu0
        %v1622 = vadd.f32 0.0, %v1621
        %v1623 = vpop.f32.mrf.mxu0
        %v1624 = vpop.f32.mrf.mxu0
        %v1625 = vadd.f32 0.0, %v1624
        %v1626 = vpop.f32.mrf.mxu0
        %1627 = vdwg.mxu0
        %v1632 = vunpack.c.l.b16 %v1547
        %v1633 = vunpack.c.l.b16 %v1548
        %v1634 = vunpack.c.l.b16 %v1549
        %v1635 = vunpack.c.l.b16 %v1550
        %v1636 = vpack.c.b16 %v1633, %v1632
        %v1637 = vpack.c.b16 %v1635, %v1634
        %v1639 = vsel %vm1300, %v1636, 0
        %v1642 = vsel %vm1300, %v1637, 0
        %v1645 = vsel %vm1575, %v1546, 0
        %1647 = vmatprep.subr.bf16.mxu0 0
        %1648 = vmatpush1.bf16.msra.mxu0 0
        %1649 = vmatprep.subr.bf16.mxu0 0
        %1650 = vmatpush1.bf16.msra.mxu0 0
        %1651 = vmatprep.subr.bf16.mxu0 0
        %1652 = vmatpush1.bf16.msra.mxu0 0
        %1653 = vmatprep.subr.bf16.mxu0 0
        %1654 = vmatpush1.bf16.msra.mxu0 0
        %1655 = vmatprep.subr.bf16.mxu0 0
        %1656 = vmatpush1.bf16.msra.mxu0 0
        %1657 = vmatprep.subr.bf16.mxu0 0
        %1658 = vmatpush1.bf16.msra.mxu0 0
        %1659 = vmatprep.subr.bf16.mxu0 0
        %1660 = vmatpush1.bf16.msra.mxu0 0
        %1661 = vmatprep.subr.bf16.mxu0 0
        %1662 = vmatpush1.bf16.msra.mxu0 %v1645
        %1663 = vmatprep.subr.bf16.mxu0 0
        %1664 = vmatpush2.bf16.msra.mxu0 0
        %1665 = vmatprep.subr.bf16.mxu0 0
        %1666 = vmatpush2.bf16.msra.mxu0 0
        %1667 = vmatprep.subr.bf16.mxu0 0
        %1668 = vmatpush2.bf16.msra.mxu0 0
        %1669 = vmatprep.subr.bf16.mxu0 0
        %1670 = vmatpush2.bf16.msra.mxu0 0
        %1671 = vmatprep.subr.bf16.mxu0 0
        %1672 = vmatpush2.bf16.msra.mxu0 0
        %1673 = vmatprep.subr.bf16.mxu0 0
        %1674 = vmatpush2.bf16.msra.mxu0 0
        %1675 = vmatprep.subr.bf16.mxu0 0
        %1676 = vmatpush2.bf16.msra.mxu0 0
        %1677 = vmatprep.subr.bf16.mxu0 0
        %1678 = vmatpush2.bf16.msra.mxu0 0
        %1679 = vmatprep.mubr.bf16.mxu0 0
        %1680 = vmatmul.mubr.bf16.gmra.mxu0 %v1639
        %v1681 = vpop.f32.mrf.mxu0
        %v1682 = vadd.f32 %v1614, %v1681
        %v1683 = vpop.f32.mrf.mxu0
        %v1684 = vpop.f32.mrf.mxu0
        %v1685 = vadd.f32 %v1617, %v1684
        %v1686 = vpop.f32.mrf.mxu0
        %1687 = vmatprep.mubr.bf16.mxu0 0
        %1688 = vmatmul.mubr.bf16.gmra.mxu0 %v1642
        %v1689 = vpop.f32.mrf.mxu0
        %v1690 = vadd.f32 %v1622, %v1689
        %v1691 = vpop.f32.mrf.mxu0
        %v1692 = vpop.f32.mrf.mxu0
        %v1693 = vadd.f32 %v1625, %v1692
        %v1694 = vpop.f32.mrf.mxu0
        %1695 = vdwg.mxu0
        %s1696 = scalar_lea.vmem %s14, 32
        %v1697 = vld [vmem:[%s1696] sm:$0xf]
        %v1698 = vld [vmem:[%s1696 + $0x4] sm:$0xf]
        %v1699 = vld [vmem:[%s1696 + $0x8] sm:$0xf]
        %v1700 = vld [vmem:[%s1696 + $0xc] sm:$0xf]
        %v1705 = vunpack.c.l.b16 %v1697
        %v1706 = vunpack.c.l.b16 %v1698
        %v1707 = vunpack.c.l.b16 %v1699
        %v1708 = vunpack.c.l.b16 %v1700
        %v1709 = vpack.c.b16 %v1706, %v1705
        %v1710 = vpack.c.b16 %v1708, %v1707
        %1711 = vrot.lane.b32.xlu0 %v1546, 126
        %v1712 = vpop.permute.xlu0 %1711
        %v1714 = vsel %vm1300, %v1709, 0
        %v1717 = vsel %vm1300, %v1710, 0
        %v1720 = vsel %vm1575, %v1712, 0
        %1722 = vmatprep.subr.bf16.mxu0 0
        %1723 = vmatpush1.bf16.msra.mxu0 0
        %1724 = vmatprep.subr.bf16.mxu0 0
        %1725 = vmatpush1.bf16.msra.mxu0 0
        %1726 = vmatprep.subr.bf16.mxu0 0
        %1727 = vmatpush1.bf16.msra.mxu0 0
        %1728 = vmatprep.subr.bf16.mxu0 0
        %1729 = vmatpush1.bf16.msra.mxu0 0
        %1730 = vmatprep.subr.bf16.mxu0 0
        %1731 = vmatpush1.bf16.msra.mxu0 0
        %1732 = vmatprep.subr.bf16.mxu0 0
        %1733 = vmatpush1.bf16.msra.mxu0 0
        %1734 = vmatprep.subr.bf16.mxu0 0
        %1735 = vmatpush1.bf16.msra.mxu0 0
        %1736 = vmatprep.subr.bf16.mxu0 0
        %1737 = vmatpush1.bf16.msra.mxu0 %v1720
        %1738 = vmatprep.subr.bf16.mxu0 0
        %1739 = vmatpush2.bf16.msra.mxu0 0
        %1740 = vmatprep.subr.bf16.mxu0 0
        %1741 = vmatpush2.bf16.msra.mxu0 0
        %1742 = vmatprep.subr.bf16.mxu0 0
        %1743 = vmatpush2.bf16.msra.mxu0 0
        %1744 = vmatprep.subr.bf16.mxu0 0
        %1745 = vmatpush2.bf16.msra.mxu0 0
        %1746 = vmatprep.subr.bf16.mxu0 0
        %1747 = vmatpush2.bf16.msra.mxu0 0
        %1748 = vmatprep.subr.bf16.mxu0 0
        %1749 = vmatpush2.bf16.msra.mxu0 0
        %1750 = vmatprep.subr.bf16.mxu0 0
        %1751 = vmatpush2.bf16.msra.mxu0 0
        %1752 = vmatprep.subr.bf16.mxu0 0
        %1753 = vmatpush2.bf16.msra.mxu0 0
        %1754 = vmatprep.mubr.bf16.mxu0 0
        %1755 = vmatmul.mubr.bf16.gmra.mxu0 %v1714
        %v1756 = vpop.f32.mrf.mxu0
        %v1757 = vadd.f32 0.0, %v1756
        %v1758 = vpop.f32.mrf.mxu0
        %v1759 = vpop.f32.mrf.mxu0
        %v1760 = vadd.f32 0.0, %v1759
        %v1761 = vpop.f32.mrf.mxu0
        %1762 = vmatprep.mubr.bf16.mxu0 0
        %1763 = vmatmul.mubr.bf16.gmra.mxu0 %v1717
        %v1764 = vpop.f32.mrf.mxu0
        %v1765 = vadd.f32 0.0, %v1764
        %v1766 = vpop.f32.mrf.mxu0
        %v1767 = vpop.f32.mrf.mxu0
        %v1768 = vadd.f32 0.0, %v1767
        %v1769 = vpop.f32.mrf.mxu0
        %1770 = vdwg.mxu0
        %v1771 = vadd.f32 %v1682, %v1757
        %v1772 = vadd.f32 %v1685, %v1760
        %v1773 = vadd.f32 %v1690, %v1765
        %v1774 = vadd.f32 %v1693, %v1768
        %v1775 = vpack.c.bf16 %v1545, %v1545
        %v1776 = vld [vmem:[%s15] sm:$0xf]
        %v1777 = vld [vmem:[%s15 + $0x4] sm:$0xf]
        %v1778 = vld [vmem:[%s15 + $0x8] sm:$0xf]
        %v1779 = vld [vmem:[%s15 + $0xc] sm:$0xf]
        %s1780 = scalar_lea.vmem %s15, 16
        %v1781 = vld [vmem:[%s1780] sm:$0xf]
        %v1782 = vld [vmem:[%s1780 + $0x4] sm:$0xf]
        %v1783 = vld [vmem:[%s1780 + $0x8] sm:$0xf]
        %v1784 = vld [vmem:[%s1780 + $0xc] sm:$0xf]
        %v1789 = vunpack.c.l.b16 %v1781
        %v1790 = vunpack.c.l.b16 %v1782
        %v1791 = vunpack.c.l.b16 %v1783
        %v1792 = vunpack.c.l.b16 %v1784
        %v1793 = vpack.c.b16 %v1790, %v1789
        %v1794 = vpack.c.b16 %v1792, %v1791
        %1796 = vrot.lane.b32.xlu0 %v1775, 127
        %v1797 = vpop.permute.xlu0 %1796
        %v1799 = vsel %vm712, %v1793, 0
        %v1802 = vsel %vm712, %v1794, 0
        %v1805 = vsel %vm716, %v1797, 0
        %1807 = vmatprep.subr.bf16.mxu0 0
        %1808 = vmatpush1.bf16.msra.mxu0 0
        %1809 = vmatprep.subr.bf16.mxu0 0
        %1810 = vmatpush1.bf16.msra.mxu0 0
        %1811 = vmatprep.subr.bf16.mxu0 0
        %1812 = vmatpush1.bf16.msra.mxu0 0
        %1813 = vmatprep.subr.bf16.mxu0 0
        %1814 = vmatpush1.bf16.msra.mxu0 0
        %1815 = vmatprep.subr.bf16.mxu0 0
        %1816 = vmatpush1.bf16.msra.mxu0 0
        %1817 = vmatprep.subr.bf16.mxu0 0
        %1818 = vmatpush1.bf16.msra.mxu0 0
        %1819 = vmatprep.subr.bf16.mxu0 0
        %1820 = vmatpush1.bf16.msra.mxu0 0
        %1821 = vmatprep.subr.bf16.mxu0 0
        %1822 = vmatpush1.bf16.msra.mxu0 %v1805
        %1823 = vmatprep.subr.bf16.mxu0 0
        %1824 = vmatpush2.bf16.msra.mxu0 0
        %1825 = vmatprep.subr.bf16.mxu0 0
        %1826 = vmatpush2.bf16.msra.mxu0 0
        %1827 = vmatprep.subr.bf16.mxu0 0
        %1828 = vmatpush2.bf16.msra.mxu0 0
        %1829 = vmatprep.subr.bf16.mxu0 0
        %1830 = vmatpush2.bf16.msra.mxu0 0
        %1831 = vmatprep.subr.bf16.mxu0 0
        %1832 = vmatpush2.bf16.msra.mxu0 0
        %1833 = vmatprep.subr.bf16.mxu0 0
        %1834 = vmatpush2.bf16.msra.mxu0 0
        %1835 = vmatprep.subr.bf16.mxu0 0
        %1836 = vmatpush2.bf16.msra.mxu0 0
        %1837 = vmatprep.subr.bf16.mxu0 0
        %1838 = vmatpush2.bf16.msra.mxu0 0
        %1839 = vmatprep.mubr.bf16.mxu0 0
        %1840 = vmatmul.mubr.bf16.gmra.mxu0 %v1799
        %v1841 = vpop.f32.mrf.mxu0
        %v1842 = vadd.f32 0.0, %v1841
        %v1843 = vpop.f32.mrf.mxu0
        %v1844 = vpop.f32.mrf.mxu0
        %v1845 = vadd.f32 0.0, %v1844
        %v1846 = vpop.f32.mrf.mxu0
        %1847 = vmatprep.mubr.bf16.mxu0 0
        %1848 = vmatmul.mubr.bf16.gmra.mxu0 %v1802
        %v1849 = vpop.f32.mrf.mxu0
        %v1850 = vadd.f32 0.0, %v1849
        %v1851 = vpop.f32.mrf.mxu0
        %v1852 = vpop.f32.mrf.mxu0
        %v1853 = vadd.f32 0.0, %v1852
        %v1854 = vpop.f32.mrf.mxu0
        %1855 = vdwg.mxu0
        %v1860 = vunpack.c.l.b16 %v1776
        %v1861 = vunpack.c.l.b16 %v1777
        %v1862 = vunpack.c.l.b16 %v1778
        %v1863 = vunpack.c.l.b16 %v1779
        %v1864 = vpack.c.b16 %v1861, %v1860
        %v1865 = vpack.c.b16 %v1863, %v1862
        %v1867 = vsel %vm712, %v1864, 0
        %v1870 = vsel %vm712, %v1865, 0
        %v1873 = vsel %vm716, %v1775, 0
        %1875 = vmatprep.subr.bf16.mxu0 0
        %1876 = vmatpush1.bf16.msra.mxu0 0
        %1877 = vmatprep.subr.bf16.mxu0 0
        %1878 = vmatpush1.bf16.msra.mxu0 0
        %1879 = vmatprep.subr.bf16.mxu0 0
        %1880 = vmatpush1.bf16.msra.mxu0 0
        %1881 = vmatprep.subr.bf16.mxu0 0
        %1882 = vmatpush1.bf16.msra.mxu0 0
        %1883 = vmatprep.subr.bf16.mxu0 0
        %1884 = vmatpush1.bf16.msra.mxu0 0
        %1885 = vmatprep.subr.bf16.mxu0 0
        %1886 = vmatpush1.bf16.msra.mxu0 0
        %1887 = vmatprep.subr.bf16.mxu0 0
        %1888 = vmatpush1.bf16.msra.mxu0 0
        %1889 = vmatprep.subr.bf16.mxu0 0
        %1890 = vmatpush1.bf16.msra.mxu0 %v1873
        %1891 = vmatprep.subr.bf16.mxu0 0
        %1892 = vmatpush2.bf16.msra.mxu0 0
        %1893 = vmatprep.subr.bf16.mxu0 0
        %1894 = vmatpush2.bf16.msra.mxu0 0
        %1895 = vmatprep.subr.bf16.mxu0 0
        %1896 = vmatpush2.bf16.msra.mxu0 0
        %1897 = vmatprep.subr.bf16.mxu0 0
        %1898 = vmatpush2.bf16.msra.mxu0 0
        %1899 = vmatprep.subr.bf16.mxu0 0
        %1900 = vmatpush2.bf16.msra.mxu0 0
        %1901 = vmatprep.subr.bf16.mxu0 0
        %1902 = vmatpush2.bf16.msra.mxu0 0
        %1903 = vmatprep.subr.bf16.mxu0 0
        %1904 = vmatpush2.bf16.msra.mxu0 0
        %1905 = vmatprep.subr.bf16.mxu0 0
        %1906 = vmatpush2.bf16.msra.mxu0 0
        %1907 = vmatprep.mubr.bf16.mxu0 0
        %1908 = vmatmul.mubr.bf16.gmra.mxu0 %v1867
        %v1909 = vpop.f32.mrf.mxu0
        %v1910 = vadd.f32 %v1842, %v1909
        %v1911 = vpop.f32.mrf.mxu0
        %v1912 = vpop.f32.mrf.mxu0
        %v1913 = vadd.f32 %v1845, %v1912
        %v1914 = vpop.f32.mrf.mxu0
        %1915 = vmatprep.mubr.bf16.mxu0 0
        %1916 = vmatmul.mubr.bf16.gmra.mxu0 %v1870
        %v1917 = vpop.f32.mrf.mxu0
        %v1918 = vadd.f32 %v1850, %v1917
        %v1919 = vpop.f32.mrf.mxu0
        %v1920 = vpop.f32.mrf.mxu0
        %v1921 = vadd.f32 %v1853, %v1920
        %v1922 = vpop.f32.mrf.mxu0
        %1923 = vdwg.mxu0
        %s1924 = scalar_lea.vmem %s15, 32
        %v1925 = vld [vmem:[%s1924] sm:$0xf]
        %v1926 = vld [vmem:[%s1924 + $0x4] sm:$0xf]
        %v1927 = vld [vmem:[%s1924 + $0x8] sm:$0xf]
        %v1928 = vld [vmem:[%s1924 + $0xc] sm:$0xf]
        %v1933 = vunpack.c.l.b16 %v1925
        %v1934 = vunpack.c.l.b16 %v1926
        %v1935 = vunpack.c.l.b16 %v1927
        %v1936 = vunpack.c.l.b16 %v1928
        %v1937 = vpack.c.b16 %v1934, %v1933
        %v1938 = vpack.c.b16 %v1936, %v1935
        %1939 = vrot.lane.b32.xlu0 %v1775, 126
        %v1940 = vpop.permute.xlu0 %1939
        %v1942 = vsel %vm712, %v1937, 0
        %v1945 = vsel %vm712, %v1938, 0
        %v1948 = vsel %vm716, %v1940, 0
        %1950 = vmatprep.subr.bf16.mxu0 0
        %1951 = vmatpush1.bf16.msra.mxu0 0
        %1952 = vmatprep.subr.bf16.mxu0 0
        %1953 = vmatpush1.bf16.msra.mxu0 0
        %1954 = vmatprep.subr.bf16.mxu0 0
        %1955 = vmatpush1.bf16.msra.mxu0 0
        %1956 = vmatprep.subr.bf16.mxu0 0
        %1957 = vmatpush1.bf16.msra.mxu0 0
        %1958 = vmatprep.subr.bf16.mxu0 0
        %1959 = vmatpush1.bf16.msra.mxu0 0
        %1960 = vmatprep.subr.bf16.mxu0 0
        %1961 = vmatpush1.bf16.msra.mxu0 0
        %1962 = vmatprep.subr.bf16.mxu0 0
        %1963 = vmatpush1.bf16.msra.mxu0 0
        %1964 = vmatprep.subr.bf16.mxu0 0
        %1965 = vmatpush1.bf16.msra.mxu0 %v1948
        %1966 = vmatprep.subr.bf16.mxu0 0
        %1967 = vmatpush2.bf16.msra.mxu0 0
        %1968 = vmatprep.subr.bf16.mxu0 0
        %1969 = vmatpush2.bf16.msra.mxu0 0
        %1970 = vmatprep.subr.bf16.mxu0 0
        %1971 = vmatpush2.bf16.msra.mxu0 0
        %1972 = vmatprep.subr.bf16.mxu0 0
        %1973 = vmatpush2.bf16.msra.mxu0 0
        %1974 = vmatprep.subr.bf16.mxu0 0
        %1975 = vmatpush2.bf16.msra.mxu0 0
        %1976 = vmatprep.subr.bf16.mxu0 0
        %1977 = vmatpush2.bf16.msra.mxu0 0
        %1978 = vmatprep.subr.bf16.mxu0 0
        %1979 = vmatpush2.bf16.msra.mxu0 0
        %1980 = vmatprep.subr.bf16.mxu0 0
        %1981 = vmatpush2.bf16.msra.mxu0 0
        %1982 = vmatprep.mubr.bf16.mxu0 0
        %1983 = vmatmul.mubr.bf16.gmra.mxu0 %v1942
        %v1984 = vpop.f32.mrf.mxu0
        %v1985 = vadd.f32 0.0, %v1984
        %v1986 = vpop.f32.mrf.mxu0
        %v1987 = vpop.f32.mrf.mxu0
        %v1988 = vadd.f32 0.0, %v1987
        %v1989 = vpop.f32.mrf.mxu0
        %1990 = vmatprep.mubr.bf16.mxu0 0
        %1991 = vmatmul.mubr.bf16.gmra.mxu0 %v1945
        %v1992 = vpop.f32.mrf.mxu0
        %v1993 = vadd.f32 0.0, %v1992
        %v1994 = vpop.f32.mrf.mxu0
        %v1995 = vpop.f32.mrf.mxu0
        %v1996 = vadd.f32 0.0, %v1995
        %v1997 = vpop.f32.mrf.mxu0
        %1998 = vdwg.mxu0
        %v1999 = vadd.f32 %v1910, %v1985
        %v2000 = vadd.f32 %v1913, %v1988
        %v2001 = vadd.f32 %v1918, %v1993
        %v2002 = vadd.f32 %v1921, %v1996
        %v2003 = vadd.f32 %v1771, %v1999
        %v2004 = vadd.f32 %v1772, %v2000
        %v2005 = vadd.f32 %v1773, %v2001
        %v2006 = vadd.f32 %v1774, %v2002
        %v2007 = vld [vmem:[%s16] sm:$0xff]
        %v2008 = vld [vmem:[%s16 + $0x8] sm:$0xff]
        %v2009 = vld [vmem:[%s16 + $0x10] sm:$0xff]
        %v2010 = vld [vmem:[%s16 + $0x18] sm:$0xff]
        %2012 = vset.pattern.permute.xlu0 0
        %2013 = vperm.xlu0 %2012, %v2007
        %v2014 = vpop.permute.xlu0 %2013
        %2017 = vset.pattern.permute.xlu0 0
        %2018 = vperm.xlu0 %2017, %v2008
        %v2019 = vpop.permute.xlu0 %2018
        %2022 = vset.pattern.permute.xlu0 0
        %2023 = vperm.xlu0 %2022, %v2009
        %v2024 = vpop.permute.xlu0 %2023
        %2027 = vset.pattern.permute.xlu0 0
        %2028 = vperm.xlu0 %2027, %v2010
        %v2029 = vpop.permute.xlu0 %2028
        %v2031 = vadd.f32 %v2003, %v2014
        %v2032 = vadd.f32 %v2004, %v2019
        %v2033 = vadd.f32 %v2005, %v2024
        %v2034 = vadd.f32 %v2006, %v2029
        %vm2035 = vcmp.ge.s32.totalorder %v887, 1
        %vm2036 = vcmp.lt.s32.totalorder %v887, 17
        %vm2037 = vmand %vm2035, %vm2036
        %v2038 = vsel %vm2037, 1, 0
        %vm2039 = vcmp.eq.s32.totalorder %v2038, 1
        %v2040 = vsel %vm2039, %v2031, 0.0
        %v2041 = vsel %vm2039, %v2032, 0.0
        %v2042 = vsel %vm2039, %v2033, 0.0
        %v2043 = vsel %vm2039, %v2034, 0.0
        %vm2044 = vcmask 146432
        %v2045 = vsel %vm2044, %v2040, 0.0
        %v2046 = vsel %vm2044, %v2041, 0.0
        %v2047 = vadd.f32 %v2045, %v2046
        %v2048 = vsel %vm2044, %v2042, 0.0
        %v2049 = vadd.f32 %v2047, %v2048
        %v2050 = vsel %vm2044, %v2043, 0.0
        %v2051 = vadd.f32 %v2049, %v2050
        %2052 = vadd.xlane.f32.xlu0 %v2051
        %v2053 = vpop.xlane.xlu0 %2052
        %v2054 = vrot.slane %v2053, 4
        %v2055 = vadd.f32 %v2053, %v2054
        %v2056 = vrot.slane %v2055, 2
        %v2057 = vadd.f32 %v2055, %v2056
        %v2058 = vrot.slane %v2057, 1
        %v2059 = vadd.f32 %v2057, %v2058
        %s2060 = vtos %v2059
        %v2061 = vrcp.pop 512.0
        %s2062 = vtos %v2061
        %s2063 = smul.f32 %s2060, %s2062
        %v2064 = vmul.f32 %v2040, %v2040
        %v2065 = vmul.f32 %v2041, %v2041
        %v2066 = vmul.f32 %v2042, %v2042
        %v2067 = vmul.f32 %v2043, %v2043
        %v2068 = vsel %vm2044, %v2064, 0.0
        %v2069 = vsel %vm2044, %v2065, 0.0
        %v2070 = vadd.f32 %v2068, %v2069
        %v2071 = vsel %vm2044, %v2066, 0.0
        %v2072 = vadd.f32 %v2070, %v2071
        %v2073 = vsel %vm2044, %v2067, 0.0
        %v2074 = vadd.f32 %v2072, %v2073
        %2075 = vadd.xlane.f32.xlu0 %v2074
        %v2076 = vpop.xlane.xlu0 %2075
        %v2077 = vrot.slane %v2076, 4
        %v2078 = vadd.f32 %v2076, %v2077
        %v2079 = vrot.slane %v2078, 2
        %v2080 = vadd.f32 %v2078, %v2079
        %v2081 = vrot.slane %v2080, 1
        %v2082 = vadd.f32 %v2080, %v2081
        %s2083 = vtos %v2082
        %v2084 = vrcp.pop 512.0
        %s2085 = vtos %v2084
        %s2086 = smul.f32 %s2083, %s2085
        %s2087 = smul.f32 %s2063, %s2063
        %s2088 = ssub.f32 %s2086, %s2087
        %s2089 = smax.f32 %s2088, 0.0
        %v2090 = vstv %s2063
        %v2091 = vsub.f32 %v2031, %v2090
        %v2092 = vsub.f32 %v2032, %v2090
        %v2093 = vsub.f32 %v2033, %v2090
        %v2094 = vsub.f32 %v2034, %v2090
        %s2095 = sadd.f32 %s2089, 1e-05
        %v2096 = vstv %s2095
        %v2097 = vrsqrt.pop %v2096
        %s2098 = vtos %v2097
        %v2099 = vstv %s2098
        %v2100 = vmul.f32 %v2091, %v2099
        %v2101 = vmul.f32 %v2092, %v2099
        %v2102 = vmul.f32 %v2093, %v2099
        %v2103 = vmul.f32 %v2094, %v2099
        %v2104 = vld [vmem:[%s17] sm:$0xff]
        %v2105 = vld [vmem:[%s17 + $0x8] sm:$0xff]
        %v2106 = vld [vmem:[%s17 + $0x10] sm:$0xff]
        %v2107 = vld [vmem:[%s17 + $0x18] sm:$0xff]
        %2109 = vset.pattern.permute.xlu0 0
        %2110 = vperm.xlu0 %2109, %v2104
        %v2111 = vpop.permute.xlu0 %2110
        %2114 = vset.pattern.permute.xlu0 0
        %2115 = vperm.xlu0 %2114, %v2105
        %v2116 = vpop.permute.xlu0 %2115
        %2119 = vset.pattern.permute.xlu0 0
        %2120 = vperm.xlu0 %2119, %v2106
        %v2121 = vpop.permute.xlu0 %2120
        %2124 = vset.pattern.permute.xlu0 0
        %2125 = vperm.xlu0 %2124, %v2107
        %v2126 = vpop.permute.xlu0 %2125
        %v2128 = vmul.f32 %v2100, %v2111
        %v2129 = vmul.f32 %v2101, %v2116
        %v2130 = vmul.f32 %v2102, %v2121
        %v2131 = vmul.f32 %v2103, %v2126
        %v2132 = vld [vmem:[%s18] sm:$0xff]
        %v2133 = vld [vmem:[%s18 + $0x8] sm:$0xff]
        %v2134 = vld [vmem:[%s18 + $0x10] sm:$0xff]
        %v2135 = vld [vmem:[%s18 + $0x18] sm:$0xff]
        %2137 = vset.pattern.permute.xlu0 0
        %2138 = vperm.xlu0 %2137, %v2132
        %v2139 = vpop.permute.xlu0 %2138
        %2142 = vset.pattern.permute.xlu0 0
        %2143 = vperm.xlu0 %2142, %v2133
        %v2144 = vpop.permute.xlu0 %2143
        %2147 = vset.pattern.permute.xlu0 0
        %2148 = vperm.xlu0 %2147, %v2134
        %v2149 = vpop.permute.xlu0 %2148
        %2152 = vset.pattern.permute.xlu0 0
        %2153 = vperm.xlu0 %2152, %v2135
        %v2154 = vpop.permute.xlu0 %2153
        %v2156 = vadd.f32 %v2128, %v2139
        %v2157 = vadd.f32 %v2129, %v2144
        %v2158 = vadd.f32 %v2130, %v2149
        %v2159 = vadd.f32 %v2131, %v2154
        %v2160 = vsub.f32 0.0, %v2158
        %v2161 = vsub.f32 0.0, %v2159
        %v2162 = vmul.f32 %v2160, 1.442695
        %v2163 = vpow.pop %v2162
        %v2164 = vmul.f32 %v2161, 1.442695
        %v2165 = vpow.pop %v2164
        %v2166 = vadd.f32 %v2163, 1.0
        %v2167 = vadd.f32 %v2165, 1.0
        %v2168 = vrcp.pop %v2166
        %v2169 = vrcp.pop %v2167
        %v2170 = vmul.f32 %v2156, %v2168
        %v2171 = vmul.f32 %v2157, %v2169
        %v2172 = vsel %vm2039, %v2170, 0.0
        %v2173 = vsel %vm2039, %v2171, 0.0
        %v2174 = vsel %vm2039, %v1543, 0.0
        %v2175 = vpack.c.bf16 %v2173, %v2172
        %v2176 = vld [vmem:[%s19] sm:$0x3]
        %s2177 = scalar_lea.vmem %s19, 2
        %v2178 = vld [vmem:[%s2177] sm:$0x3]
        %2180 = vrot.lane.b32.xlu0 %v2175, 127
        %v2181 = vpop.permute.xlu0 %2180
        %v2184 = vsel %vm992, %v2178, 0
        %2186 = vmatprep.subr.bf16.mxu0 0
        %2187 = vmatpush1.bf16.msra.mxu0 0
        %2188 = vmatprep.subr.bf16.mxu0 0
        %2189 = vmatpush1.bf16.msra.mxu0 0
        %2190 = vmatprep.subr.bf16.mxu0 0
        %2191 = vmatpush1.bf16.msra.mxu0 0
        %2192 = vmatprep.subr.bf16.mxu0 0
        %2193 = vmatpush1.bf16.msra.mxu0 0
        %2194 = vmatprep.subr.bf16.mxu0 0
        %2195 = vmatpush1.bf16.msra.mxu0 0
        %2196 = vmatprep.subr.bf16.mxu0 0
        %2197 = vmatpush1.bf16.msra.mxu0 0
        %2198 = vmatprep.subr.bf16.mxu0 0
        %2199 = vmatpush1.bf16.msra.mxu0 0
        %2200 = vmatprep.subr.bf16.mxu0 0
        %2201 = vmatpush1.bf16.msra.mxu0 %v2181
        %2202 = vmatprep.subr.bf16.mxu0 0
        %2203 = vmatpush2.bf16.msra.mxu0 0
        %2204 = vmatprep.subr.bf16.mxu0 0
        %2205 = vmatpush2.bf16.msra.mxu0 0
        %2206 = vmatprep.subr.bf16.mxu0 0
        %2207 = vmatpush2.bf16.msra.mxu0 0
        %2208 = vmatprep.subr.bf16.mxu0 0
        %2209 = vmatpush2.bf16.msra.mxu0 0
        %2210 = vmatprep.subr.bf16.mxu0 0
        %2211 = vmatpush2.bf16.msra.mxu0 0
        %2212 = vmatprep.subr.bf16.mxu0 0
        %2213 = vmatpush2.bf16.msra.mxu0 0
        %2214 = vmatprep.subr.bf16.mxu0 0
        %2215 = vmatpush2.bf16.msra.mxu0 0
        %2216 = vmatprep.subr.bf16.mxu0 0
        %2217 = vmatpush2.bf16.msra.mxu0 0
        %2218 = vmatprep.mubr.bf16.mxu0 0
        %2219 = vmatmul.mubr.bf16.gmra.mxu0 %v2184
        %v2220 = vpop.f32.mrf.mxu0
        %v2221 = vadd.f32 0.0, %v2220
        %v2222 = vpop.f32.mrf.mxu0
        %v2223 = vpop.f32.mrf.mxu0
        %v2224 = vpop.f32.mrf.mxu0
        %2225 = vdwg.mxu0
        %v2227 = vsel %vm992, %v2176, 0
        %2229 = vmatprep.subr.bf16.mxu0 0
        %2230 = vmatpush1.bf16.msra.mxu0 0
        %2231 = vmatprep.subr.bf16.mxu0 0
        %2232 = vmatpush1.bf16.msra.mxu0 0
        %2233 = vmatprep.subr.bf16.mxu0 0
        %2234 = vmatpush1.bf16.msra.mxu0 0
        %2235 = vmatprep.subr.bf16.mxu0 0
        %2236 = vmatpush1.bf16.msra.mxu0 0
        %2237 = vmatprep.subr.bf16.mxu0 0
        %2238 = vmatpush1.bf16.msra.mxu0 0
        %2239 = vmatprep.subr.bf16.mxu0 0
        %2240 = vmatpush1.bf16.msra.mxu0 0
        %2241 = vmatprep.subr.bf16.mxu0 0
        %2242 = vmatpush1.bf16.msra.mxu0 0
        %2243 = vmatprep.subr.bf16.mxu0 0
        %2244 = vmatpush1.bf16.msra.mxu0 %v2175
        %2245 = vmatprep.subr.bf16.mxu0 0
        %2246 = vmatpush2.bf16.msra.mxu0 0
        %2247 = vmatprep.subr.bf16.mxu0 0
        %2248 = vmatpush2.bf16.msra.mxu0 0
        %2249 = vmatprep.subr.bf16.mxu0 0
        %2250 = vmatpush2.bf16.msra.mxu0 0
        %2251 = vmatprep.subr.bf16.mxu0 0
        %2252 = vmatpush2.bf16.msra.mxu0 0
        %2253 = vmatprep.subr.bf16.mxu0 0
        %2254 = vmatpush2.bf16.msra.mxu0 0
        %2255 = vmatprep.subr.bf16.mxu0 0
        %2256 = vmatpush2.bf16.msra.mxu0 0
        %2257 = vmatprep.subr.bf16.mxu0 0
        %2258 = vmatpush2.bf16.msra.mxu0 0
        %2259 = vmatprep.subr.bf16.mxu0 0
        %2260 = vmatpush2.bf16.msra.mxu0 0
        %2261 = vmatprep.mubr.bf16.mxu0 0
        %2262 = vmatmul.mubr.bf16.gmra.mxu0 %v2227
        %v2263 = vpop.f32.mrf.mxu0
        %v2264 = vadd.f32 %v2221, %v2263
        %v2265 = vpop.f32.mrf.mxu0
        %v2266 = vpop.f32.mrf.mxu0
        %v2267 = vpop.f32.mrf.mxu0
        %2268 = vdwg.mxu0
        %s2269 = scalar_lea.vmem %s19, 4
        %v2270 = vld [vmem:[%s2269] sm:$0x3]
        %2271 = vrot.lane.b32.xlu0 %v2175, 126
        %v2272 = vpop.permute.xlu0 %2271
        %v2275 = vsel %vm992, %v2270, 0
        %2277 = vmatprep.subr.bf16.mxu0 0
        %2278 = vmatpush1.bf16.msra.mxu0 0
        %2279 = vmatprep.subr.bf16.mxu0 0
        %2280 = vmatpush1.bf16.msra.mxu0 0
        %2281 = vmatprep.subr.bf16.mxu0 0
        %2282 = vmatpush1.bf16.msra.mxu0 0
        %2283 = vmatprep.subr.bf16.mxu0 0
        %2284 = vmatpush1.bf16.msra.mxu0 0
        %2285 = vmatprep.subr.bf16.mxu0 0
        %2286 = vmatpush1.bf16.msra.mxu0 0
        %2287 = vmatprep.subr.bf16.mxu0 0
        %2288 = vmatpush1.bf16.msra.mxu0 0
        %2289 = vmatprep.subr.bf16.mxu0 0
        %2290 = vmatpush1.bf16.msra.mxu0 0
        %2291 = vmatprep.subr.bf16.mxu0 0
        %2292 = vmatpush1.bf16.msra.mxu0 %v2272
        %2293 = vmatprep.subr.bf16.mxu0 0
        %2294 = vmatpush2.bf16.msra.mxu0 0
        %2295 = vmatprep.subr.bf16.mxu0 0
        %2296 = vmatpush2.bf16.msra.mxu0 0
        %2297 = vmatprep.subr.bf16.mxu0 0
        %2298 = vmatpush2.bf16.msra.mxu0 0
        %2299 = vmatprep.subr.bf16.mxu0 0
        %2300 = vmatpush2.bf16.msra.mxu0 0
        %2301 = vmatprep.subr.bf16.mxu0 0
        %2302 = vmatpush2.bf16.msra.mxu0 0
        %2303 = vmatprep.subr.bf16.mxu0 0
        %2304 = vmatpush2.bf16.msra.mxu0 0
        %2305 = vmatprep.subr.bf16.mxu0 0
        %2306 = vmatpush2.bf16.msra.mxu0 0
        %2307 = vmatprep.subr.bf16.mxu0 0
        %2308 = vmatpush2.bf16.msra.mxu0 0
        %2309 = vmatprep.mubr.bf16.mxu0 0
        %2310 = vmatmul.mubr.bf16.gmra.mxu0 %v2275
        %v2311 = vpop.f32.mrf.mxu0
        %v2312 = vadd.f32 0.0, %v2311
        %v2313 = vpop.f32.mrf.mxu0
        %v2314 = vpop.f32.mrf.mxu0
        %v2315 = vpop.f32.mrf.mxu0
        %2316 = vdwg.mxu0
        %v2317 = vadd.f32 %v2264, %v2312
        %v2318 = vpack.c.bf16 %v2174, %v2174
        %v2319 = vld [vmem:[%s20] sm:$0x3]
        %s2320 = scalar_lea.vmem %s20, 2
        %v2321 = vld [vmem:[%s2320] sm:$0x3]
        %2323 = vrot.lane.b32.xlu0 %v2318, 127
        %v2324 = vpop.permute.xlu0 %2323
        %v2326 = vsel %vm712, %v2321, 0
        %v2329 = vsel %vm716, %v2324, 0
        %2331 = vmatprep.subr.bf16.mxu0 0
        %2332 = vmatpush1.bf16.msra.mxu0 0
        %2333 = vmatprep.subr.bf16.mxu0 0
        %2334 = vmatpush1.bf16.msra.mxu0 0
        %2335 = vmatprep.subr.bf16.mxu0 0
        %2336 = vmatpush1.bf16.msra.mxu0 0
        %2337 = vmatprep.subr.bf16.mxu0 0
        %2338 = vmatpush1.bf16.msra.mxu0 0
        %2339 = vmatprep.subr.bf16.mxu0 0
        %2340 = vmatpush1.bf16.msra.mxu0 0
        %2341 = vmatprep.subr.bf16.mxu0 0
        %2342 = vmatpush1.bf16.msra.mxu0 0
        %2343 = vmatprep.subr.bf16.mxu0 0
        %2344 = vmatpush1.bf16.msra.mxu0 0
        %2345 = vmatprep.subr.bf16.mxu0 0
        %2346 = vmatpush1.bf16.msra.mxu0 %v2329
        %2347 = vmatprep.subr.bf16.mxu0 0
        %2348 = vmatpush2.bf16.msra.mxu0 0
        %2349 = vmatprep.subr.bf16.mxu0 0
        %2350 = vmatpush2.bf16.msra.mxu0 0
        %2351 = vmatprep.subr.bf16.mxu0 0
        %2352 = vmatpush2.bf16.msra.mxu0 0
        %2353 = vmatprep.subr.bf16.mxu0 0
        %2354 = vmatpush2.bf16.msra.mxu0 0
        %2355 = vmatprep.subr.bf16.mxu0 0
        %2356 = vmatpush2.bf16.msra.mxu0 0
        %2357 = vmatprep.subr.bf16.mxu0 0
        %2358 = vmatpush2.bf16.msra.mxu0 0
        %2359 = vmatprep.subr.bf16.mxu0 0
        %2360 = vmatpush2.bf16.msra.mxu0 0
        %2361 = vmatprep.subr.bf16.mxu0 0
        %2362 = vmatpush2.bf16.msra.mxu0 0
        %2363 = vmatprep.mubr.bf16.mxu0 0
        %2364 = vmatmul.mubr.bf16.gmra.mxu0 %v2326
        %v2365 = vpop.f32.mrf.mxu0
        %v2366 = vadd.f32 0.0, %v2365
        %v2367 = vpop.f32.mrf.mxu0
        %v2368 = vpop.f32.mrf.mxu0
        %v2369 = vpop.f32.mrf.mxu0
        %2370 = vdwg.mxu0
        %v2372 = vsel %vm712, %v2319, 0
        %v2375 = vsel %vm716, %v2318, 0
        %2377 = vmatprep.subr.bf16.mxu0 0
        %2378 = vmatpush1.bf16.msra.mxu0 0
        %2379 = vmatprep.subr.bf16.mxu0 0
        %2380 = vmatpush1.bf16.msra.mxu0 0
        %2381 = vmatprep.subr.bf16.mxu0 0
        %2382 = vmatpush1.bf16.msra.mxu0 0
        %2383 = vmatprep.subr.bf16.mxu0 0
        %2384 = vmatpush1.bf16.msra.mxu0 0
        %2385 = vmatprep.subr.bf16.mxu0 0
        %2386 = vmatpush1.bf16.msra.mxu0 0
        %2387 = vmatprep.subr.bf16.mxu0 0
        %2388 = vmatpush1.bf16.msra.mxu0 0
        %2389 = vmatprep.subr.bf16.mxu0 0
        %2390 = vmatpush1.bf16.msra.mxu0 0
        %2391 = vmatprep.subr.bf16.mxu0 0
        %2392 = vmatpush1.bf16.msra.mxu0 %v2375
        %2393 = vmatprep.subr.bf16.mxu0 0
        %2394 = vmatpush2.bf16.msra.mxu0 0
        %2395 = vmatprep.subr.bf16.mxu0 0
        %2396 = vmatpush2.bf16.msra.mxu0 0
        %2397 = vmatprep.subr.bf16.mxu0 0
        %2398 = vmatpush2.bf16.msra.mxu0 0
        %2399 = vmatprep.subr.bf16.mxu0 0
        %2400 = vmatpush2.bf16.msra.mxu0 0
        %2401 = vmatprep.subr.bf16.mxu0 0
        %2402 = vmatpush2.bf16.msra.mxu0 0
        %2403 = vmatprep.subr.bf16.mxu0 0
        %2404 = vmatpush2.bf16.msra.mxu0 0
        %2405 = vmatprep.subr.bf16.mxu0 0
        %2406 = vmatpush2.bf16.msra.mxu0 0
        %2407 = vmatprep.subr.bf16.mxu0 0
        %2408 = vmatpush2.bf16.msra.mxu0 0
        %2409 = vmatprep.mubr.bf16.mxu0 0
        %2410 = vmatmul.mubr.bf16.gmra.mxu0 %v2372
        %v2411 = vpop.f32.mrf.mxu0
        %v2412 = vadd.f32 %v2366, %v2411
        %v2413 = vpop.f32.mrf.mxu0
        %v2414 = vpop.f32.mrf.mxu0
        %v2415 = vpop.f32.mrf.mxu0
        %2416 = vdwg.mxu0
        %s2417 = scalar_lea.vmem %s20, 4
        %v2418 = vld [vmem:[%s2417] sm:$0x3]
        %2419 = vrot.lane.b32.xlu0 %v2318, 126
        %v2420 = vpop.permute.xlu0 %2419
        %v2422 = vsel %vm712, %v2418, 0
        %v2425 = vsel %vm716, %v2420, 0
        %2427 = vmatprep.subr.bf16.mxu0 0
        %2428 = vmatpush1.bf16.msra.mxu0 0
        %2429 = vmatprep.subr.bf16.mxu0 0
        %2430 = vmatpush1.bf16.msra.mxu0 0
        %2431 = vmatprep.subr.bf16.mxu0 0
        %2432 = vmatpush1.bf16.msra.mxu0 0
        %2433 = vmatprep.subr.bf16.mxu0 0
        %2434 = vmatpush1.bf16.msra.mxu0 0
        %2435 = vmatprep.subr.bf16.mxu0 0
        %2436 = vmatpush1.bf16.msra.mxu0 0
        %2437 = vmatprep.subr.bf16.mxu0 0
        %2438 = vmatpush1.bf16.msra.mxu0 0
        %2439 = vmatprep.subr.bf16.mxu0 0
        %2440 = vmatpush1.bf16.msra.mxu0 0
        %2441 = vmatprep.subr.bf16.mxu0 0
        %2442 = vmatpush1.bf16.msra.mxu0 %v2425
        %2443 = vmatprep.subr.bf16.mxu0 0
        %2444 = vmatpush2.bf16.msra.mxu0 0
        %2445 = vmatprep.subr.bf16.mxu0 0
        %2446 = vmatpush2.bf16.msra.mxu0 0
        %2447 = vmatprep.subr.bf16.mxu0 0
        %2448 = vmatpush2.bf16.msra.mxu0 0
        %2449 = vmatprep.subr.bf16.mxu0 0
        %2450 = vmatpush2.bf16.msra.mxu0 0
        %2451 = vmatprep.subr.bf16.mxu0 0
        %2452 = vmatpush2.bf16.msra.mxu0 0
        %2453 = vmatprep.subr.bf16.mxu0 0
        %2454 = vmatpush2.bf16.msra.mxu0 0
        %2455 = vmatprep.subr.bf16.mxu0 0
        %2456 = vmatpush2.bf16.msra.mxu0 0
        %2457 = vmatprep.subr.bf16.mxu0 0
        %2458 = vmatpush2.bf16.msra.mxu0 0
        %2459 = vmatprep.mubr.bf16.mxu0 0
        %2460 = vmatmul.mubr.bf16.gmra.mxu0 %v2422
        %v2461 = vpop.f32.mrf.mxu0
        %v2462 = vadd.f32 0.0, %v2461
        %v2463 = vpop.f32.mrf.mxu0
        %v2464 = vpop.f32.mrf.mxu0
        %v2465 = vpop.f32.mrf.mxu0
        %2466 = vdwg.mxu0
        %v2467 = vadd.f32 %v2412, %v2462
        %v2468 = vadd.f32 %v2317, %v2467
        %v2469 = vld [vmem:[%s21] sm:$0xf]
        %2471 = vset.pattern.permute.xlu0 0
        %2472 = vperm.xlu0 %2471, %v2469
        %v2473 = vpop.permute.xlu0 %2472
        %v2475 = vadd.f32 %v2468, %v2473
        %vm2476 = vcmask 125952
        %2477 = vst.msk [vmem:[%s687] sm:$0xf] %vm2476, %v2475
        %s2478 = sand.u32 %s516, 1
        %s2479 = scalar_lea.sflag [#allocation3], %s2478
        %s2480 = sand.u32 %s516, 1
        %s2481 = smul.addr %s2480, 4
        %s2482 = scalar_lea.vmem [#allocation2], %s2481
        // Predicated region
        $region109: #{tpu_custom_call.1} parent=107 // pred_check
          %p2483 = pneg %p526
        $region110: #{tpu_custom_call.1} parent=107 // pred_check_branch
          %2485 = sbr.rel (%p2483) target = $region112
        $region111: #{tpu_custom_call.1} parent=107 // pred_region
          %s2487 = ssub.s32 64, 64
          %2488 = vsyncadd %s2479, %s2487
          %s2489 = smul.addr %s36, 64
          %s2490 = scalar_lea.hbm %s22, %s2489
          %s2492 = sshll.u32 %s2482, 4
          %s2493 = int_to_ptr.vmem [resolvable:$true] %s2492
          %2495 = dma.vmem_to_hbm [thread:$0]  %s2493, 64, %s2490, %s2479
        $region112: #{tpu_custom_call.1} parent=107 // pred_fallthru
          _
      $region108: #{tpu_custom_call.1} parent=5 // pred_fallthru
        _
      %p2496 = scmp.le.s32.totalorder 2, %s31
      // Predicated region
      $region113: #{tpu_custom_call.1} parent=5 // pred_check
        %p2497 = pneg %p2496
      $region114: #{tpu_custom_call.1} parent=5 // pred_check_branch
        %2499 = sbr.rel (%p2497) target = $region116
      $region115: #{tpu_custom_call.1} parent=5 // pred_region
        %s2500 = ssub.s32 %s31, 2
        // Predicated region
        $region117: #{tpu_custom_call.1} parent=115 // pred_check
          %p2501 = pneg %p532
        $region118: #{tpu_custom_call.1} parent=115 // pred_check_branch
          %2503 = sbr.rel (%p2501) target = $region120
        $region119: #{tpu_custom_call.1} parent=115 // pred_region
          %s2504 = sand.u32 %s517, 1
          %s2505 = scalar_lea.sflag [#allocation3], %s2504
          %s2506 = sand.u32 %s517, 1
          %s2507 = smul.addr %s2506, 4
          %s2508 = scalar_lea.vmem [#allocation2], %s2507
          %2509 = dma.done %s2505, 64
        $region120: #{tpu_custom_call.1} parent=115 // pred_fallthru
          _
      $region116: #{tpu_custom_call.1} parent=5 // pred_fallthru
        _
    $region6: #{tpu_custom_call.1} parent=1 // loop_footer
      %s35 = sadd.s32 1, %s31
    $region7: #{tpu_custom_call.1} parent=1 // loop_footer_branch
      %30 = sbr.rel target = $region3
    $region8: #{tpu_custom_call.1} parent=1 // loop_exit
      _
    %2510 = vsyncpa [#allocation3], 1
    %s2511 = scalar_lea.sflag [#allocation3], 1
    %2512 = vsyncpa %s2511, 1

</llo_original>
